<compile_context>
chip_gen: v7x
topology: tpu7x:2x2x1
jax: 0.10.0
libtpu: 0.0.40
codegen_flags: <defaults>
</compile_context>

<pallas_src>
import functools

import jax
import jax.numpy as jnp
from jax import lax
from jax.experimental import pallas as pl
from jax.experimental.pallas import tpu as pltpu


LN_EPS = 1e-5  # PyTorch nn.LayerNorm default


def _layer_norm(x, gamma, beta):
    mu = jnp.mean(x, axis=-1, keepdims=True)
    var = jnp.mean((x - mu) ** 2, axis=-1, keepdims=True)  # biased, like torch
    return (x - mu) * lax.rsqrt(var + LN_EPS) * gamma + beta


def encoder_layer_kernel(
    x_ref,
    wq_ref, bq_ref, wkv_ref, bkv_ref, wo_ref, bo_ref,
    w1_ref, b1_ref, w2_ref, b2_ref,
    g1_ref, be1_ref, g2_ref, be2_ref,
    out_ref, attn_ref,
    kv_scratch, ctx_scratch,
    *, n_heads, tq,
):
    H = n_heads
    L = x_ref.shape[1]
    D = x_ref.shape[2]
    E = D // H
    bf16 = jnp.bfloat16

    qi = pl.program_id(1)

    # ---- K|V projection for the FULL sequence: computed once per batch element.
    # The qi axis is sequential ("arbitrary"), so the scratch stays valid for all
    # subsequent query tiles of this batch element.
    @pl.when(qi == 0)
    def _():
        x_full = x_ref[0]                                       # [L, D] f32
        kv = jnp.dot(x_full.astype(bf16), wkv_ref[...],
                     preferred_element_type=jnp.float32) + bkv_ref[...]
        kv_scratch[...] = kv.astype(bf16)                       # [L, 2D] bf16

    # ---- Q projection for this query tile only (1/sqrt(E) folded into wq/bq). ----
    q0 = pl.multiple_of(qi * tq, tq)
    x_q = x_ref[0, pl.ds(q0, tq), :]                            # [TQ, D] f32
    q = jnp.dot(x_q.astype(bf16), wq_ref[...],
                preferred_element_type=jnp.float32) + bq_ref[...]

    # ---- multi-head full attention; each head's context is written into a
    # [TQ, D] bf16 scratch at its static lane offset so the output projection is a
    # single fused [TQ,D]x[D,D] matmul after the loop.
    # (Static unroll keeps all lane offsets static; scratch / attn stores terminate
    #  per-head live ranges.  For H >> 8, switch to a fori_loop over head chunks.)
    for h in range(H):
        lo = h * E
        qh = q[:, lo:lo + E].astype(bf16)                       # [TQ, E]
        kh = kv_scratch[:, lo:lo + E]                           # [L, E] bf16
        vh = kv_scratch[:, D + lo:D + lo + E]                   # [L, E] bf16

        # contract the E dim of both operands -> no explicit kh.T (no XLU transpose)
        s = lax.dot_general(qh, kh, (((1,), (1,)), ((), ())),
                            preferred_element_type=jnp.float32)  # [TQ, L]
        s = s - jnp.max(s, axis=-1, keepdims=True)
        p = jnp.exp(s)                                          # softmax math in f32
        # exact reciprocal: the same normalization feeds the returned attention map.
        inv = pl.reciprocal(jnp.sum(p, axis=-1, keepdims=True), approx=False)
        a = p * inv
        attn_ref[0, h] = a.astype(attn_ref.dtype)

        ctx = jnp.dot(a.astype(bf16), vh,
                      preferred_element_type=jnp.float32)       # [TQ, E]
        ctx_scratch[:, lo:lo + E] = ctx.astype(bf16)

    # single fused output projection over all heads
    new_x = jnp.dot(ctx_scratch[...], wo_ref[...],
                    preferred_element_type=jnp.float32) + bo_ref[...]

    # ---- residual + norm1 (dropout is identity in eval mode) ----
    x1 = x_q + new_x
    xn = _layer_norm(x1, g1_ref[...], be1_ref[...])             # y = x = norm1(...)

    # ---- position-wise FFN (1x1 convs == per-token linears) ----
    y = jnp.dot(xn.astype(bf16), w1_ref[...],
                preferred_element_type=jnp.float32) + b1_ref[...]
    y = jnp.maximum(y, 0.0)                                     # relu
    y = jnp.dot(y.astype(bf16), w2_ref[...],
                preferred_element_type=jnp.float32) + b2_ref[...]

    # ---- residual + norm2 ----
    out_ref[0] = _layer_norm(xn + y, g2_ref[...], be2_ref[...]).astype(out_ref.dtype)


def _default_tq(L):
    """Query tile: 256 on v6e (256-wide MXU, 128 MiB VMEM), 128 on v5e/v7x."""
    try:
        kind = jax.devices()[0].device_kind.lower()
    except Exception:
        kind = ""
    t = 256 if "v6" in kind else 128
    t = min(t, L)
    while L % t != 0 and t > 8:
        t //= 2
    return t


def _vmem_limit_bytes(L, D, F, H, tq, attn_itemsize):
    """Derive the scoped-VMEM budget from actual block/scratch sizes."""
    f32, bf16 = 4, 2
    est = 0
    est += L * D * f32 * 2                       # x block (full seq), double-buffered
    est += tq * D * f32 * 2                      # out block
    est += H * tq * L * attn_itemsize * 2        # attn output block
    est += (D * D + D * 2 * D + D * D + D * F + F * D) * bf16 * 2   # bf16 weights
    est += (D + 2 * D + D + F + D + 4 * D) * f32 * 2                # biases + LN params
    est += L * 2 * D * bf16 + tq * D * bf16      # kv + ctx scratch
    limit = max(int(est * 1.5) + (4 << 20), 32 << 20)
    try:
        cap = int(pltpu.get_tpu_info().vmem_capacity_bytes * 0.9)
    except Exception:
        cap = 64 << 20  # safe on all current generations (v7x physical VMEM = 64 MiB)
    return min(limit, cap)


def encoder_layer(x, params, n_heads, *, tq=None, attn_dtype=jnp.bfloat16):
    B, L, D = x.shape
    F = params["w1"].shape[1]
    H = n_heads
    assert D % H == 0, "d_model must be divisible by n_heads"
    E = D // H
    if tq is None:
        tq = _default_tq(L)
    assert L % tq == 0, "seq_len must be divisible by the query tile"
    nq = L // tq

    bf16 = jnp.bfloat16
    scale = 1.0 / (float(E) ** 0.5)
    # 1/sqrt(E) folded into the Q projection; K|V weights packed for one wide matmul;
    # all matmul weights cast to bf16 once here (halves their DMA + VMEM residency).
    wq = (params["wq"] * scale).astype(bf16)
    bq = params["bq"] * scale
    wkv = jnp.concatenate([params["wk"], params["wv"]], axis=1).astype(bf16)
    bkv = jnp.concatenate([params["bk"], params["bv"]], axis=1)
    wo = params["wo"].astype(bf16)
    w1 = params["w1"].astype(bf16)
    w2 = params["w2"].astype(bf16)

    def full(shape):
        # Constant-index weight/bias blocks (same tile for every grid step).
        return pl.BlockSpec(shape, lambda b, qi: (0,) * len(shape))

    in_specs = [
        pl.BlockSpec((1, L, D), lambda b, qi: (b, 0, 0)),    # x (full seq, per batch)
        full((D, D)), full((1, D)),                          # wq (scaled), bq (scaled)
        full((D, 2 * D)), full((1, 2 * D)),                  # wkv, bkv (packed)
        full((D, D)), full((1, D)),                          # wo, bo
        full((D, F)), full((1, F)),                          # conv1 (as linear)
        full((F, D)), full((1, D)),                          # conv2 (as linear)
        full((1, D)), full((1, D)),                          # norm1 gamma, beta
        full((1, D)), full((1, D)),                          # norm2 gamma, beta
    ]
    out_specs = (
        pl.BlockSpec((1, tq, D), lambda b, qi: (b, qi, 0)),
        pl.BlockSpec((1, H, tq, L), lambda b, qi: (b, 0, qi, 0)),
    )

    kernel = functools.partial(encoder_layer_kernel, n_heads=H, tq=tq)
    out, attn = pl.pallas_call(
        kernel,
        out_shape=(
            jax.ShapeDtypeStruct((B, L, D), jnp.float32),
            jax.ShapeDtypeStruct((B, H, L, L), attn_dtype),
        ),
        grid=(B, nq),
        in_specs=in_specs,
        out_specs=out_specs,
        scratch_shapes=[
            pltpu.VMEM((L, 2 * D), bf16),    # persistent K|V for the current batch elem
            pltpu.VMEM((tq, D), bf16),       # per-tile multi-head context
        ],
        compiler_params=pltpu.CompilerParams(
            # qi must be sequential so the K|V scratch stays valid across query tiles;
            # batch stays parallel for v7x megacore sharding.
            dimension_semantics=("parallel", "arbitrary"),
            vmem_limit_bytes=_vmem_limit_bytes(
                L, D, F, H, tq, jnp.dtype(attn_dtype).itemsize),
        ),
    )(
        x,
        wq, bq, wkv, bkv, wo, params["bo"],
        w1, params["b1"], w2, params["b2"],
        params["g1"], params["be1"], params["g2"], params["be2"],
    )
    return out, attn


def reference_encoder_layer(x, params, n_heads):
    """Pure-JAX f32 reference mirroring the PyTorch forward (eval mode)."""
    B, L, D = x.shape
    H = n_heads
    E = D // H
    q = x @ params["wq"] + params["bq"]
    k = x @ params["wk"] + params["bk"]
    v = x @ params["wv"] + params["bv"]
    q = q.reshape(B, L, H, E).transpose(0, 2, 1, 3)
    k = k.reshape(B, L, H, E).transpose(0, 2, 1, 3)
    v = v.reshape(B, L, H, E).transpose(0, 2, 1, 3)
    scores = jnp.einsum("bhqe,bhke->bhqk", q, k) / jnp.sqrt(E)
    a = jax.nn.softmax(scores, axis=-1)
    new_x = jnp.einsum("bhqk,bhke->bhqe", a, v).transpose(0, 2, 1, 3).reshape(B, L, D)
    new_x = new_x @ params["wo"] + params["bo"]
    x1 = x + new_x

    def ln(z, g, b):
        mu = jnp.mean(z, -1, keepdims=True)
        var = jnp.mean((z - mu) ** 2, -1, keepdims=True)
        return (z - mu) / jnp.sqrt(var + LN_EPS) * g + b

    xn = ln(x1, params["g1"], params["be1"])
    y = jnp.maximum(xn @ params["w1"] + params["b1"], 0.0)
    y = y @ params["w2"] + params["b2"]
    return ln(xn + y, params["g2"], params["be2"]), a


def make_params(key, d_model, d_ff, scale=0.05):
    ks = jax.random.split(key, 12)
    return {
        "wq": jax.random.normal(ks[0], (d_model, d_model), jnp.float32) * scale,
        "wk": jax.random.normal(ks[1], (d_model, d_model), jnp.float32) * scale,
        "wv": jax.random.normal(ks[2], (d_model, d_model), jnp.float32) * scale,
        "wo": jax.random.normal(ks[3], (d_model, d_model), jnp.float32) * scale,
        "bq": jax.random.normal(ks[4], (1, d_model), jnp.float32) * scale,
        "bk": jax.random.normal(ks[5], (1, d_model), jnp.float32) * scale,
        "bv": jax.random.normal(ks[6], (1, d_model), jnp.float32) * scale,
        "bo": jax.random.normal(ks[7], (1, d_model), jnp.float32) * scale,
        # conv1: nn.Conv1d(d_model, d_ff, 1).weight is [d_ff, d_model, 1]; stored
        # here pre-transposed as [d_model, d_ff] for the matmul form (exact for k=1).
        "w1": jax.random.normal(ks[8], (d_model, d_ff), jnp.float32) * scale,
        "b1": jax.random.normal(ks[9], (1, d_ff), jnp.float32) * scale,
        "w2": jax.random.normal(ks[10], (d_ff, d_model), jnp.float32) * scale,
        "b2": jax.random.normal(ks[11], (1, d_model), jnp.float32) * scale,
        "g1": jnp.ones((1, d_model), jnp.float32),
        "be1": jnp.zeros((1, d_model), jnp.float32),
        "g2": jnp.ones((1, d_model), jnp.float32),
        "be2": jnp.zeros((1, d_model), jnp.float32),
    }


if __name__ == "__main__":
    # Lane-dense shapes (D, L multiples of 128); L=256 with tq=128 gives two query
    # tiles per batch element so the K|V-scratch reuse path is actually exercised.
    B, L, d_model, n_heads = 2, 256, 128, 4
    d_ff = 4 * d_model  # 512

    key = jax.random.PRNGKey(0)
    kx, kp = jax.random.split(key)
    x = jax.random.normal(kx, (B, L, d_model), jnp.float32)
    params = make_params(kp, d_model, d_ff)

    out, attn = encoder_layer(x, params, n_heads, tq=128)
    out = jax.block_until_ready(out)
    attn = jax.block_until_ready(attn)

    ref_out, ref_attn = reference_encoder_layer(x, params, n_heads)
    assert out.shape == (B, L, d_model)
    assert attn.shape == (B, n_heads, L, L)
    # bf16 MXU operands (weights/activations/K/V/attn map) vs f32 reference.
    assert jnp.allclose(out, ref_out, atol=3e-2, rtol=3e-2), float(
        jnp.max(jnp.abs(out - ref_out)))
    assert jnp.allclose(attn.astype(jnp.float32), ref_attn, atol=2e-2, rtol=2e-2), float(
        jnp.max(jnp.abs(attn.astype(jnp.float32) - ref_attn)))

    print("KERNEL_OK")
</pallas_src>

<mosaic_0001>
module attributes {stable_mosaic.version = 11 : i64} {
  func.func @encoder_layer_kernel(%arg0: i32, %arg1: i32, %arg2: memref<1x256x128xf32, #tpu.memory_space<vmem>>, %arg3: memref<128x128xbf16, #tpu.memory_space<vmem>>, %arg4: memref<1x128xf32, #tpu.memory_space<vmem>>, %arg5: memref<128x256xbf16, #tpu.memory_space<vmem>>, %arg6: memref<1x256xf32, #tpu.memory_space<vmem>>, %arg7: memref<128x128xbf16, #tpu.memory_space<vmem>>, %arg8: memref<1x128xf32, #tpu.memory_space<vmem>>, %arg9: memref<128x512xbf16, #tpu.memory_space<vmem>>, %arg10: memref<1x512xf32, #tpu.memory_space<vmem>>, %arg11: memref<512x128xbf16, #tpu.memory_space<vmem>>, %arg12: memref<1x128xf32, #tpu.memory_space<vmem>>, %arg13: memref<1x128xf32, #tpu.memory_space<vmem>>, %arg14: memref<1x128xf32, #tpu.memory_space<vmem>>, %arg15: memref<1x128xf32, #tpu.memory_space<vmem>>, %arg16: memref<1x128xf32, #tpu.memory_space<vmem>>, %arg17: memref<1x128x128xf32, #tpu.memory_space<vmem>>, %arg18: memref<1x4x128x256xbf16, #tpu.memory_space<vmem>>, %arg19: memref<256x256xbf16, #tpu.memory_space<vmem>>, %arg20: memref<128x128xbf16, #tpu.memory_space<vmem>>) attributes {dimension_semantics = [#tpu.dimension_semantics<parallel>, #tpu.dimension_semantics<arbitrary>], iteration_bounds = array<i64: 2, 2>, scalar_prefetch = 0 : i64, scratch_operands = 2 : i64, tpu.core_type = #tpu.core_type<tc>, window_params = [{transform_indices = @transform_0, window_bounds = array<i64: 1, 256, 128>}, {pipeline_mode = #tpu.pipeline_mode<synchronous>, transform_indices = @transform_1, window_bounds = array<i64: 128, 128>}, {pipeline_mode = #tpu.pipeline_mode<synchronous>, transform_indices = @transform_2, window_bounds = array<i64: 1, 128>}, {pipeline_mode = #tpu.pipeline_mode<synchronous>, transform_indices = @transform_3, window_bounds = array<i64: 128, 256>}, {pipeline_mode = #tpu.pipeline_mode<synchronous>, transform_indices = @transform_4, window_bounds = array<i64: 1, 256>}, {pipeline_mode = #tpu.pipeline_mode<synchronous>, transform_indices = @transform_5, window_bounds = array<i64: 128, 128>}, {pipeline_mode = #tpu.pipeline_mode<synchronous>, transform_indices = @transform_6, window_bounds = array<i64: 1, 128>}, {pipeline_mode = #tpu.pipeline_mode<synchronous>, transform_indices = @transform_7, window_bounds = array<i64: 128, 512>}, {pipeline_mode = #tpu.pipeline_mode<synchronous>, transform_indices = @transform_8, window_bounds = array<i64: 1, 512>}, {pipeline_mode = #tpu.pipeline_mode<synchronous>, transform_indices = @transform_9, window_bounds = array<i64: 512, 128>}, {pipeline_mode = #tpu.pipeline_mode<synchronous>, transform_indices = @transform_10, window_bounds = array<i64: 1, 128>}, {pipeline_mode = #tpu.pipeline_mode<synchronous>, transform_indices = @transform_11, window_bounds = array<i64: 1, 128>}, {pipeline_mode = #tpu.pipeline_mode<synchronous>, transform_indices = @transform_12, window_bounds = array<i64: 1, 128>}, {pipeline_mode = #tpu.pipeline_mode<synchronous>, transform_indices = @transform_13, window_bounds = array<i64: 1, 128>}, {pipeline_mode = #tpu.pipeline_mode<synchronous>, transform_indices = @transform_14, window_bounds = array<i64: 1, 128>}, {transform_indices = @transform_15, window_bounds = array<i64: 1, 128, 128>}, {transform_indices = @transform_16, window_bounds = array<i64: 1, 4, 128, 256>}]} {
    %c0_i32 = arith.constant 0 : i32
    %0 = arith.cmpi eq, %arg1, %c0_i32 : i32
    %1 = arith.extui %0 : i1 to i32
    %c0_i32_0 = arith.constant 0 : i32
    %2 = arith.cmpi ne, %1, %c0_i32_0 : i32
    scf.if %2 {
      %c0_91 = arith.constant 0 : index
      %c0_92 = arith.constant 0 : index
      %c0_93 = arith.constant 0 : index
      %179 = vector.load %arg2[%c0_91, %c0_92, %c0_93] : memref<1x256x128xf32, #tpu.memory_space<vmem>>, vector<1x256x128xf32>
      %180 = vector.shape_cast %179 : vector<1x256x128xf32> to vector<256x128xf32>
      %181 = arith.truncf %180 : vector<256x128xf32> to vector<256x128xbf16>
      %c0_94 = arith.constant 0 : index
      %c0_95 = arith.constant 0 : index
      %182 = vector.load %arg5[%c0_94, %c0_95] : memref<128x256xbf16, #tpu.memory_space<vmem>>, vector<128x256xbf16>
      %cst_96 = arith.constant dense<0.000000e+00> : vector<256x256xf32>
      %183 = tpu.matmul %181, %182, %cst_96 {dimension_numbers = #tpu.dot_dimension_numbers<[1], [0], [0], [1], [0, 0, 1, 1], [], []>} : vector<256x128xbf16>, vector<128x256xbf16>, vector<256x256xf32> -> vector<256x256xf32>
      %c0_97 = arith.constant 0 : index
      %c0_98 = arith.constant 0 : index
      %184 = vector.load %arg6[%c0_97, %c0_98] : memref<1x256xf32, #tpu.memory_space<vmem>>, vector<1x256xf32>
      %185 = vector.broadcast %184 : vector<1x256xf32> to vector<256x256xf32>
      %186 = arith.addf %183, %185 : vector<256x256xf32>
      %187 = arith.truncf %186 : vector<256x256xf32> to vector<256x256xbf16>
      %c0_99 = arith.constant 0 : index
      %c0_100 = arith.constant 0 : index
      %188 = vector.load %arg19[%c0_99, %c0_100] : memref<256x256xbf16, #tpu.memory_space<vmem>>, vector<256x256xbf16>
      tpu.vector_store %arg19[%c0_99, %c0_100], %187 {strides = array<i32>} : memref<256x256xbf16, #tpu.memory_space<vmem>>, vector<256x256xbf16>,
    } else {
    }
    %c128_i32 = arith.constant 128 : i32
    %3 = arith.muli %arg1, %c128_i32 : i32
    %4 = tpu.assume_multiple %3, 128 : i32
    %c0 = arith.constant 0 : index
    %5 = arith.index_cast %4 : i32 to index
    %c0_1 = arith.constant 0 : index
    %6 = vector.load %arg2[%c0, %5, %c0_1] : memref<1x256x128xf32, #tpu.memory_space<vmem>>, vector<1x128x128xf32>
    %7 = vector.shape_cast %6 : vector<1x128x128xf32> to vector<128x128xf32>
    %8 = arith.truncf %7 : vector<128x128xf32> to vector<128x128xbf16>
    %c0_2 = arith.constant 0 : index
    %c0_3 = arith.constant 0 : index
    %9 = vector.load %arg3[%c0_2, %c0_3] : memref<128x128xbf16, #tpu.memory_space<vmem>>, vector<128x128xbf16>
    %cst = arith.constant dense<0.000000e+00> : vector<128x128xf32>
    %10 = tpu.matmul %8, %9, %cst {dimension_numbers = #tpu.dot_dimension_numbers<[1], [0], [0], [1], [0, 0, 1, 1], [], []>} : vector<128x128xbf16>, vector<128x128xbf16>, vector<128x128xf32> -> vector<128x128xf32>
    %c0_4 = arith.constant 0 : index
    %c0_5 = arith.constant 0 : index
    %11 = vector.load %arg4[%c0_4, %c0_5] : memref<1x128xf32, #tpu.memory_space<vmem>>, vector<1x128xf32>
    %12 = vector.broadcast %11 : vector<1x128xf32> to vector<128x128xf32>
    %13 = arith.addf %10, %12 : vector<128x128xf32>
    %14 = vector.extract_strided_slice %13 {offsets = [0, 0], sizes = [128, 32], strides = [1, 1]} : vector<128x128xf32> to vector<128x32xf32>
    %15 = arith.truncf %14 : vector<128x32xf32> to vector<128x32xbf16>
    %c0_6 = arith.constant 0 : index
    %c0_7 = arith.constant 0 : index
    %16 = vector.load %arg19[%c0_6, %c0_7] : memref<256x256xbf16, #tpu.memory_space<vmem>>, vector<256x32xbf16>
    %c0_8 = arith.constant 0 : index
    %c128 = arith.constant 128 : index
    %17 = vector.load %arg19[%c0_8, %c128] : memref<256x256xbf16, #tpu.memory_space<vmem>>, vector<256x32xbf16>
    %cst_9 = arith.constant dense<0.000000e+00> : vector<128x256xf32>
    %18 = tpu.matmul %15, %16, %cst_9 {dimension_numbers = #tpu.dot_dimension_numbers<[1], [1], [0], [0], [0, 0, 1, 0], [], []>} : vector<128x32xbf16>, vector<256x32xbf16>, vector<128x256xf32> -> vector<128x256xf32>
    %cst_10 = arith.constant dense<0xFF800000> : vector<128xf32>
    %19 = vector.multi_reduction <maximumf>, %18, %cst_10 [1] : vector<128x256xf32> to vector<128xf32>
    %20 = vector.shape_cast %19 : vector<128xf32> to vector<128x1xf32>
    %21 = vector.broadcast %20 : vector<128x1xf32> to vector<128x256xf32>
    %22 = arith.subf %18, %21 : vector<128x256xf32>
    %23 = math.exp %22 : vector<128x256xf32>
    %cst_11 = arith.constant dense<0.000000e+00> : vector<128xf32>
    %24 = vector.multi_reduction <add>, %23, %cst_11 [1] : vector<128x256xf32> to vector<128xf32>
    %25 = vector.shape_cast %24 : vector<128xf32> to vector<128x1xf32>
    %26 = tpu.reciprocal %25 : vector<128x1xf32> -> vector<128x1xf32>
    %27 = vector.broadcast %26 : vector<128x1xf32> to vector<128x256xf32>
    %28 = arith.mulf %23, %27 : vector<128x256xf32>
    %29 = arith.truncf %28 : vector<128x256xf32> to vector<128x256xbf16>
    %c0_12 = arith.constant 0 : index
    %c0_13 = arith.constant 0 : index
    %c0_14 = arith.constant 0 : index
    %c0_15 = arith.constant 0 : index
    %30 = vector.load %arg18[%c0_12, %c0_13, %c0_14, %c0_15] : memref<1x4x128x256xbf16, #tpu.memory_space<vmem>>, vector<1x1x128x256xbf16>
    %31 = vector.shape_cast %30 : vector<1x1x128x256xbf16> to vector<128x256xbf16>
    %32 = vector.shape_cast %29 : vector<128x256xbf16> to vector<1x1x128x256xbf16>
    tpu.vector_store %arg18[%c0_12, %c0_13, %c0_14, %c0_15], %32 {strides = array<i32>} : memref<1x4x128x256xbf16, #tpu.memory_space<vmem>>, vector<1x1x128x256xbf16>,
    %33 = arith.truncf %28 : vector<128x256xf32> to vector<128x256xbf16>
    %cst_16 = arith.constant dense<0.000000e+00> : vector<128x32xf32>
    %34 = tpu.matmul %33, %17, %cst_16 {dimension_numbers = #tpu.dot_dimension_numbers<[1], [0], [0], [1], [0, 0, 1, 1], [], []>} : vector<128x256xbf16>, vector<256x32xbf16>, vector<128x32xf32> -> vector<128x32xf32>
    %35 = arith.truncf %34 : vector<128x32xf32> to vector<128x32xbf16>
    %c0_17 = arith.constant 0 : index
    %c0_18 = arith.constant 0 : index
    %36 = vector.load %arg20[%c0_17, %c0_18] : memref<128x128xbf16, #tpu.memory_space<vmem>>, vector<128x32xbf16>
    tpu.vector_store %arg20[%c0_17, %c0_18], %35 {strides = array<i32>} : memref<128x128xbf16, #tpu.memory_space<vmem>>, vector<128x32xbf16>,
    %37 = vector.extract_strided_slice %13 {offsets = [0, 32], sizes = [128, 32], strides = [1, 1]} : vector<128x128xf32> to vector<128x32xf32>
    %38 = arith.truncf %37 : vector<128x32xf32> to vector<128x32xbf16>
    %c0_19 = arith.constant 0 : index
    %c32 = arith.constant 32 : index
    %39 = vector.load %arg19[%c0_19, %c32] : memref<256x256xbf16, #tpu.memory_space<vmem>>, vector<256x32xbf16>
    %c0_20 = arith.constant 0 : index
    %c160 = arith.constant 160 : index
    %40 = vector.load %arg19[%c0_20, %c160] : memref<256x256xbf16, #tpu.memory_space<vmem>>, vector<256x32xbf16>
    %cst_21 = arith.constant dense<0.000000e+00> : vector<128x256xf32>
    %41 = tpu.matmul %38, %39, %cst_21 {dimension_numbers = #tpu.dot_dimension_numbers<[1], [1], [0], [0], [0, 0, 1, 0], [], []>} : vector<128x32xbf16>, vector<256x32xbf16>, vector<128x256xf32> -> vector<128x256xf32>
    %cst_22 = arith.constant dense<0xFF800000> : vector<128xf32>
    %42 = vector.multi_reduction <maximumf>, %41, %cst_22 [1] : vector<128x256xf32> to vector<128xf32>
    %43 = vector.shape_cast %42 : vector<128xf32> to vector<128x1xf32>
    %44 = vector.broadcast %43 : vector<128x1xf32> to vector<128x256xf32>
    %45 = arith.subf %41, %44 : vector<128x256xf32>
    %46 = math.exp %45 : vector<128x256xf32>
    %cst_23 = arith.constant dense<0.000000e+00> : vector<128xf32>
    %47 = vector.multi_reduction <add>, %46, %cst_23 [1] : vector<128x256xf32> to vector<128xf32>
    %48 = vector.shape_cast %47 : vector<128xf32> to vector<128x1xf32>
    %49 = tpu.reciprocal %48 : vector<128x1xf32> -> vector<128x1xf32>
    %50 = vector.broadcast %49 : vector<128x1xf32> to vector<128x256xf32>
    %51 = arith.mulf %46, %50 : vector<128x256xf32>
    %52 = arith.truncf %51 : vector<128x256xf32> to vector<128x256xbf16>
    %c0_24 = arith.constant 0 : index
    %c1 = arith.constant 1 : index
    %c0_25 = arith.constant 0 : index
    %c0_26 = arith.constant 0 : index
    %53 = vector.load %arg18[%c0_24, %c1, %c0_25, %c0_26] : memref<1x4x128x256xbf16, #tpu.memory_space<vmem>>, vector<1x1x128x256xbf16>
    %54 = vector.shape_cast %53 : vector<1x1x128x256xbf16> to vector<128x256xbf16>
    %55 = vector.shape_cast %52 : vector<128x256xbf16> to vector<1x1x128x256xbf16>
    tpu.vector_store %arg18[%c0_24, %c1, %c0_25, %c0_26], %55 {strides = array<i32>} : memref<1x4x128x256xbf16, #tpu.memory_space<vmem>>, vector<1x1x128x256xbf16>,
    %56 = arith.truncf %51 : vector<128x256xf32> to vector<128x256xbf16>
    %cst_27 = arith.constant dense<0.000000e+00> : vector<128x32xf32>
    %57 = tpu.matmul %56, %40, %cst_27 {dimension_numbers = #tpu.dot_dimension_numbers<[1], [0], [0], [1], [0, 0, 1, 1], [], []>} : vector<128x256xbf16>, vector<256x32xbf16>, vector<128x32xf32> -> vector<128x32xf32>
    %58 = arith.truncf %57 : vector<128x32xf32> to vector<128x32xbf16>
    %c0_28 = arith.constant 0 : index
    %c32_29 = arith.constant 32 : index
    %59 = vector.load %arg20[%c0_28, %c32_29] : memref<128x128xbf16, #tpu.memory_space<vmem>>, vector<128x32xbf16>
    tpu.vector_store %arg20[%c0_28, %c32_29], %58 {strides = array<i32>} : memref<128x128xbf16, #tpu.memory_space<vmem>>, vector<128x32xbf16>,
    %60 = vector.extract_strided_slice %13 {offsets = [0, 64], sizes = [128, 32], strides = [1, 1]} : vector<128x128xf32> to vector<128x32xf32>
    %61 = arith.truncf %60 : vector<128x32xf32> to vector<128x32xbf16>
    %c0_30 = arith.constant 0 : index
    %c64 = arith.constant 64 : index
    %62 = vector.load %arg19[%c0_30, %c64] : memref<256x256xbf16, #tpu.memory_space<vmem>>, vector<256x32xbf16>
    %c0_31 = arith.constant 0 : index
    %c192 = arith.constant 192 : index
    %63 = vector.load %arg19[%c0_31, %c192] : memref<256x256xbf16, #tpu.memory_space<vmem>>, vector<256x32xbf16>
    %cst_32 = arith.constant dense<0.000000e+00> : vector<128x256xf32>
    %64 = tpu.matmul %61, %62, %cst_32 {dimension_numbers = #tpu.dot_dimension_numbers<[1], [1], [0], [0], [0, 0, 1, 0], [], []>} : vector<128x32xbf16>, vector<256x32xbf16>, vector<128x256xf32> -> vector<128x256xf32>
    %cst_33 = arith.constant dense<0xFF800000> : vector<128xf32>
    %65 = vector.multi_reduction <maximumf>, %64, %cst_33 [1] : vector<128x256xf32> to vector<128xf32>
    %66 = vector.shape_cast %65 : vector<128xf32> to vector<128x1xf32>
    %67 = vector.broadcast %66 : vector<128x1xf32> to vector<128x256xf32>
    %68 = arith.subf %64, %67 : vector<128x256xf32>
    %69 = math.exp %68 : vector<128x256xf32>
    %cst_34 = arith.constant dense<0.000000e+00> : vector<128xf32>
    %70 = vector.multi_reduction <add>, %69, %cst_34 [1] : vector<128x256xf32> to vector<128xf32>
    %71 = vector.shape_cast %70 : vector<128xf32> to vector<128x1xf32>
    %72 = tpu.reciprocal %71 : vector<128x1xf32> -> vector<128x1xf32>
    %73 = vector.broadcast %72 : vector<128x1xf32> to vector<128x256xf32>
    %74 = arith.mulf %69, %73 : vector<128x256xf32>
    %75 = arith.truncf %74 : vector<128x256xf32> to vector<128x256xbf16>
    %c0_35 = arith.constant 0 : index
    %c2 = arith.constant 2 : index
    %c0_36 = arith.constant 0 : index
    %c0_37 = arith.constant 0 : index
    %76 = vector.load %arg18[%c0_35, %c2, %c0_36, %c0_37] : memref<1x4x128x256xbf16, #tpu.memory_space<vmem>>, vector<1x1x128x256xbf16>
    %77 = vector.shape_cast %76 : vector<1x1x128x256xbf16> to vector<128x256xbf16>
    %78 = vector.shape_cast %75 : vector<128x256xbf16> to vector<1x1x128x256xbf16>
    tpu.vector_store %arg18[%c0_35, %c2, %c0_36, %c0_37], %78 {strides = array<i32>} : memref<1x4x128x256xbf16, #tpu.memory_space<vmem>>, vector<1x1x128x256xbf16>,
    %79 = arith.truncf %74 : vector<128x256xf32> to vector<128x256xbf16>
    %cst_38 = arith.constant dense<0.000000e+00> : vector<128x32xf32>
    %80 = tpu.matmul %79, %63, %cst_38 {dimension_numbers = #tpu.dot_dimension_numbers<[1], [0], [0], [1], [0, 0, 1, 1], [], []>} : vector<128x256xbf16>, vector<256x32xbf16>, vector<128x32xf32> -> vector<128x32xf32>
    %81 = arith.truncf %80 : vector<128x32xf32> to vector<128x32xbf16>
    %c0_39 = arith.constant 0 : index
    %c64_40 = arith.constant 64 : index
    %82 = vector.load %arg20[%c0_39, %c64_40] : memref<128x128xbf16, #tpu.memory_space<vmem>>, vector<128x32xbf16>
    tpu.vector_store %arg20[%c0_39, %c64_40], %81 {strides = array<i32>} : memref<128x128xbf16, #tpu.memory_space<vmem>>, vector<128x32xbf16>,
    %83 = vector.extract_strided_slice %13 {offsets = [0, 96], sizes = [128, 32], strides = [1, 1]} : vector<128x128xf32> to vector<128x32xf32>
    %84 = arith.truncf %83 : vector<128x32xf32> to vector<128x32xbf16>
    %c0_41 = arith.constant 0 : index
    %c96 = arith.constant 96 : index
    %85 = vector.load %arg19[%c0_41, %c96] : memref<256x256xbf16, #tpu.memory_space<vmem>>, vector<256x32xbf16>
    %c0_42 = arith.constant 0 : index
    %c224 = arith.constant 224 : index
    %86 = vector.load %arg19[%c0_42, %c224] : memref<256x256xbf16, #tpu.memory_space<vmem>>, vector<256x32xbf16>
    %cst_43 = arith.constant dense<0.000000e+00> : vector<128x256xf32>
    %87 = tpu.matmul %84, %85, %cst_43 {dimension_numbers = #tpu.dot_dimension_numbers<[1], [1], [0], [0], [0, 0, 1, 0], [], []>} : vector<128x32xbf16>, vector<256x32xbf16>, vector<128x256xf32> -> vector<128x256xf32>
    %cst_44 = arith.constant dense<0xFF800000> : vector<128xf32>
    %88 = vector.multi_reduction <maximumf>, %87, %cst_44 [1] : vector<128x256xf32> to vector<128xf32>
    %89 = vector.shape_cast %88 : vector<128xf32> to vector<128x1xf32>
    %90 = vector.broadcast %89 : vector<128x1xf32> to vector<128x256xf32>
    %91 = arith.subf %87, %90 : vector<128x256xf32>
    %92 = math.exp %91 : vector<128x256xf32>
    %cst_45 = arith.constant dense<0.000000e+00> : vector<128xf32>
    %93 = vector.multi_reduction <add>, %92, %cst_45 [1] : vector<128x256xf32> to vector<128xf32>
    %94 = vector.shape_cast %93 : vector<128xf32> to vector<128x1xf32>
    %95 = tpu.reciprocal %94 : vector<128x1xf32> -> vector<128x1xf32>
    %96 = vector.broadcast %95 : vector<128x1xf32> to vector<128x256xf32>
    %97 = arith.mulf %92, %96 : vector<128x256xf32>
    %98 = arith.truncf %97 : vector<128x256xf32> to vector<128x256xbf16>
    %c0_46 = arith.constant 0 : index
    %c3 = arith.constant 3 : index
    %c0_47 = arith.constant 0 : index
    %c0_48 = arith.constant 0 : index
    %99 = vector.load %arg18[%c0_46, %c3, %c0_47, %c0_48] : memref<1x4x128x256xbf16, #tpu.memory_space<vmem>>, vector<1x1x128x256xbf16>
    %100 = vector.shape_cast %99 : vector<1x1x128x256xbf16> to vector<128x256xbf16>
    %101 = vector.shape_cast %98 : vector<128x256xbf16> to vector<1x1x128x256xbf16>
    tpu.vector_store %arg18[%c0_46, %c3, %c0_47, %c0_48], %101 {strides = array<i32>} : memref<1x4x128x256xbf16, #tpu.memory_space<vmem>>, vector<1x1x128x256xbf16>,
    %102 = arith.truncf %97 : vector<128x256xf32> to vector<128x256xbf16>
    %cst_49 = arith.constant dense<0.000000e+00> : vector<128x32xf32>
    %103 = tpu.matmul %102, %86, %cst_49 {dimension_numbers = #tpu.dot_dimension_numbers<[1], [0], [0], [1], [0, 0, 1, 1], [], []>} : vector<128x256xbf16>, vector<256x32xbf16>, vector<128x32xf32> -> vector<128x32xf32>
    %104 = arith.truncf %103 : vector<128x32xf32> to vector<128x32xbf16>
    %c0_50 = arith.constant 0 : index
    %c96_51 = arith.constant 96 : index
    %105 = vector.load %arg20[%c0_50, %c96_51] : memref<128x128xbf16, #tpu.memory_space<vmem>>, vector<128x32xbf16>
    tpu.vector_store %arg20[%c0_50, %c96_51], %104 {strides = array<i32>} : memref<128x128xbf16, #tpu.memory_space<vmem>>, vector<128x32xbf16>,
    %c0_52 = arith.constant 0 : index
    %c0_53 = arith.constant 0 : index
    %106 = vector.load %arg20[%c0_52, %c0_53] : memref<128x128xbf16, #tpu.memory_space<vmem>>, vector<128x128xbf16>
    %c0_54 = arith.constant 0 : index
    %c0_55 = arith.constant 0 : index
    %107 = vector.load %arg7[%c0_54, %c0_55] : memref<128x128xbf16, #tpu.memory_space<vmem>>, vector<128x128xbf16>
    %cst_56 = arith.constant dense<0.000000e+00> : vector<128x128xf32>
    %108 = tpu.matmul %106, %107, %cst_56 {dimension_numbers = #tpu.dot_dimension_numbers<[1], [0], [0], [1], [0, 0, 1, 1], [], []>} : vector<128x128xbf16>, vector<128x128xbf16>, vector<128x128xf32> -> vector<128x128xf32>
    %c0_57 = arith.constant 0 : index
    %c0_58 = arith.constant 0 : index
    %109 = vector.load %arg8[%c0_57, %c0_58] : memref<1x128xf32, #tpu.memory_space<vmem>>, vector<1x128xf32>
    %110 = vector.broadcast %109 : vector<1x128xf32> to vector<128x128xf32>
    %111 = arith.addf %108, %110 : vector<128x128xf32>
    %112 = arith.addf %7, %111 : vector<128x128xf32>
    %c0_59 = arith.constant 0 : index
    %c0_60 = arith.constant 0 : index
    %113 = vector.load %arg13[%c0_59, %c0_60] : memref<1x128xf32, #tpu.memory_space<vmem>>, vector<1x128xf32>
    %c0_61 = arith.constant 0 : index
    %c0_62 = arith.constant 0 : index
    %114 = vector.load %arg14[%c0_61, %c0_62] : memref<1x128xf32, #tpu.memory_space<vmem>>, vector<1x128xf32>
    %cst_63 = arith.constant dense<0.000000e+00> : vector<128xf32>
    %115 = vector.multi_reduction <add>, %112, %cst_63 [1] : vector<128x128xf32> to vector<128xf32>
    %116 = vector.shape_cast %115 : vector<128xf32> to vector<128x1xf32>
    %cst_64 = arith.constant 1.280000e+02 : f32
    %117 = vector.broadcast %cst_64 : f32 to vector<128x1xf32>
    %118 = arith.divf %116, %117 : vector<128x1xf32>
    %119 = vector.broadcast %118 : vector<128x1xf32> to vector<128x128xf32>
    %120 = arith.subf %112, %119 : vector<128x128xf32>
    %121 = arith.mulf %120, %120 : vector<128x128xf32>
    %cst_65 = arith.constant dense<0.000000e+00> : vector<128xf32>
    %122 = vector.multi_reduction <add>, %121, %cst_65 [1] : vector<128x128xf32> to vector<128xf32>
    %123 = vector.shape_cast %122 : vector<128xf32> to vector<128x1xf32>
    %cst_66 = arith.constant 1.280000e+02 : f32
    %124 = vector.broadcast %cst_66 : f32 to vector<128x1xf32>
    %125 = arith.divf %123, %124 : vector<128x1xf32>
    %126 = vector.broadcast %118 : vector<128x1xf32> to vector<128x128xf32>
    %127 = arith.subf %112, %126 : vector<128x128xf32>
    %cst_67 = arith.constant 9.99999974E-6 : f32
    %128 = vector.broadcast %cst_67 : f32 to vector<128x1xf32>
    %129 = arith.addf %125, %128 : vector<128x1xf32>
    %130 = math.rsqrt %129 : vector<128x1xf32>
    %131 = vector.broadcast %130 : vector<128x1xf32> to vector<128x128xf32>
    %132 = arith.mulf %127, %131 : vector<128x128xf32>
    %133 = vector.broadcast %113 : vector<1x128xf32> to vector<128x128xf32>
    %134 = arith.mulf %132, %133 : vector<128x128xf32>
    %135 = vector.broadcast %114 : vector<1x128xf32> to vector<128x128xf32>
    %136 = arith.addf %134, %135 : vector<128x128xf32>
    %137 = arith.truncf %136 : vector<128x128xf32> to vector<128x128xbf16>
    %c0_68 = arith.constant 0 : index
    %c0_69 = arith.constant 0 : index
    %138 = vector.load %arg9[%c0_68, %c0_69] : memref<128x512xbf16, #tpu.memory_space<vmem>>, vector<128x512xbf16>
    %cst_70 = arith.constant dense<0.000000e+00> : vector<128x512xf32>
    %139 = tpu.matmul %137, %138, %cst_70 {dimension_numbers = #tpu.dot_dimension_numbers<[1], [0], [0], [1], [0, 0, 1, 1], [], []>} : vector<128x128xbf16>, vector<128x512xbf16>, vector<128x512xf32> -> vector<128x512xf32>
    %c0_71 = arith.constant 0 : index
    %c0_72 = arith.constant 0 : index
    %140 = vector.load %arg10[%c0_71, %c0_72] : memref<1x512xf32, #tpu.memory_space<vmem>>, vector<1x512xf32>
    %141 = vector.broadcast %140 : vector<1x512xf32> to vector<128x512xf32>
    %142 = arith.addf %139, %141 : vector<128x512xf32>
    %cst_73 = arith.constant 0.000000e+00 : f32
    %143 = vector.broadcast %cst_73 : f32 to vector<128x512xf32>
    %144 = arith.maximumf %142, %143 : vector<128x512xf32>
    %145 = arith.truncf %144 : vector<128x512xf32> to vector<128x512xbf16>
    %c0_74 = arith.constant 0 : index
    %c0_75 = arith.constant 0 : index
    %146 = vector.load %arg11[%c0_74, %c0_75] : memref<512x128xbf16, #tpu.memory_space<vmem>>, vector<512x128xbf16>
    %cst_76 = arith.constant dense<0.000000e+00> : vector<128x128xf32>
    %147 = tpu.matmul %145, %146, %cst_76 {dimension_numbers = #tpu.dot_dimension_numbers<[1], [0], [0], [1], [0, 0, 1, 1], [], []>} : vector<128x512xbf16>, vector<512x128xbf16>, vector<128x128xf32> -> vector<128x128xf32>
    %c0_77 = arith.constant 0 : index
    %c0_78 = arith.constant 0 : index
    %148 = vector.load %arg12[%c0_77, %c0_78] : memref<1x128xf32, #tpu.memory_space<vmem>>, vector<1x128xf32>
    %149 = vector.broadcast %148 : vector<1x128xf32> to vector<128x128xf32>
    %150 = arith.addf %147, %149 : vector<128x128xf32>
    %151 = arith.addf %136, %150 : vector<128x128xf32>
    %c0_79 = arith.constant 0 : index
    %c0_80 = arith.constant 0 : index
    %152 = vector.load %arg15[%c0_79, %c0_80] : memref<1x128xf32, #tpu.memory_space<vmem>>, vector<1x128xf32>
    %c0_81 = arith.constant 0 : index
    %c0_82 = arith.constant 0 : index
    %153 = vector.load %arg16[%c0_81, %c0_82] : memref<1x128xf32, #tpu.memory_space<vmem>>, vector<1x128xf32>
    %cst_83 = arith.constant dense<0.000000e+00> : vector<128xf32>
    %154 = vector.multi_reduction <add>, %151, %cst_83 [1] : vector<128x128xf32> to vector<128xf32>
    %155 = vector.shape_cast %154 : vector<128xf32> to vector<128x1xf32>
    %cst_84 = arith.constant 1.280000e+02 : f32
    %156 = vector.broadcast %cst_84 : f32 to vector<128x1xf32>
    %157 = arith.divf %155, %156 : vector<128x1xf32>
    %158 = vector.broadcast %157 : vector<128x1xf32> to vector<128x128xf32>
    %159 = arith.subf %151, %158 : vector<128x128xf32>
    %160 = arith.mulf %159, %159 : vector<128x128xf32>
    %cst_85 = arith.constant dense<0.000000e+00> : vector<128xf32>
    %161 = vector.multi_reduction <add>, %160, %cst_85 [1] : vector<128x128xf32> to vector<128xf32>
    %162 = vector.shape_cast %161 : vector<128xf32> to vector<128x1xf32>
    %cst_86 = arith.constant 1.280000e+02 : f32
    %163 = vector.broadcast %cst_86 : f32 to vector<128x1xf32>
    %164 = arith.divf %162, %163 : vector<128x1xf32>
    %165 = vector.broadcast %157 : vector<128x1xf32> to vector<128x128xf32>
    %166 = arith.subf %151, %165 : vector<128x128xf32>
    %cst_87 = arith.constant 9.99999974E-6 : f32
    %167 = vector.broadcast %cst_87 : f32 to vector<128x1xf32>
    %168 = arith.addf %164, %167 : vector<128x1xf32>
    %169 = math.rsqrt %168 : vector<128x1xf32>
    %170 = vector.broadcast %169 : vector<128x1xf32> to vector<128x128xf32>
    %171 = arith.mulf %166, %170 : vector<128x128xf32>
    %172 = vector.broadcast %152 : vector<1x128xf32> to vector<128x128xf32>
    %173 = arith.mulf %171, %172 : vector<128x128xf32>
    %174 = vector.broadcast %153 : vector<1x128xf32> to vector<128x128xf32>
    %175 = arith.addf %173, %174 : vector<128x128xf32>
    %c0_88 = arith.constant 0 : index
    %c0_89 = arith.constant 0 : index
    %c0_90 = arith.constant 0 : index
    %176 = vector.load %arg17[%c0_88, %c0_89, %c0_90] : memref<1x128x128xf32, #tpu.memory_space<vmem>>, vector<1x128x128xf32>
    %177 = vector.shape_cast %176 : vector<1x128x128xf32> to vector<128x128xf32>
    %178 = vector.shape_cast %175 : vector<128x128xf32> to vector<1x128x128xf32>
    tpu.vector_store %arg17[%c0_88, %c0_89, %c0_90], %178 {strides = array<i32>} : memref<1x128x128xf32, #tpu.memory_space<vmem>>, vector<1x128x128xf32>,
    return
  }
  func.func @transform_0(%arg0: i32, %arg1: i32) -> (i32, i32, i32) {
    %c0_i32 = arith.constant 0 : i32
    %c0_i32_0 = arith.constant 0 : i32
    %c0_i32_1 = arith.constant 0 : i32
    return %arg0, %c0_i32, %c0_i32_0 : i32, i32, i32
  }
  func.func @transform_1(%arg0: i32, %arg1: i32) -> (i32, i32) {
    %c0_i32 = arith.constant 0 : i32
    %c0_i32_0 = arith.constant 0 : i32
    %c0_i32_1 = arith.constant 0 : i32
    return %c0_i32, %c0_i32_0 : i32, i32
  }
  func.func @transform_2(%arg0: i32, %arg1: i32) -> (i32, i32) {
    %c0_i32 = arith.constant 0 : i32
    %c0_i32_0 = arith.constant 0 : i32
    %c0_i32_1 = arith.constant 0 : i32
    return %c0_i32, %c0_i32_0 : i32, i32
  }
  func.func @transform_3(%arg0: i32, %arg1: i32) -> (i32, i32) {
    %c0_i32 = arith.constant 0 : i32
    %c0_i32_0 = arith.constant 0 : i32
    %c0_i32_1 = arith.constant 0 : i32
    return %c0_i32, %c0_i32_0 : i32, i32
  }
  func.func @transform_4(%arg0: i32, %arg1: i32) -> (i32, i32) {
    %c0_i32 = arith.constant 0 : i32
    %c0_i32_0 = arith.constant 0 : i32
    %c0_i32_1 = arith.constant 0 : i32
    return %c0_i32, %c0_i32_0 : i32, i32
  }
  func.func @transform_5(%arg0: i32, %arg1: i32) -> (i32, i32) {
    %c0_i32 = arith.constant 0 : i32
    %c0_i32_0 = arith.constant 0 : i32
    %c0_i32_1 = arith.constant 0 : i32
    return %c0_i32, %c0_i32_0 : i32, i32
  }
  func.func @transform_6(%arg0: i32, %arg1: i32) -> (i32, i32) {
    %c0_i32 = arith.constant 0 : i32
    %c0_i32_0 = arith.constant 0 : i32
    %c0_i32_1 = arith.constant 0 : i32
    return %c0_i32, %c0_i32_0 : i32, i32
  }
  func.func @transform_7(%arg0: i32, %arg1: i32) -> (i32, i32) {
    %c0_i32 = arith.constant 0 : i32
    %c0_i32_0 = arith.constant 0 : i32
    %c0_i32_1 = arith.constant 0 : i32
    return %c0_i32, %c0_i32_0 : i32, i32
  }
  func.func @transform_8(%arg0: i32, %arg1: i32) -> (i32, i32) {
    %c0_i32 = arith.constant 0 : i32
    %c0_i32_0 = arith.constant 0 : i32
    %c0_i32_1 = arith.constant 0 : i32
    return %c0_i32, %c0_i32_0 : i32, i32
  }
  func.func @transform_9(%arg0: i32, %arg1: i32) -> (i32, i32) {
    %c0_i32 = arith.constant 0 : i32
    %c0_i32_0 = arith.constant 0 : i32
    %c0_i32_1 = arith.constant 0 : i32
    return %c0_i32, %c0_i32_0 : i32, i32
  }
  func.func @transform_10(%arg0: i32, %arg1: i32) -> (i32, i32) {
    %c0_i32 = arith.constant 0 : i32
    %c0_i32_0 = arith.constant 0 : i32
    %c0_i32_1 = arith.constant 0 : i32
    return %c0_i32, %c0_i32_0 : i32, i32
  }
  func.func @transform_11(%arg0: i32, %arg1: i32) -> (i32, i32) {
    %c0_i32 = arith.constant 0 : i32
    %c0_i32_0 = arith.constant 0 : i32
    %c0_i32_1 = arith.constant 0 : i32
    return %c0_i32, %c0_i32_0 : i32, i32
  }
  func.func @transform_12(%arg0: i32, %arg1: i32) -> (i32, i32) {
    %c0_i32 = arith.constant 0 : i32
    %c0_i32_0 = arith.constant 0 : i32
    %c0_i32_1 = arith.constant 0 : i32
    return %c0_i32, %c0_i32_0 : i32, i32
  }
  func.func @transform_13(%arg0: i32, %arg1: i32) -> (i32, i32) {
    %c0_i32 = arith.constant 0 : i32
    %c0_i32_0 = arith.constant 0 : i32
    %c0_i32_1 = arith.constant 0 : i32
    return %c0_i32, %c0_i32_0 : i32, i32
  }
  func.func @transform_14(%arg0: i32, %arg1: i32) -> (i32, i32) {
    %c0_i32 = arith.constant 0 : i32
    %c0_i32_0 = arith.constant 0 : i32
    %c0_i32_1 = arith.constant 0 : i32
    return %c0_i32, %c0_i32_0 : i32, i32
  }
  func.func @transform_15(%arg0: i32, %arg1: i32) -> (i32, i32, i32) {
    %c0_i32 = arith.constant 0 : i32
    %c0_i32_0 = arith.constant 0 : i32
    return %arg0, %arg1, %c0_i32 : i32, i32, i32
  }
  func.func @transform_16(%arg0: i32, %arg1: i32) -> (i32, i32, i32, i32) {
    %c0_i32 = arith.constant 0 : i32
    %c0_i32_0 = arith.constant 0 : i32
    %c0_i32_1 = arith.constant 0 : i32
    return %arg0, %c0_i32, %arg1, %c0_i32_0 : i32, i32, i32, i32
  }
}

</mosaic_0001>

<llo_original>
// kernel: tpu_custom_call.1
$region0: #{tpu_custom_call.1}
  #allocation0 [shape = 'u32[]', space=smem, size = 0x4, offset = 0x4, fixed_abs, tag = 'smem constant byte address 0x4 - core index']
  #allocation1 [shape = 'u32[144,128]{1,0:T(1,128)}', space=vmem, size = 0x12000, scoped, tag = 'internal scratch']
  #allocation2 [shape = 'bf16[256,256]{1,0:T(16,128)(2,1)}', space=vmem, size = 0x20000, scoped, tag = 'scratch operand']
  #allocation3 [shape = 'bf16[128,128]{1,0:T(16,128)(2,1)}', space=vmem, size = 0x8000, scoped, tag = 'scratch operand']
  #allocation18 [shape = 's32[]', space=sflag, size = 0x4, offset = 0, fixed_abs, tag = 'sflag constant byte address 0x0 - dummy sync flag']
  %s0 = inlined_call_operand.hbm [shape: f32[2,256,128], index: 0, kind: input, shape index: {}]
  %s1 = inlined_call_operand.hbm [shape: bf16[128,128], index: 1, kind: input, shape index: {}]
  %s2 = inlined_call_operand.vmem [shape: f32[1,128], index: 2, kind: input, shape index: {}]
  %s3 = inlined_call_operand.hbm [shape: bf16[128,256], index: 3, kind: input, shape index: {}]
  %s4 = inlined_call_operand.vmem [shape: f32[1,256], index: 4, kind: input, shape index: {}]
  %s5 = inlined_call_operand.hbm [shape: bf16[128,128], index: 5, kind: input, shape index: {}]
  %s6 = inlined_call_operand.vmem [shape: f32[1,128], index: 6, kind: input, shape index: {}]
  %s7 = inlined_call_operand.hbm [shape: bf16[128,512], index: 7, kind: input, shape index: {}]
  %s8 = inlined_call_operand.vmem [shape: f32[1,512], index: 8, kind: input, shape index: {}]
  %s9 = inlined_call_operand.hbm [shape: bf16[512,128], index: 9, kind: input, shape index: {}]
  %s10 = inlined_call_operand.vmem [shape: f32[1,128], index: 10, kind: input, shape index: {}]
  %s11 = inlined_call_operand.vmem [shape: f32[1,128], index: 11, kind: input, shape index: {}]
  %s12 = inlined_call_operand.vmem [shape: f32[1,128], index: 12, kind: input, shape index: {}]
  %s13 = inlined_call_operand.vmem [shape: f32[1,128], index: 13, kind: input, shape index: {}]
  %s14 = inlined_call_operand.vmem [shape: f32[1,128], index: 14, kind: input, shape index: {}]
  %s15 = inlined_call_operand.hbm [shape: f32[2,256,128], index: 15, kind: output, shape index: {0}]
  %s16 = inlined_call_operand.hbm [shape: bf16[2,4,256,256], index: 16, kind: output, shape index: {1}]
  %17 = xla_tuple %s15, %s16
  %s18 = sld [smem:[#allocation0]]
  $region129: #{tpu_custom_call.1} parent=0
    _
  %s20 = ssub.s32 1, %s18
  %s21 = scalar_select 0, %s20, %s18
  $region1: #{tpu_custom_call.1} parent=0
    #allocation4 [shape = 'u8[262144]{0}', space=vmem, size = 0x40000, scoped, tag = 'input window, operand 0']
    #allocation5 [shape = 's32[2]{0}', space=sflag, size = 0x8, scoped, tag = 'scoped memory for tpu_custom_call.1']
    #allocation6 [shape = 's32[2]{0}', space=sflag, size = 0x8, scoped, tag = 'scoped memory for tpu_custom_call.1']
    #allocation7 [shape = 'u8[32768]{0}', space=vmem, size = 0x8000, scoped, tag = 'input window, operand 1, single buffered']
    #allocation8 [shape = 's32[1]{0}', space=sflag, size = 0x4, scoped, tag = 'scoped memory for tpu_custom_call.1']
    #allocation9 [shape = 'u8[65536]{0}', space=vmem, size = 0x10000, scoped, tag = 'input window, operand 3, single buffered']
    #allocation10 [shape = 'u8[32768]{0}', space=vmem, size = 0x8000, scoped, tag = 'input window, operand 5, single buffered']
    #allocation11 [shape = 's32[1]{0}', space=sflag, size = 0x4, scoped, tag = 'scoped memory for tpu_custom_call.1']
    #allocation12 [shape = 'u8[131072]{0}', space=vmem, size = 0x20000, scoped, tag = 'input window, operand 7, single buffered']
    #allocation13 [shape = 'u8[131072]{0}', space=vmem, size = 0x20000, scoped, tag = 'input window, operand 9, single buffered']
    #allocation14 [shape = 's32[1]{0}', space=sflag, size = 0x4, scoped, tag = 'scoped memory for tpu_custom_call.1']
    #allocation15 [shape = 'u8[131072]{0}', space=vmem, size = 0x20000, scoped, tag = 'output window, operand 0']
    #allocation16 [shape = 'u8[524288]{0}', space=vmem, size = 0x80000, scoped, tag = 'output window, operand 1']
    #allocation17 [shape = 's32[2]{0}', space=sflag, size = 0x8, scoped, tag = 'scoped memory for tpu_custom_call.1']
    %22 = vsyncpa [#allocation5], 0
    %s23 = scalar_lea.sflag [#allocation5], 1
    %24 = vsyncpa %s23, 0
    %25 = vsyncpa [#allocation8], 0
    %26 = vsyncpa [#allocation11], 0
    %27 = vsyncpa [#allocation14], 0
    %28 = vsyncpa [#allocation6], 0
    %s29 = scalar_lea.sflag [#allocation6], 1
    %30 = vsyncpa %s29, 0
    %31 = vsyncpa [#allocation17], 0
    %s32 = scalar_lea.sflag [#allocation17], 1
    %33 = vsyncpa %s32, 0
    loop: start=0, step=1, limit=6
    $region2: #{tpu_custom_call.1} parent=1 // loop_pre_header
      _
    $region3: #{tpu_custom_call.1} parent=1 // loop_header
      %s35 = sphi 0, %s39
      %p36 = scmp.ge.s32.totalorder %s35, 6
      %s42 = sphi 0, %s54
      %s43 = sphi 0, %s50
      %s44 = sphi 0, %s42
      %s45 = sphi 0, %s43
      %s46 = sphi 0, %s44
      %s47 = sphi 0, %s45
      %s57 = sphi 0, %s59
      %s60 = sphi 0, %s57
      %s61 = sphi 0, %s60
      %s77 = sphi 0, %s61
      %s81 = sphi 0, %s81
      %s83 = sphi 0, %s81
      %s84 = sphi 0, %s83
      %s98 = sphi 0, %s84
      %s102 = sphi 0, %s102
      %s104 = sphi 0, %s102
      %s105 = sphi 0, %s104
      %s119 = sphi 0, %s105
      %s123 = sphi 0, %s123
      %s125 = sphi 0, %s123
      %s126 = sphi 0, %s125
      %s140 = sphi 0, %s126
      %s144 = sphi 0, %s144
      %s146 = sphi 0, %s144
      %s147 = sphi 0, %s146
      %s161 = sphi 0, %s147
      %s165 = sphi 0, %s165
      %s167 = sphi 0, %s165
      %s168 = sphi 0, %s167
      %s182 = sphi 0, %s168
      %s186 = sphi 0, %s186
      %s188 = sphi 0, %s186
      %s189 = sphi 0, %s188
      %s203 = sphi 0, %s189
      %s207 = sphi 0, %s207
      %s209 = sphi 0, %s207
      %s210 = sphi 0, %s209
      %s224 = sphi 0, %s210
      %s228 = sphi 0, %s228
      %s230 = sphi 0, %s228
      %s231 = sphi 0, %s230
      %s245 = sphi 0, %s231
      %s249 = sphi 0, %s249
      %s251 = sphi 0, %s249
      %s252 = sphi 0, %s251
      %s266 = sphi 0, %s252
      %s270 = sphi 0, %s270
      %s272 = sphi 0, %s270
      %s273 = sphi 0, %s272
      %s287 = sphi 0, %s273
      %s291 = sphi 0, %s291
      %s293 = sphi 0, %s291
      %s294 = sphi 0, %s293
      %s308 = sphi 0, %s294
      %s312 = sphi 0, %s312
      %s314 = sphi 0, %s312
      %s315 = sphi 0, %s314
      %s329 = sphi 0, %s315
      %s333 = sphi 0, %s333
      %s335 = sphi 0, %s333
      %s336 = sphi 0, %s335
      %s350 = sphi 0, %s336
      %s354 = sphi 0, %s354
      %s356 = sphi 0, %s354
      %s357 = sphi 0, %s356
      %s371 = sphi 0, %s357
      %s379 = sphi 0, %s381
      %s382 = sphi 0, %s379
      %s383 = sphi 0, %s382
      %s399 = sphi 0, %s383
      %s407 = sphi 0, %s409
      %s410 = sphi 0, %s407
      %s411 = sphi 0, %s410
      %s427 = sphi 0, %s411
    $region4: #{tpu_custom_call.1} parent=1 // loop_header_branch
      %38 = sbr.rel (%p36) target = $region8
    $region5: #{tpu_custom_call.1} parent=1 // loop_body
      %s40 = ssub.s32 %s35, 1
      %s41 = ssub.s32 %s35, 2
      %s48 = sadd.s32 1, %s43
      %p49 = scmp.ge.s32.totalorder %s48, 2
      %s50 = scalar_select %p49, 0, %s48
      %s51 = sadd.s32 1, %s42
      %s52 = scalar_select %p49, %s51, %s42
      %p53 = scmp.ge.s32.totalorder %s52, 2
      %s54 = scalar_select %p53, 0, %s52
      %s55 = ssub.s32 %s42, %s54
      %p56 = scmp.eq.s32.totalorder %s55, 0
      %s58 = sadd.s32 %s57, 1
      %s59 = scalar_select %p56, %s57, %s58
      %p62 = pneg %p56
      %p63 = scmp.eq.s32.totalorder %s35, 3
      %p64 = por %p62, %p63
      %p65 = scmp.ne.s32.totalorder %s57, %s60
      %p66 = scmp.eq.s32.totalorder %s35, 0
      %p67 = por %p65, %p66
      %p68 = scmp.ne.s32.totalorder %s57, %s60
      %p69 = scmp.eq.s32.totalorder %s40, 3
      %p70 = por %p68, %p69
      %p71 = scmp.ne.s32.totalorder %s60, %s61
      %p72 = scmp.eq.s32.totalorder %s40, 0
      %p73 = por %p71, %p72
      %p74 = scmp.ne.s32.totalorder %s60, %s61
      %p75 = scmp.eq.s32.totalorder %s41, 3
      %p76 = por %p74, %p75
      %p78 = scmp.ne.s32.totalorder %s61, %s77
      %p79 = scmp.eq.s32.totalorder %s41, 0
      %p80 = por %p78, %p79
      %s82 = sadd.s32 %s81, 1
      %p85 = scmp.eq.s32.totalorder %s35, 3
      %p86 = scmp.ne.s32.totalorder %s81, %s83
      %p87 = scmp.eq.s32.totalorder %s35, 0
      %p88 = por %p86, %p87
      %p89 = scmp.ne.s32.totalorder %s81, %s83
      %p90 = scmp.eq.s32.totalorder %s40, 3
      %p91 = por %p89, %p90
      %p92 = scmp.ne.s32.totalorder %s83, %s84
      %p93 = scmp.eq.s32.totalorder %s40, 0
      %p94 = por %p92, %p93
      %p95 = scmp.ne.s32.totalorder %s83, %s84
      %p96 = scmp.eq.s32.totalorder %s41, 3
      %p97 = por %p95, %p96
      %p99 = scmp.ne.s32.totalorder %s84, %s98
      %p100 = scmp.eq.s32.totalorder %s41, 0
      %p101 = por %p99, %p100
      %s103 = sadd.s32 %s102, 1
      %p106 = scmp.eq.s32.totalorder %s35, 3
      %p107 = scmp.ne.s32.totalorder %s102, %s104
      %p108 = scmp.eq.s32.totalorder %s35, 0
      %p109 = por %p107, %p108
      %p110 = scmp.ne.s32.totalorder %s102, %s104
      %p111 = scmp.eq.s32.totalorder %s40, 3
      %p112 = por %p110, %p111
      %p113 = scmp.ne.s32.totalorder %s104, %s105
      %p114 = scmp.eq.s32.totalorder %s40, 0
      %p115 = por %p113, %p114
      %p116 = scmp.ne.s32.totalorder %s104, %s105
      %p117 = scmp.eq.s32.totalorder %s41, 3
      %p118 = por %p116, %p117
      %p120 = scmp.ne.s32.totalorder %s105, %s119
      %p121 = scmp.eq.s32.totalorder %s41, 0
      %p122 = por %p120, %p121
      %s124 = sadd.s32 %s123, 1
      %p127 = scmp.eq.s32.totalorder %s35, 3
      %p128 = scmp.ne.s32.totalorder %s123, %s125
      %p129 = scmp.eq.s32.totalorder %s35, 0
      %p130 = por %p128, %p129
      %p131 = scmp.ne.s32.totalorder %s123, %s125
      %p132 = scmp.eq.s32.totalorder %s40, 3
      %p133 = por %p131, %p132
      %p134 = scmp.ne.s32.totalorder %s125, %s126
      %p135 = scmp.eq.s32.totalorder %s40, 0
      %p136 = por %p134, %p135
      %p137 = scmp.ne.s32.totalorder %s125, %s126
      %p138 = scmp.eq.s32.totalorder %s41, 3
      %p139 = por %p137, %p138
      %p141 = scmp.ne.s32.totalorder %s126, %s140
      %p142 = scmp.eq.s32.totalorder %s41, 0
      %p143 = por %p141, %p142
      %s145 = sadd.s32 %s144, 1
      %p148 = scmp.eq.s32.totalorder %s35, 3
      %p149 = scmp.ne.s32.totalorder %s144, %s146
      %p150 = scmp.eq.s32.totalorder %s35, 0
      %p151 = por %p149, %p150
      %p152 = scmp.ne.s32.totalorder %s144, %s146
      %p153 = scmp.eq.s32.totalorder %s40, 3
      %p154 = por %p152, %p153
      %p155 = scmp.ne.s32.totalorder %s146, %s147
      %p156 = scmp.eq.s32.totalorder %s40, 0
      %p157 = por %p155, %p156
      %p158 = scmp.ne.s32.totalorder %s146, %s147
      %p159 = scmp.eq.s32.totalorder %s41, 3
      %p160 = por %p158, %p159
      %p162 = scmp.ne.s32.totalorder %s147, %s161
      %p163 = scmp.eq.s32.totalorder %s41, 0
      %p164 = por %p162, %p163
      %s166 = sadd.s32 %s165, 1
      %p169 = scmp.eq.s32.totalorder %s35, 3
      %p170 = scmp.ne.s32.totalorder %s165, %s167
      %p171 = scmp.eq.s32.totalorder %s35, 0
      %p172 = por %p170, %p171
      %p173 = scmp.ne.s32.totalorder %s165, %s167
      %p174 = scmp.eq.s32.totalorder %s40, 3
      %p175 = por %p173, %p174
      %p176 = scmp.ne.s32.totalorder %s167, %s168
      %p177 = scmp.eq.s32.totalorder %s40, 0
      %p178 = por %p176, %p177
      %p179 = scmp.ne.s32.totalorder %s167, %s168
      %p180 = scmp.eq.s32.totalorder %s41, 3
      %p181 = por %p179, %p180
      %p183 = scmp.ne.s32.totalorder %s168, %s182
      %p184 = scmp.eq.s32.totalorder %s41, 0
      %p185 = por %p183, %p184
      %s187 = sadd.s32 %s186, 1
      %p190 = scmp.eq.s32.totalorder %s35, 3
      %p191 = scmp.ne.s32.totalorder %s186, %s188
      %p192 = scmp.eq.s32.totalorder %s35, 0
      %p193 = por %p191, %p192
      %p194 = scmp.ne.s32.totalorder %s186, %s188
      %p195 = scmp.eq.s32.totalorder %s40, 3
      %p196 = por %p194, %p195
      %p197 = scmp.ne.s32.totalorder %s188, %s189
      %p198 = scmp.eq.s32.totalorder %s40, 0
      %p199 = por %p197, %p198
      %p200 = scmp.ne.s32.totalorder %s188, %s189
      %p201 = scmp.eq.s32.totalorder %s41, 3
      %p202 = por %p200, %p201
      %p204 = scmp.ne.s32.totalorder %s189, %s203
      %p205 = scmp.eq.s32.totalorder %s41, 0
      %p206 = por %p204, %p205
      %s208 = sadd.s32 %s207, 1
      %p211 = scmp.eq.s32.totalorder %s35, 3
      %p212 = scmp.ne.s32.totalorder %s207, %s209
      %p213 = scmp.eq.s32.totalorder %s35, 0
      %p214 = por %p212, %p213
      %p215 = scmp.ne.s32.totalorder %s207, %s209
      %p216 = scmp.eq.s32.totalorder %s40, 3
      %p217 = por %p215, %p216
      %p218 = scmp.ne.s32.totalorder %s209, %s210
      %p219 = scmp.eq.s32.totalorder %s40, 0
      %p220 = por %p218, %p219
      %p221 = scmp.ne.s32.totalorder %s209, %s210
      %p222 = scmp.eq.s32.totalorder %s41, 3
      %p223 = por %p221, %p222
      %p225 = scmp.ne.s32.totalorder %s210, %s224
      %p226 = scmp.eq.s32.totalorder %s41, 0
      %p227 = por %p225, %p226
      %s229 = sadd.s32 %s228, 1
      %p232 = scmp.eq.s32.totalorder %s35, 3
      %p233 = scmp.ne.s32.totalorder %s228, %s230
      %p234 = scmp.eq.s32.totalorder %s35, 0
      %p235 = por %p233, %p234
      %p236 = scmp.ne.s32.totalorder %s228, %s230
      %p237 = scmp.eq.s32.totalorder %s40, 3
      %p238 = por %p236, %p237
      %p239 = scmp.ne.s32.totalorder %s230, %s231
      %p240 = scmp.eq.s32.totalorder %s40, 0
      %p241 = por %p239, %p240
      %p242 = scmp.ne.s32.totalorder %s230, %s231
      %p243 = scmp.eq.s32.totalorder %s41, 3
      %p244 = por %p242, %p243
      %p246 = scmp.ne.s32.totalorder %s231, %s245
      %p247 = scmp.eq.s32.totalorder %s41, 0
      %p248 = por %p246, %p247
      %s250 = sadd.s32 %s249, 1
      %p253 = scmp.eq.s32.totalorder %s35, 3
      %p254 = scmp.ne.s32.totalorder %s249, %s251
      %p255 = scmp.eq.s32.totalorder %s35, 0
      %p256 = por %p254, %p255
      %p257 = scmp.ne.s32.totalorder %s249, %s251
      %p258 = scmp.eq.s32.totalorder %s40, 3
      %p259 = por %p257, %p258
      %p260 = scmp.ne.s32.totalorder %s251, %s252
      %p261 = scmp.eq.s32.totalorder %s40, 0
      %p262 = por %p260, %p261
      %p263 = scmp.ne.s32.totalorder %s251, %s252
      %p264 = scmp.eq.s32.totalorder %s41, 3
      %p265 = por %p263, %p264
      %p267 = scmp.ne.s32.totalorder %s252, %s266
      %p268 = scmp.eq.s32.totalorder %s41, 0
      %p269 = por %p267, %p268
      %s271 = sadd.s32 %s270, 1
      %p274 = scmp.eq.s32.totalorder %s35, 3
      %p275 = scmp.ne.s32.totalorder %s270, %s272
      %p276 = scmp.eq.s32.totalorder %s35, 0
      %p277 = por %p275, %p276
      %p278 = scmp.ne.s32.totalorder %s270, %s272
      %p279 = scmp.eq.s32.totalorder %s40, 3
      %p280 = por %p278, %p279
      %p281 = scmp.ne.s32.totalorder %s272, %s273
      %p282 = scmp.eq.s32.totalorder %s40, 0
      %p283 = por %p281, %p282
      %p284 = scmp.ne.s32.totalorder %s272, %s273
      %p285 = scmp.eq.s32.totalorder %s41, 3
      %p286 = por %p284, %p285
      %p288 = scmp.ne.s32.totalorder %s273, %s287
      %p289 = scmp.eq.s32.totalorder %s41, 0
      %p290 = por %p288, %p289
      %s292 = sadd.s32 %s291, 1
      %p295 = scmp.eq.s32.totalorder %s35, 3
      %p296 = scmp.ne.s32.totalorder %s291, %s293
      %p297 = scmp.eq.s32.totalorder %s35, 0
      %p298 = por %p296, %p297
      %p299 = scmp.ne.s32.totalorder %s291, %s293
      %p300 = scmp.eq.s32.totalorder %s40, 3
      %p301 = por %p299, %p300
      %p302 = scmp.ne.s32.totalorder %s293, %s294
      %p303 = scmp.eq.s32.totalorder %s40, 0
      %p304 = por %p302, %p303
      %p305 = scmp.ne.s32.totalorder %s293, %s294
      %p306 = scmp.eq.s32.totalorder %s41, 3
      %p307 = por %p305, %p306
      %p309 = scmp.ne.s32.totalorder %s294, %s308
      %p310 = scmp.eq.s32.totalorder %s41, 0
      %p311 = por %p309, %p310
      %s313 = sadd.s32 %s312, 1
      %p316 = scmp.eq.s32.totalorder %s35, 3
      %p317 = scmp.ne.s32.totalorder %s312, %s314
      %p318 = scmp.eq.s32.totalorder %s35, 0
      %p319 = por %p317, %p318
      %p320 = scmp.ne.s32.totalorder %s312, %s314
      %p321 = scmp.eq.s32.totalorder %s40, 3
      %p322 = por %p320, %p321
      %p323 = scmp.ne.s32.totalorder %s314, %s315
      %p324 = scmp.eq.s32.totalorder %s40, 0
      %p325 = por %p323, %p324
      %p326 = scmp.ne.s32.totalorder %s314, %s315
      %p327 = scmp.eq.s32.totalorder %s41, 3
      %p328 = por %p326, %p327
      %p330 = scmp.ne.s32.totalorder %s315, %s329
      %p331 = scmp.eq.s32.totalorder %s41, 0
      %p332 = por %p330, %p331
      %s334 = sadd.s32 %s333, 1
      %p337 = scmp.eq.s32.totalorder %s35, 3
      %p338 = scmp.ne.s32.totalorder %s333, %s335
      %p339 = scmp.eq.s32.totalorder %s35, 0
      %p340 = por %p338, %p339
      %p341 = scmp.ne.s32.totalorder %s333, %s335
      %p342 = scmp.eq.s32.totalorder %s40, 3
      %p343 = por %p341, %p342
      %p344 = scmp.ne.s32.totalorder %s335, %s336
      %p345 = scmp.eq.s32.totalorder %s40, 0
      %p346 = por %p344, %p345
      %p347 = scmp.ne.s32.totalorder %s335, %s336
      %p348 = scmp.eq.s32.totalorder %s41, 3
      %p349 = por %p347, %p348
      %p351 = scmp.ne.s32.totalorder %s336, %s350
      %p352 = scmp.eq.s32.totalorder %s41, 0
      %p353 = por %p351, %p352
      %s355 = sadd.s32 %s354, 1
      %p358 = scmp.eq.s32.totalorder %s35, 3
      %p359 = scmp.ne.s32.totalorder %s354, %s356
      %p360 = scmp.eq.s32.totalorder %s35, 0
      %p361 = por %p359, %p360
      %p362 = scmp.ne.s32.totalorder %s354, %s356
      %p363 = scmp.eq.s32.totalorder %s40, 3
      %p364 = por %p362, %p363
      %p365 = scmp.ne.s32.totalorder %s356, %s357
      %p366 = scmp.eq.s32.totalorder %s40, 0
      %p367 = por %p365, %p366
      %p368 = scmp.ne.s32.totalorder %s356, %s357
      %p369 = scmp.eq.s32.totalorder %s41, 3
      %p370 = por %p368, %p369
      %p372 = scmp.ne.s32.totalorder %s357, %s371
      %p373 = scmp.eq.s32.totalorder %s41, 0
      %p374 = por %p372, %p373
      %s375 = ssub.s32 %s42, %s54
      %s376 = ssub.s32 %s43, %s50
      %s377 = sor.u32 %s375, %s376
      %p378 = scmp.eq.s32.totalorder %s377, 0
      %s380 = sadd.s32 %s379, 1
      %s381 = scalar_select %p378, %s379, %s380
      %p384 = pneg %p378
      %p385 = scmp.eq.s32.totalorder %s35, 3
      %p386 = por %p384, %p385
      %p387 = scmp.ne.s32.totalorder %s379, %s382
      %p388 = scmp.eq.s32.totalorder %s35, 0
      %p389 = por %p387, %p388
      %p390 = scmp.ne.s32.totalorder %s379, %s382
      %p391 = scmp.eq.s32.totalorder %s40, 3
      %p392 = por %p390, %p391
      %p393 = scmp.ne.s32.totalorder %s382, %s383
      %p394 = scmp.eq.s32.totalorder %s40, 0
      %p395 = por %p393, %p394
      %p396 = scmp.ne.s32.totalorder %s382, %s383
      %p397 = scmp.eq.s32.totalorder %s41, 3
      %p398 = por %p396, %p397
      %p400 = scmp.ne.s32.totalorder %s383, %s399
      %p401 = scmp.eq.s32.totalorder %s41, 0
      %p402 = por %p400, %p401
      %s403 = ssub.s32 %s42, %s54
      %s404 = ssub.s32 %s43, %s50
      %s405 = sor.u32 %s403, %s404
      %p406 = scmp.eq.s32.totalorder %s405, 0
      %s408 = sadd.s32 %s407, 1
      %s409 = scalar_select %p406, %s407, %s408
      %p412 = pneg %p406
      %p413 = scmp.eq.s32.totalorder %s35, 3
      %p414 = por %p412, %p413
      %p415 = scmp.ne.s32.totalorder %s407, %s410
      %p416 = scmp.eq.s32.totalorder %s35, 0
      %p417 = por %p415, %p416
      %p418 = scmp.ne.s32.totalorder %s407, %s410
      %p419 = scmp.eq.s32.totalorder %s40, 3
      %p420 = por %p418, %p419
      %p421 = scmp.ne.s32.totalorder %s410, %s411
      %p422 = scmp.eq.s32.totalorder %s40, 0
      %p423 = por %p421, %p422
      %p424 = scmp.ne.s32.totalorder %s410, %s411
      %p425 = scmp.eq.s32.totalorder %s41, 3
      %p426 = por %p424, %p425
      %p428 = scmp.ne.s32.totalorder %s411, %s427
      %p429 = scmp.eq.s32.totalorder %s41, 0
      %p430 = por %p428, %p429
      %p431 = scmp.le.s32.totalorder 1, %s35
      %p432 = scmp.lt.s32.totalorder %s35, 5
      %p433 = pnand %p431, %p432
      %p434 = pneg %p433
      // Predicated region
      $region9: #{tpu_custom_call.1} parent=5 // pred_check
        _
      $region10: #{tpu_custom_call.1} parent=5 // pred_check_branch
        %436 = sbr.rel (%p433) target = $region12
      $region11: #{tpu_custom_call.1} parent=5 // pred_region
        %s437 = ssub.s32 %s35, 1
        // Predicated region
        $region13: #{tpu_custom_call.1} parent=11 // pred_check
          %p438 = pneg %p94
        $region14: #{tpu_custom_call.1} parent=11 // pred_check_branch
          %440 = sbr.rel (%p438) target = $region16
        $region15: #{tpu_custom_call.1} parent=11 // pred_region
          %s442 = ssub.s32 1024, 1024
          %443 = vsyncadd [#allocation8], %s442
          %s444 = sshll.u32 [#allocation7], 4
          %s445 = int_to_ptr.vmem [resolvable:$true] %s444
          %450 = dma.hbm_to_vmem [thread:$0]  %s1, 1024, %s445, [#allocation8], 64, 64, 4
        $region16: #{tpu_custom_call.1} parent=11 // pred_fallthru
          _
        // Predicated region
        $region17: #{tpu_custom_call.1} parent=11 // pred_check
          %p451 = pneg %p115
        $region18: #{tpu_custom_call.1} parent=11 // pred_check_branch
          %453 = sbr.rel (%p451) target = $region20
        $region19: #{tpu_custom_call.1} parent=11 // pred_region
          _
        $region20: #{tpu_custom_call.1} parent=11 // pred_fallthru
          _
        // Predicated region
        $region21: #{tpu_custom_call.1} parent=11 // pred_check
          %p454 = pneg %p136
        $region22: #{tpu_custom_call.1} parent=11 // pred_check_branch
          %456 = sbr.rel (%p454) target = $region24
        $region23: #{tpu_custom_call.1} parent=11 // pred_region
          %s458 = ssub.s32 2048, 2048
          %459 = vsyncadd [#allocation8], %s458
          %s460 = sshll.u32 [#allocation9], 4
          %s461 = int_to_ptr.vmem [resolvable:$true] %s460
          %466 = dma.hbm_to_vmem [thread:$0]  %s3, 2048, %s461, [#allocation8], 128, 128, 8
        $region24: #{tpu_custom_call.1} parent=11 // pred_fallthru
          _
        // Predicated region
        $region25: #{tpu_custom_call.1} parent=11 // pred_check
          %p467 = pneg %p157
        $region26: #{tpu_custom_call.1} parent=11 // pred_check_branch
          %469 = sbr.rel (%p467) target = $region28
        $region27: #{tpu_custom_call.1} parent=11 // pred_region
          _
        $region28: #{tpu_custom_call.1} parent=11 // pred_fallthru
          _
        // Predicated region
        $region29: #{tpu_custom_call.1} parent=11 // pred_check
          %p470 = pneg %p178
        $region30: #{tpu_custom_call.1} parent=11 // pred_check_branch
          %472 = sbr.rel (%p470) target = $region32
        $region31: #{tpu_custom_call.1} parent=11 // pred_region
          %s474 = ssub.s32 1024, 1024
          %475 = vsyncadd [#allocation11], %s474
          %s476 = sshll.u32 [#allocation10], 4
          %s477 = int_to_ptr.vmem [resolvable:$true] %s476
          %482 = dma.hbm_to_vmem [thread:$0]  %s5, 1024, %s477, [#allocation11], 64, 64, 4
        $region32: #{tpu_custom_call.1} parent=11 // pred_fallthru
          _
        // Predicated region
        $region33: #{tpu_custom_call.1} parent=11 // pred_check
          %p483 = pneg %p199
        $region34: #{tpu_custom_call.1} parent=11 // pred_check_branch
          %485 = sbr.rel (%p483) target = $region36
        $region35: #{tpu_custom_call.1} parent=11 // pred_region
          _
        $region36: #{tpu_custom_call.1} parent=11 // pred_fallthru
          _
        // Predicated region
        $region37: #{tpu_custom_call.1} parent=11 // pred_check
          %p486 = pneg %p220
        $region38: #{tpu_custom_call.1} parent=11 // pred_check_branch
          %488 = sbr.rel (%p486) target = $region40
        $region39: #{tpu_custom_call.1} parent=11 // pred_region
          %s490 = ssub.s32 4096, 4096
          %491 = vsyncadd [#allocation11], %s490
          %s492 = sshll.u32 [#allocation12], 4
          %s493 = int_to_ptr.vmem [resolvable:$true] %s492
          %498 = dma.hbm_to_vmem [thread:$0]  %s7, 4096, %s493, [#allocation11], 256, 256, 16
        $region40: #{tpu_custom_call.1} parent=11 // pred_fallthru
          _
        // Predicated region
        $region41: #{tpu_custom_call.1} parent=11 // pred_check
          %p499 = pneg %p241
        $region42: #{tpu_custom_call.1} parent=11 // pred_check_branch
          %501 = sbr.rel (%p499) target = $region44
        $region43: #{tpu_custom_call.1} parent=11 // pred_region
          _
        $region44: #{tpu_custom_call.1} parent=11 // pred_fallthru
          _
        // Predicated region
        $region45: #{tpu_custom_call.1} parent=11 // pred_check
          %p502 = pneg %p262
        $region46: #{tpu_custom_call.1} parent=11 // pred_check_branch
          %504 = sbr.rel (%p502) target = $region48
        $region47: #{tpu_custom_call.1} parent=11 // pred_region
          %s506 = ssub.s32 4096, 4096
          %507 = vsyncadd [#allocation14], %s506
          %s508 = sshll.u32 [#allocation13], 4
          %s509 = int_to_ptr.vmem [resolvable:$true] %s508
          %514 = dma.hbm_to_vmem [thread:$0]  %s9, 4096, %s509, [#allocation14], 64, 64, 4
        $region48: #{tpu_custom_call.1} parent=11 // pred_fallthru
          _
        // Predicated region
        $region49: #{tpu_custom_call.1} parent=11 // pred_check
          %p515 = pneg %p283
        $region50: #{tpu_custom_call.1} parent=11 // pred_check_branch
          %517 = sbr.rel (%p515) target = $region52
        $region51: #{tpu_custom_call.1} parent=11 // pred_region
          _
        $region52: #{tpu_custom_call.1} parent=11 // pred_fallthru
          _
        // Predicated region
        $region53: #{tpu_custom_call.1} parent=11 // pred_check
          %p518 = pneg %p304
        $region54: #{tpu_custom_call.1} parent=11 // pred_check_branch
          %520 = sbr.rel (%p518) target = $region56
        $region55: #{tpu_custom_call.1} parent=11 // pred_region
          _
        $region56: #{tpu_custom_call.1} parent=11 // pred_fallthru
          _
        // Predicated region
        $region57: #{tpu_custom_call.1} parent=11 // pred_check
          %p521 = pneg %p325
        $region58: #{tpu_custom_call.1} parent=11 // pred_check_branch
          %523 = sbr.rel (%p521) target = $region60
        $region59: #{tpu_custom_call.1} parent=11 // pred_region
          _
        $region60: #{tpu_custom_call.1} parent=11 // pred_fallthru
          _
        // Predicated region
        $region61: #{tpu_custom_call.1} parent=11 // pred_check
          %p524 = pneg %p346
        $region62: #{tpu_custom_call.1} parent=11 // pred_check_branch
          %526 = sbr.rel (%p524) target = $region64
        $region63: #{tpu_custom_call.1} parent=11 // pred_region
          _
        $region64: #{tpu_custom_call.1} parent=11 // pred_fallthru
          _
        // Predicated region
        $region65: #{tpu_custom_call.1} parent=11 // pred_check
          %p527 = pneg %p367
        $region66: #{tpu_custom_call.1} parent=11 // pred_check_branch
          %529 = sbr.rel (%p527) target = $region68
        $region67: #{tpu_custom_call.1} parent=11 // pred_region
          _
        $region68: #{tpu_custom_call.1} parent=11 // pred_fallthru
          _
      $region12: #{tpu_custom_call.1} parent=5 // pred_fallthru
        _
      %p530 = scmp.lt.s32.totalorder %s35, 4
      // Predicated region
      $region69: #{tpu_custom_call.1} parent=5 // pred_check
        %p531 = pneg %p530
      $region70: #{tpu_custom_call.1} parent=5 // pred_check_branch
        %533 = sbr.rel (%p531) target = $region72
      $region71: #{tpu_custom_call.1} parent=5 // pred_region
        // Predicated region
        $region73: #{tpu_custom_call.1} parent=71 // pred_check
          %p534 = pneg %p67
        $region74: #{tpu_custom_call.1} parent=71 // pred_check_branch
          %536 = sbr.rel (%p534) target = $region76
        $region75: #{tpu_custom_call.1} parent=71 // pred_region
          %s537 = sand.u32 %s57, 1
          %s538 = scalar_lea.sflag [#allocation5], %s537
          %s539 = sand.u32 %s57, 1
          %s540 = smul.addr %s539, 256
          %s541 = scalar_lea.vmem [#allocation4], %s540
          %s543 = ssub.s32 4096, 4096
          %544 = vsyncadd %s538, %s543
          %s545 = smul.addr %s42, 32
          %s546 = smul.addr %s545, 128
          %s547 = scalar_lea.hbm %s0, %s546
          %s548 = sshll.u32 %s541, 4
          %s549 = int_to_ptr.vmem [resolvable:$true] %s548
          %554 = dma.hbm_to_vmem [thread:$0]  %s547, 4096, %s549, %s538, 128, 128, 8
        $region76: #{tpu_custom_call.1} parent=71 // pred_fallthru
          _
      $region72: #{tpu_custom_call.1} parent=5 // pred_fallthru
        _
      %p555 = scmp.le.s32.totalorder 1, %s35
      %p556 = scmp.lt.s32.totalorder %s35, 5
      %p557 = pnand %p555, %p556
      %p558 = pneg %p557
      // Predicated region
      $region77: #{tpu_custom_call.1} parent=5 // pred_check
        _
      $region78: #{tpu_custom_call.1} parent=5 // pred_check_branch
        %560 = sbr.rel (%p557) target = $region80
      $region79: #{tpu_custom_call.1} parent=5 // pred_region
        %s561 = ssub.s32 %s35, 1
        %s562 = sand.u32 %s60, 1
        %s563 = scalar_lea.sflag [#allocation5], %s562
        %s564 = sand.u32 %s60, 1
        %s565 = smul.addr %s564, 256
        %s566 = scalar_lea.vmem [#allocation4], %s565
        // Predicated region
        $region81: #{tpu_custom_call.1} parent=79 // pred_check
          %p567 = pneg %p73
        $region82: #{tpu_custom_call.1} parent=79 // pred_check_branch
          %569 = sbr.rel (%p567) target = $region84
        $region83: #{tpu_custom_call.1} parent=79 // pred_region
          %570 = dma.done %s563, 4096
        $region84: #{tpu_custom_call.1} parent=79 // pred_fallthru
          _
        // Predicated region
        $region85: #{tpu_custom_call.1} parent=79 // pred_check
          %p571 = pneg %p94
        $region86: #{tpu_custom_call.1} parent=79 // pred_check_branch
          %573 = sbr.rel (%p571) target = $region88
        $region87: #{tpu_custom_call.1} parent=79 // pred_region
          %574 = dma.done [#allocation8], 1024
        $region88: #{tpu_custom_call.1} parent=79 // pred_fallthru
          _
        // Predicated region
        $region89: #{tpu_custom_call.1} parent=79 // pred_check
          %p575 = pneg %p136
        $region90: #{tpu_custom_call.1} parent=79 // pred_check_branch
          %577 = sbr.rel (%p575) target = $region92
        $region91: #{tpu_custom_call.1} parent=79 // pred_region
          %578 = dma.done [#allocation8], 2048
        $region92: #{tpu_custom_call.1} parent=79 // pred_fallthru
          _
        // Predicated region
        $region93: #{tpu_custom_call.1} parent=79 // pred_check
          %p579 = pneg %p178
        $region94: #{tpu_custom_call.1} parent=79 // pred_check_branch
          %581 = sbr.rel (%p579) target = $region96
        $region95: #{tpu_custom_call.1} parent=79 // pred_region
          %582 = dma.done [#allocation11], 1024
        $region96: #{tpu_custom_call.1} parent=79 // pred_fallthru
          _
        // Predicated region
        $region97: #{tpu_custom_call.1} parent=79 // pred_check
          %p583 = pneg %p220
        $region98: #{tpu_custom_call.1} parent=79 // pred_check_branch
          %585 = sbr.rel (%p583) target = $region100
        $region99: #{tpu_custom_call.1} parent=79 // pred_region
          %586 = dma.done [#allocation11], 4096
        $region100: #{tpu_custom_call.1} parent=79 // pred_fallthru
          _
        // Predicated region
        $region101: #{tpu_custom_call.1} parent=79 // pred_check
          %p587 = pneg %p262
        $region102: #{tpu_custom_call.1} parent=79 // pred_check_branch
          %589 = sbr.rel (%p587) target = $region104
        $region103: #{tpu_custom_call.1} parent=79 // pred_region
          %590 = dma.done [#allocation14], 4096
        $region104: #{tpu_custom_call.1} parent=79 // pred_fallthru
          _
        %s591 = sand.u32 %s60, 1
        %s592 = scalar_lea.sflag [#allocation5], %s591
        %s593 = sand.u32 %s60, 1
        %s594 = smul.addr %s593, 256
        %s595 = scalar_lea.vmem [#allocation4], %s594
        %p596 = pneg %p73
        %p597 = pneg %p70
        %p598 = pneg %p94
        %p599 = pneg %p91
        %p600 = pneg %p115
        %p601 = pneg %p112
        %p602 = pneg %p136
        %p603 = pneg %p133
        %p604 = pneg %p157
        %p605 = pneg %p154
        %p606 = pneg %p178
        %p607 = pneg %p175
        %p608 = pneg %p199
        %p609 = pneg %p196
        %p610 = pneg %p220
        %p611 = pneg %p217
        %p612 = pneg %p241
        %p613 = pneg %p238
        %p614 = pneg %p262
        %p615 = pneg %p259
        %p616 = pneg %p283
        %p617 = pneg %p280
        %p618 = pneg %p304
        %p619 = pneg %p301
        %p620 = pneg %p325
        %p621 = pneg %p322
        %p622 = pneg %p346
        %p623 = pneg %p343
        %p624 = pneg %p367
        %p625 = pneg %p364
        %p626 = pneg %p395
        %p627 = pneg %p392
        %s628 = sand.u32 %s382, 1
        %s629 = scalar_lea.sflag [#allocation6], %s628
        %s630 = sand.u32 %s382, 1
        %s631 = smul.addr %s630, 128
        %s632 = scalar_lea.vmem [#allocation15], %s631
        %p633 = pneg %p423
        %p634 = pneg %p420
        %s635 = sand.u32 %s410, 1
        %s636 = scalar_lea.sflag [#allocation17], %s635
        %s637 = sand.u32 %s410, 1
        %s638 = smul.addr %s637, 512
        %s639 = scalar_lea.vmem [#allocation16], %s638
        %s640 = smul.u32 16, %s45
        %s641 = smul.u32 16, %s45
        %p643 = scmp.eq.s32.totalorder %s45, 0
        // Predicated region
        $region105: #{tpu_custom_call.1} parent=79 // pred_check
          %p644 = pneg %p643
        $region106: #{tpu_custom_call.1} parent=79 // pred_check_branch
          %646 = sbr.rel (%p644) target = $region108
        $region107: #{tpu_custom_call.1} parent=79 // pred_region
          %v647 = vld [vmem:[%s566] sm:$0xff]
          %v648 = vld [vmem:[%s566 + $0x8] sm:$0xff]
          %v649 = vld [vmem:[%s566 + $0x10] sm:$0xff]
          %v650 = vld [vmem:[%s566 + $0x18] sm:$0xff]
          %v651 = vld [vmem:[%s566 + $0x20] sm:$0xff]
          %v652 = vld [vmem:[%s566 + $0x28] sm:$0xff]
          %v653 = vld [vmem:[%s566 + $0x30] sm:$0xff]
          %v654 = vld [vmem:[%s566 + $0x38] sm:$0xff]
          %v655 = vld [vmem:[%s566 + $0x40] sm:$0xff]
          %v656 = vld [vmem:[%s566 + $0x48] sm:$0xff]
          %v657 = vld [vmem:[%s566 + $0x50] sm:$0xff]
          %v658 = vld [vmem:[%s566 + $0x58] sm:$0xff]
          %v659 = vld [vmem:[%s566 + $0x60] sm:$0xff]
          %v660 = vld [vmem:[%s566 + $0x68] sm:$0xff]
          %v661 = vld [vmem:[%s566 + $0x70] sm:$0xff]
          %v662 = vld [vmem:[%s566 + $0x78] sm:$0xff]
          %v663 = vld [vmem:[%s566 + $0x80] sm:$0xff]
          %v664 = vld [vmem:[%s566 + $0x88] sm:$0xff]
          %v665 = vld [vmem:[%s566 + $0x90] sm:$0xff]
          %v666 = vld [vmem:[%s566 + $0x98] sm:$0xff]
          %v667 = vld [vmem:[%s566 + $0xa0] sm:$0xff]
          %v668 = vld [vmem:[%s566 + $0xa8] sm:$0xff]
          %v669 = vld [vmem:[%s566 + $0xb0] sm:$0xff]
          %v670 = vld [vmem:[%s566 + $0xb8] sm:$0xff]
          %v671 = vld [vmem:[%s566 + $0xc0] sm:$0xff]
          %v672 = vld [vmem:[%s566 + $0xc8] sm:$0xff]
          %v673 = vld [vmem:[%s566 + $0xd0] sm:$0xff]
          %v674 = vld [vmem:[%s566 + $0xd8] sm:$0xff]
          %v675 = vld [vmem:[%s566 + $0xe0] sm:$0xff]
          %v676 = vld [vmem:[%s566 + $0xe8] sm:$0xff]
          %v677 = vld [vmem:[%s566 + $0xf0] sm:$0xff]
          %v678 = vld [vmem:[%s566 + $0xf8] sm:$0xff]
          %v679 = vpack.c.bf16 %v648, %v647
          %v680 = vpack.c.bf16 %v650, %v649
          %v681 = vpack.c.bf16 %v652, %v651
          %v682 = vpack.c.bf16 %v654, %v653
          %v683 = vpack.c.bf16 %v656, %v655
          %v684 = vpack.c.bf16 %v658, %v657
          %v685 = vpack.c.bf16 %v660, %v659
          %v686 = vpack.c.bf16 %v662, %v661
          %v687 = vpack.c.bf16 %v664, %v663
          %v688 = vpack.c.bf16 %v666, %v665
          %v689 = vpack.c.bf16 %v668, %v667
          %v690 = vpack.c.bf16 %v670, %v669
          %v691 = vpack.c.bf16 %v672, %v671
          %v692 = vpack.c.bf16 %v674, %v673
          %v693 = vpack.c.bf16 %v676, %v675
          %v694 = vpack.c.bf16 %v678, %v677
          %v695 = vld [vmem:[#allocation9] sm:$0xff]
          %v696 = vld [vmem:[#allocation9 + $0x8] sm:$0xff]
          %v697 = vld [vmem:[#allocation9 + $0x10] sm:$0xff]
          %v698 = vld [vmem:[#allocation9 + $0x18] sm:$0xff]
          %v699 = vld [vmem:[#allocation9 + $0x20] sm:$0xff]
          %v700 = vld [vmem:[#allocation9 + $0x28] sm:$0xff]
          %v701 = vld [vmem:[#allocation9 + $0x30] sm:$0xff]
          %v702 = vld [vmem:[#allocation9 + $0x38] sm:$0xff]
          %v703 = vld [vmem:[#allocation9 + $0x40] sm:$0xff]
          %v704 = vld [vmem:[#allocation9 + $0x48] sm:$0xff]
          %v705 = vld [vmem:[#allocation9 + $0x50] sm:$0xff]
          %v706 = vld [vmem:[#allocation9 + $0x58] sm:$0xff]
          %v707 = vld [vmem:[#allocation9 + $0x60] sm:$0xff]
          %v708 = vld [vmem:[#allocation9 + $0x68] sm:$0xff]
          %v709 = vld [vmem:[#allocation9 + $0x70] sm:$0xff]
          %v710 = vld [vmem:[#allocation9 + $0x78] sm:$0xff]
          %v711 = vld [vmem:[%s4] sm:$0x3]
          %v713 = vlaneseq
          %v714 = vshrl.u32 %v713, 7
          %v715 = vsub.s32 0, %v714
          %v716 = vrot.slane %v711, %v715
          %v717 = vlaneseq
          %v718 = vshrl.u32 %v717, 7
          %v719 = vsub.s32 1, %v718
          %v720 = vrot.slane %v711, %v719
          %v739 = vunpack.c.l.b16 %v695
          %v740 = vunpack.c.h.b16 %v695
          %v741 = vunpack.c.l.b16 %v696
          %v742 = vunpack.c.h.b16 %v696
          %v743 = vunpack.c.l.b16 %v697
          %v744 = vunpack.c.h.b16 %v697
          %v745 = vunpack.c.l.b16 %v698
          %v746 = vunpack.c.h.b16 %v698
          %v747 = vunpack.c.l.b16 %v699
          %v748 = vunpack.c.h.b16 %v699
          %v749 = vunpack.c.l.b16 %v700
          %v750 = vunpack.c.h.b16 %v700
          %v751 = vunpack.c.l.b16 %v701
          %v752 = vunpack.c.h.b16 %v701
          %v753 = vunpack.c.l.b16 %v702
          %v754 = vunpack.c.h.b16 %v702
          %v755 = vunpack.c.l.b16 %v703
          %v756 = vunpack.c.h.b16 %v703
          %v757 = vunpack.c.l.b16 %v704
          %v758 = vunpack.c.h.b16 %v704
          %v759 = vunpack.c.l.b16 %v705
          %v760 = vunpack.c.h.b16 %v705
          %v761 = vunpack.c.l.b16 %v706
          %v762 = vunpack.c.h.b16 %v706
          %v763 = vunpack.c.l.b16 %v707
          %v764 = vunpack.c.h.b16 %v707
          %v765 = vunpack.c.l.b16 %v708
          %v766 = vunpack.c.h.b16 %v708
          %v767 = vunpack.c.l.b16 %v709
          %v768 = vunpack.c.h.b16 %v709
          %v769 = vunpack.c.l.b16 %v710
          %v770 = vunpack.c.h.b16 %v710
          %v771 = vpack.c.b16 %v741, %v739
          %v772 = vpack.c.b16 %v742, %v740
          %v773 = vpack.c.b16 %v745, %v743
          %v774 = vpack.c.b16 %v746, %v744
          %v775 = vpack.c.b16 %v749, %v747
          %v776 = vpack.c.b16 %v750, %v748
          %v777 = vpack.c.b16 %v753, %v751
          %v778 = vpack.c.b16 %v754, %v752
          %v779 = vpack.c.b16 %v757, %v755
          %v780 = vpack.c.b16 %v758, %v756
          %v781 = vpack.c.b16 %v761, %v759
          %v782 = vpack.c.b16 %v762, %v760
          %v783 = vpack.c.b16 %v765, %v763
          %v784 = vpack.c.b16 %v766, %v764
          %v785 = vpack.c.b16 %v769, %v767
          %v786 = vpack.c.b16 %v770, %v768
          %803 = vmatprep.subr.bf16.mxu0 %v772
          %804 = vmatpush1.bf16.msra.mxu0 %v771
          %805 = vmatprep.subr.bf16.mxu0 %v774
          %806 = vmatpush1.bf16.msra.mxu0 %v773
          %807 = vmatprep.subr.bf16.mxu0 %v776
          %808 = vmatpush1.bf16.msra.mxu0 %v775
          %809 = vmatprep.subr.bf16.mxu0 %v778
          %810 = vmatpush1.bf16.msra.mxu0 %v777
          %811 = vmatprep.subr.bf16.mxu0 %v780
          %812 = vmatpush1.bf16.msra.mxu0 %v779
          %813 = vmatprep.subr.bf16.mxu0 %v782
          %814 = vmatpush1.bf16.msra.mxu0 %v781
          %815 = vmatprep.subr.bf16.mxu0 %v784
          %816 = vmatpush1.bf16.msra.mxu0 %v783
          %817 = vmatprep.subr.bf16.mxu0 %v786
          %818 = vmatpush1.bf16.msra.mxu0 %v785
          %819 = vmatprep.subr.bf16.mxu0 0
          %820 = vmatpush1.bf16.msra.mxu0 0
          %821 = vmatprep.subr.bf16.mxu0 0
          %822 = vmatpush1.bf16.msra.mxu0 0
          %823 = vmatprep.subr.bf16.mxu0 0
          %824 = vmatpush1.bf16.msra.mxu0 0
          %825 = vmatprep.subr.bf16.mxu0 0
          %826 = vmatpush1.bf16.msra.mxu0 0
          %827 = vmatprep.subr.bf16.mxu0 0
          %828 = vmatpush1.bf16.msra.mxu0 0
          %829 = vmatprep.subr.bf16.mxu0 0
          %830 = vmatpush1.bf16.msra.mxu0 0
          %831 = vmatprep.subr.bf16.mxu0 0
          %832 = vmatpush1.bf16.msra.mxu0 0
          %833 = vmatprep.subr.bf16.mxu0 0
          %834 = vmatpush1.bf16.msra.mxu0 0
          %835 = vmatprep.mubr.bf16.mxu0 0
          %836 = vmatmul.mubr.bf16.gmra.mrb[0].mxu0 %v679
          %v837 = vpop.f32.mrb[0].mxu0
          %v838 = vadd.f32 %v716, %v837
          %v839 = vpop.f32.mrb[0].mxu0
          %v840 = vadd.f32 %v720, %v839
          %v841 = vpop.f32.mrb[0].mxu0
          %v842 = vadd.f32 %v716, %v841
          %v843 = vpop.f32.mrb[0].mxu0
          %v844 = vadd.f32 %v720, %v843
          %845 = vmatprep.mubr.bf16.mxu0 0
          %846 = vmatmul.mubr.bf16.gmra.mrb[0].mxu0 %v680
          %v847 = vpop.f32.mrb[0].mxu0
          %v848 = vadd.f32 %v716, %v847
          %v849 = vpop.f32.mrb[0].mxu0
          %v850 = vadd.f32 %v720, %v849
          %v851 = vpop.f32.mrb[0].mxu0
          %v852 = vadd.f32 %v716, %v851
          %v853 = vpop.f32.mrb[0].mxu0
          %v854 = vadd.f32 %v720, %v853
          %855 = vmatprep.mubr.bf16.mxu0 0
          %856 = vmatmul.mubr.bf16.gmra.mrb[0].mxu0 %v681
          %v857 = vpop.f32.mrb[0].mxu0
          %v858 = vadd.f32 %v716, %v857
          %v859 = vpop.f32.mrb[0].mxu0
          %v860 = vadd.f32 %v720, %v859
          %v861 = vpop.f32.mrb[0].mxu0
          %v862 = vadd.f32 %v716, %v861
          %v863 = vpop.f32.mrb[0].mxu0
          %v864 = vadd.f32 %v720, %v863
          %865 = vmatprep.mubr.bf16.mxu0 0
          %866 = vmatmul.mubr.bf16.gmra.mrb[0].mxu0 %v682
          %v867 = vpop.f32.mrb[0].mxu0
          %v868 = vadd.f32 %v716, %v867
          %v869 = vpop.f32.mrb[0].mxu0
          %v870 = vadd.f32 %v720, %v869
          %v871 = vpop.f32.mrb[0].mxu0
          %v872 = vadd.f32 %v716, %v871
          %v873 = vpop.f32.mrb[0].mxu0
          %v874 = vadd.f32 %v720, %v873
          %875 = vmatprep.mubr.bf16.mxu0 0
          %876 = vmatmul.mubr.bf16.gmra.mrb[0].mxu0 %v683
          %v877 = vpop.f32.mrb[0].mxu0
          %v878 = vadd.f32 %v716, %v877
          %v879 = vpop.f32.mrb[0].mxu0
          %v880 = vadd.f32 %v720, %v879
          %v881 = vpop.f32.mrb[0].mxu0
          %v882 = vadd.f32 %v716, %v881
          %v883 = vpop.f32.mrb[0].mxu0
          %v884 = vadd.f32 %v720, %v883
          %885 = vmatprep.mubr.bf16.mxu0 0
          %886 = vmatmul.mubr.bf16.gmra.mrb[0].mxu0 %v684
          %v887 = vpop.f32.mrb[0].mxu0
          %v888 = vadd.f32 %v716, %v887
          %v889 = vpop.f32.mrb[0].mxu0
          %v890 = vadd.f32 %v720, %v889
          %v891 = vpop.f32.mrb[0].mxu0
          %v892 = vadd.f32 %v716, %v891
          %v893 = vpop.f32.mrb[0].mxu0
          %v894 = vadd.f32 %v720, %v893
          %895 = vmatprep.mubr.bf16.mxu0 0
          %896 = vmatmul.mubr.bf16.gmra.mrb[0].mxu0 %v685
          %v897 = vpop.f32.mrb[0].mxu0
          %v898 = vadd.f32 %v716, %v897
          %v899 = vpop.f32.mrb[0].mxu0
          %v900 = vadd.f32 %v720, %v899
          %v901 = vpop.f32.mrb[0].mxu0
          %v902 = vadd.f32 %v716, %v901
          %v903 = vpop.f32.mrb[0].mxu0
          %v904 = vadd.f32 %v720, %v903
          %905 = vmatprep.mubr.bf16.mxu0 0
          %906 = vmatmul.mubr.bf16.gmra.mrb[0].mxu0 %v686
          %v907 = vpop.f32.mrb[0].mxu0
          %v908 = vadd.f32 %v716, %v907
          %v909 = vpop.f32.mrb[0].mxu0
          %v910 = vadd.f32 %v720, %v909
          %v911 = vpop.f32.mrb[0].mxu0
          %v912 = vadd.f32 %v716, %v911
          %v913 = vpop.f32.mrb[0].mxu0
          %v914 = vadd.f32 %v720, %v913
          %915 = vmatprep.mubr.bf16.mxu0 0
          %916 = vmatmul.mubr.bf16.gmra.mrb[0].mxu0 %v687
          %v917 = vpop.f32.mrb[0].mxu0
          %v918 = vadd.f32 %v716, %v917
          %v919 = vpop.f32.mrb[0].mxu0
          %v920 = vadd.f32 %v720, %v919
          %v921 = vpop.f32.mrb[0].mxu0
          %v922 = vadd.f32 %v716, %v921
          %v923 = vpop.f32.mrb[0].mxu0
          %v924 = vadd.f32 %v720, %v923
          %925 = vmatprep.mubr.bf16.mxu0 0
          %926 = vmatmul.mubr.bf16.gmra.mrb[0].mxu0 %v688
          %v927 = vpop.f32.mrb[0].mxu0
          %v928 = vadd.f32 %v716, %v927
          %v929 = vpop.f32.mrb[0].mxu0
          %v930 = vadd.f32 %v720, %v929
          %v931 = vpop.f32.mrb[0].mxu0
          %v932 = vadd.f32 %v716, %v931
          %v933 = vpop.f32.mrb[0].mxu0
          %v934 = vadd.f32 %v720, %v933
          %935 = vmatprep.mubr.bf16.mxu0 0
          %936 = vmatmul.mubr.bf16.gmra.mrb[0].mxu0 %v689
          %v937 = vpop.f32.mrb[0].mxu0
          %v938 = vadd.f32 %v716, %v937
          %v939 = vpop.f32.mrb[0].mxu0
          %v940 = vadd.f32 %v720, %v939
          %v941 = vpop.f32.mrb[0].mxu0
          %v942 = vadd.f32 %v716, %v941
          %v943 = vpop.f32.mrb[0].mxu0
          %v944 = vadd.f32 %v720, %v943
          %945 = vmatprep.mubr.bf16.mxu0 0
          %946 = vmatmul.mubr.bf16.gmra.mrb[0].mxu0 %v690
          %v947 = vpop.f32.mrb[0].mxu0
          %v948 = vadd.f32 %v716, %v947
          %v949 = vpop.f32.mrb[0].mxu0
          %v950 = vadd.f32 %v720, %v949
          %v951 = vpop.f32.mrb[0].mxu0
          %v952 = vadd.f32 %v716, %v951
          %v953 = vpop.f32.mrb[0].mxu0
          %v954 = vadd.f32 %v720, %v953
          %955 = vmatprep.mubr.bf16.mxu0 0
          %956 = vmatmul.mubr.bf16.gmra.mrb[0].mxu0 %v691
          %v957 = vpop.f32.mrb[0].mxu0
          %v958 = vadd.f32 %v716, %v957
          %v959 = vpop.f32.mrb[0].mxu0
          %v960 = vadd.f32 %v720, %v959
          %v961 = vpop.f32.mrb[0].mxu0
          %v962 = vadd.f32 %v716, %v961
          %v963 = vpop.f32.mrb[0].mxu0
          %v964 = vadd.f32 %v720, %v963
          %965 = vmatprep.mubr.bf16.mxu0 0
          %966 = vmatmul.mubr.bf16.gmra.mrb[0].mxu0 %v692
          %v967 = vpop.f32.mrb[0].mxu0
          %v968 = vadd.f32 %v716, %v967
          %v969 = vpop.f32.mrb[0].mxu0
          %v970 = vadd.f32 %v720, %v969
          %v971 = vpop.f32.mrb[0].mxu0
          %v972 = vadd.f32 %v716, %v971
          %v973 = vpop.f32.mrb[0].mxu0
          %v974 = vadd.f32 %v720, %v973
          %975 = vmatprep.mubr.bf16.mxu0 0
          %976 = vmatmul.mubr.bf16.gmra.mrb[0].mxu0 %v693
          %v977 = vpop.f32.mrb[0].mxu0
          %v978 = vadd.f32 %v716, %v977
          %v979 = vpop.f32.mrb[0].mxu0
          %v980 = vadd.f32 %v720, %v979
          %v981 = vpop.f32.mrb[0].mxu0
          %v982 = vadd.f32 %v716, %v981
          %v983 = vpop.f32.mrb[0].mxu0
          %v984 = vadd.f32 %v720, %v983
          %985 = vmatprep.mubr.bf16.mxu0 0
          %986 = vmatmul.mubr.bf16.gmra.mrb[0].mxu0 %v694
          %v987 = vpop.f32.mrb[0].mxu0
          %v988 = vadd.f32 %v716, %v987
          %v989 = vpop.f32.mrb[0].mxu0
          %v990 = vadd.f32 %v720, %v989
          %v991 = vpop.f32.mrb[0].mxu0
          %v992 = vadd.f32 %v716, %v991
          %v993 = vpop.f32.mrb[0].mxu0
          %v994 = vadd.f32 %v720, %v993
          %995 = vdwg.mxu0
          %v996 = vpack.c.bf16 %v842, %v838
          %v997 = vpack.c.bf16 %v844, %v840
          %v998 = vpack.c.bf16 %v852, %v848
          %v999 = vpack.c.bf16 %v854, %v850
          %v1000 = vpack.c.bf16 %v862, %v858
          %v1001 = vpack.c.bf16 %v864, %v860
          %v1002 = vpack.c.bf16 %v872, %v868
          %v1003 = vpack.c.bf16 %v874, %v870
          %v1004 = vpack.c.bf16 %v882, %v878
          %v1005 = vpack.c.bf16 %v884, %v880
          %v1006 = vpack.c.bf16 %v892, %v888
          %v1007 = vpack.c.bf16 %v894, %v890
          %v1008 = vpack.c.bf16 %v902, %v898
          %v1009 = vpack.c.bf16 %v904, %v900
          %v1010 = vpack.c.bf16 %v912, %v908
          %v1011 = vpack.c.bf16 %v914, %v910
          %v1012 = vpack.c.bf16 %v922, %v918
          %v1013 = vpack.c.bf16 %v924, %v920
          %v1014 = vpack.c.bf16 %v932, %v928
          %v1015 = vpack.c.bf16 %v934, %v930
          %v1016 = vpack.c.bf16 %v942, %v938
          %v1017 = vpack.c.bf16 %v944, %v940
          %v1018 = vpack.c.bf16 %v952, %v948
          %v1019 = vpack.c.bf16 %v954, %v950
          %v1020 = vpack.c.bf16 %v962, %v958
          %v1021 = vpack.c.bf16 %v964, %v960
          %v1022 = vpack.c.bf16 %v972, %v968
          %v1023 = vpack.c.bf16 %v974, %v970
          %v1024 = vpack.c.bf16 %v982, %v978
          %v1025 = vpack.c.bf16 %v984, %v980
          %v1026 = vpack.c.bf16 %v992, %v988
          %v1027 = vpack.c.bf16 %v994, %v990
          %1028 = vst [vmem:[#allocation2] sm:$0xff] %v996
          %1029 = vst [vmem:[#allocation2 + $0x8] sm:$0xff] %v997
          %1030 = vst [vmem:[#allocation2 + $0x10] sm:$0xff] %v998
          %1031 = vst [vmem:[#allocation2 + $0x18] sm:$0xff] %v999
          %1032 = vst [vmem:[#allocation2 + $0x20] sm:$0xff] %v1000
          %1033 = vst [vmem:[#allocation2 + $0x28] sm:$0xff] %v1001
          %1034 = vst [vmem:[#allocation2 + $0x30] sm:$0xff] %v1002
          %1035 = vst [vmem:[#allocation2 + $0x38] sm:$0xff] %v1003
          %1036 = vst [vmem:[#allocation2 + $0x40] sm:$0xff] %v1004
          %1037 = vst [vmem:[#allocation2 + $0x48] sm:$0xff] %v1005
          %1038 = vst [vmem:[#allocation2 + $0x50] sm:$0xff] %v1006
          %1039 = vst [vmem:[#allocation2 + $0x58] sm:$0xff] %v1007
          %1040 = vst [vmem:[#allocation2 + $0x60] sm:$0xff] %v1008
          %1041 = vst [vmem:[#allocation2 + $0x68] sm:$0xff] %v1009
          %1042 = vst [vmem:[#allocation2 + $0x70] sm:$0xff] %v1010
          %1043 = vst [vmem:[#allocation2 + $0x78] sm:$0xff] %v1011
          %1044 = vst [vmem:[#allocation2 + $0x80] sm:$0xff] %v1012
          %1045 = vst [vmem:[#allocation2 + $0x88] sm:$0xff] %v1013
          %1046 = vst [vmem:[#allocation2 + $0x90] sm:$0xff] %v1014
          %1047 = vst [vmem:[#allocation2 + $0x98] sm:$0xff] %v1015
          %1048 = vst [vmem:[#allocation2 + $0xa0] sm:$0xff] %v1016
          %1049 = vst [vmem:[#allocation2 + $0xa8] sm:$0xff] %v1017
          %1050 = vst [vmem:[#allocation2 + $0xb0] sm:$0xff] %v1018
          %1051 = vst [vmem:[#allocation2 + $0xb8] sm:$0xff] %v1019
          %1052 = vst [vmem:[#allocation2 + $0xc0] sm:$0xff] %v1020
          %1053 = vst [vmem:[#allocation2 + $0xc8] sm:$0xff] %v1021
          %1054 = vst [vmem:[#allocation2 + $0xd0] sm:$0xff] %v1022
          %1055 = vst [vmem:[#allocation2 + $0xd8] sm:$0xff] %v1023
          %1056 = vst [vmem:[#allocation2 + $0xe0] sm:$0xff] %v1024
          %1057 = vst [vmem:[#allocation2 + $0xe8] sm:$0xff] %v1025
          %1058 = vst [vmem:[#allocation2 + $0xf0] sm:$0xff] %v1026
          %1059 = vst [vmem:[#allocation2 + $0xf8] sm:$0xff] %v1027
        $region108: #{tpu_custom_call.1} parent=79 // pred_fallthru
          _
        %s1060 = smul.u32 %s45, 128
        %s1061 = scalar_lea.vmem %s566, %s1060 [#allocation4]
        %v1062 = vld [vmem:[%s1061] sm:$0xff]
        %v1063 = vld [vmem:[%s1061 + $0x8] sm:$0xff]
        %v1064 = vld [vmem:[%s1061 + $0x10] sm:$0xff]
        %v1065 = vld [vmem:[%s1061 + $0x18] sm:$0xff]
        %v1066 = vld [vmem:[%s1061 + $0x20] sm:$0xff]
        %v1067 = vld [vmem:[%s1061 + $0x28] sm:$0xff]
        %v1068 = vld [vmem:[%s1061 + $0x30] sm:$0xff]
        %v1069 = vld [vmem:[%s1061 + $0x38] sm:$0xff]
        %v1070 = vld [vmem:[%s1061 + $0x40] sm:$0xff]
        %v1071 = vld [vmem:[%s1061 + $0x48] sm:$0xff]
        %v1072 = vld [vmem:[%s1061 + $0x50] sm:$0xff]
        %v1073 = vld [vmem:[%s1061 + $0x58] sm:$0xff]
        %v1074 = vld [vmem:[%s1061 + $0x60] sm:$0xff]
        %v1075 = vld [vmem:[%s1061 + $0x68] sm:$0xff]
        %v1076 = vld [vmem:[%s1061 + $0x70] sm:$0xff]
        %v1077 = vld [vmem:[%s1061 + $0x78] sm:$0xff]
        %v1078 = vpack.c.bf16 %v1063, %v1062
        %v1079 = vpack.c.bf16 %v1065, %v1064
        %v1080 = vpack.c.bf16 %v1067, %v1066
        %v1081 = vpack.c.bf16 %v1069, %v1068
        %v1082 = vpack.c.bf16 %v1071, %v1070
        %v1083 = vpack.c.bf16 %v1073, %v1072
        %v1084 = vpack.c.bf16 %v1075, %v1074
        %v1085 = vpack.c.bf16 %v1077, %v1076
        %v1086 = vld [vmem:[#allocation7] sm:$0xf]
        %v1087 = vld [vmem:[#allocation7 + $0x4] sm:$0xf]
        %v1088 = vld [vmem:[#allocation7 + $0x8] sm:$0xf]
        %v1089 = vld [vmem:[#allocation7 + $0xc] sm:$0xf]
        %v1090 = vld [vmem:[#allocation7 + $0x10] sm:$0xf]
        %v1091 = vld [vmem:[#allocation7 + $0x14] sm:$0xf]
        %v1092 = vld [vmem:[#allocation7 + $0x18] sm:$0xf]
        %v1093 = vld [vmem:[#allocation7 + $0x1c] sm:$0xf]
        %v1094 = vld [vmem:[#allocation7 + $0x20] sm:$0xf]
        %v1095 = vld [vmem:[#allocation7 + $0x24] sm:$0xf]
        %v1096 = vld [vmem:[#allocation7 + $0x28] sm:$0xf]
        %v1097 = vld [vmem:[#allocation7 + $0x2c] sm:$0xf]
        %v1098 = vld [vmem:[#allocation7 + $0x30] sm:$0xf]
        %v1099 = vld [vmem:[#allocation7 + $0x34] sm:$0xf]
        %v1100 = vld [vmem:[#allocation7 + $0x38] sm:$0xf]
        %v1101 = vld [vmem:[#allocation7 + $0x3c] sm:$0xf]
        %v1102 = vld [vmem:[%s2] sm:$0x1]
        %v1104 = vlaneseq
        %v1105 = vshrl.u32 %v1104, 7
        %v1106 = vsub.s32 0, %v1105
        %v1107 = vrot.slane %v1102, %v1106
        %v1125 = vunpack.c.l.b16 %v1086
        %v1126 = vunpack.c.l.b16 %v1087
        %v1127 = vunpack.c.l.b16 %v1088
        %v1128 = vunpack.c.l.b16 %v1089
        %v1129 = vunpack.c.l.b16 %v1090
        %v1130 = vunpack.c.l.b16 %v1091
        %v1131 = vunpack.c.l.b16 %v1092
        %v1132 = vunpack.c.l.b16 %v1093
        %v1133 = vunpack.c.l.b16 %v1094
        %v1134 = vunpack.c.l.b16 %v1095
        %v1135 = vunpack.c.l.b16 %v1096
        %v1136 = vunpack.c.l.b16 %v1097
        %v1137 = vunpack.c.l.b16 %v1098
        %v1138 = vunpack.c.l.b16 %v1099
        %v1139 = vunpack.c.l.b16 %v1100
        %v1140 = vunpack.c.l.b16 %v1101
        %v1141 = vpack.c.b16 %v1126, %v1125
        %v1142 = vpack.c.b16 %v1128, %v1127
        %v1143 = vpack.c.b16 %v1130, %v1129
        %v1144 = vpack.c.b16 %v1132, %v1131
        %v1145 = vpack.c.b16 %v1134, %v1133
        %v1146 = vpack.c.b16 %v1136, %v1135
        %v1147 = vpack.c.b16 %v1138, %v1137
        %v1148 = vpack.c.b16 %v1140, %v1139
        %1157 = vmatprep.subr.bf16.mxu0 0
        %1158 = vmatpush1.bf16.msra.mxu0 %v1141
        %1159 = vmatprep.subr.bf16.mxu0 0
        %1160 = vmatpush1.bf16.msra.mxu0 %v1142
        %1161 = vmatprep.subr.bf16.mxu0 0
        %1162 = vmatpush1.bf16.msra.mxu0 %v1143
        %1163 = vmatprep.subr.bf16.mxu0 0
        %1164 = vmatpush1.bf16.msra.mxu0 %v1144
        %1165 = vmatprep.subr.bf16.mxu0 0
        %1166 = vmatpush1.bf16.msra.mxu0 %v1145
        %1167 = vmatprep.subr.bf16.mxu0 0
        %1168 = vmatpush1.bf16.msra.mxu0 %v1146
        %1169 = vmatprep.subr.bf16.mxu0 0
        %1170 = vmatpush1.bf16.msra.mxu0 %v1147
        %1171 = vmatprep.subr.bf16.mxu0 0
        %1172 = vmatpush1.bf16.msra.mxu0 %v1148
        %1173 = vmatprep.subr.bf16.mxu0 0
        %1174 = vmatpush1.bf16.msra.mxu0 0
        %1175 = vmatprep.subr.bf16.mxu0 0
        %1176 = vmatpush1.bf16.msra.mxu0 0
        %1177 = vmatprep.subr.bf16.mxu0 0
        %1178 = vmatpush1.bf16.msra.mxu0 0
        %1179 = vmatprep.subr.bf16.mxu0 0
        %1180 = vmatpush1.bf16.msra.mxu0 0
        %1181 = vmatprep.subr.bf16.mxu0 0
        %1182 = vmatpush1.bf16.msra.mxu0 0
        %1183 = vmatprep.subr.bf16.mxu0 0
        %1184 = vmatpush1.bf16.msra.mxu0 0
        %1185 = vmatprep.subr.bf16.mxu0 0
        %1186 = vmatpush1.bf16.msra.mxu0 0
        %1187 = vmatprep.subr.bf16.mxu0 0
        %1188 = vmatpush1.bf16.msra.mxu0 0
        %1189 = vmatprep.mubr.bf16.mxu0 0
        %1190 = vmatmul.mubr.bf16.gmra.mrb[0].mxu0 %v1078
        %v1191 = vpop.f32.mrb[0].mxu0
        %v1192 = vadd.f32 %v1107, %v1191
        %v1193 = vpop.f32.mrb[0].mxu0
        %v1194 = vpop.f32.mrb[0].mxu0
        %v1195 = vadd.f32 %v1107, %v1194
        %v1196 = vpop.f32.mrb[0].mxu0
        %1197 = vmatprep.mubr.bf16.mxu0 0
        %1198 = vmatmul.mubr.bf16.gmra.mrb[0].mxu0 %v1079
        %v1199 = vpop.f32.mrb[0].mxu0
        %v1200 = vadd.f32 %v1107, %v1199
        %v1201 = vpop.f32.mrb[0].mxu0
        %v1202 = vpop.f32.mrb[0].mxu0
        %v1203 = vadd.f32 %v1107, %v1202
        %v1204 = vpop.f32.mrb[0].mxu0
        %1205 = vmatprep.mubr.bf16.mxu0 0
        %1206 = vmatmul.mubr.bf16.gmra.mrb[0].mxu0 %v1080
        %v1207 = vpop.f32.mrb[0].mxu0
        %v1208 = vadd.f32 %v1107, %v1207
        %v1209 = vpop.f32.mrb[0].mxu0
        %v1210 = vpop.f32.mrb[0].mxu0
        %v1211 = vadd.f32 %v1107, %v1210
        %v1212 = vpop.f32.mrb[0].mxu0
        %1213 = vmatprep.mubr.bf16.mxu0 0
        %1214 = vmatmul.mubr.bf16.gmra.mrb[0].mxu0 %v1081
        %v1215 = vpop.f32.mrb[0].mxu0
        %v1216 = vadd.f32 %v1107, %v1215
        %v1217 = vpop.f32.mrb[0].mxu0
        %v1218 = vpop.f32.mrb[0].mxu0
        %v1219 = vadd.f32 %v1107, %v1218
        %v1220 = vpop.f32.mrb[0].mxu0
        %1221 = vmatprep.mubr.bf16.mxu0 0
        %1222 = vmatmul.mubr.bf16.gmra.mrb[0].mxu0 %v1082
        %v1223 = vpop.f32.mrb[0].mxu0
        %v1224 = vadd.f32 %v1107, %v1223
        %v1225 = vpop.f32.mrb[0].mxu0
        %v1226 = vpop.f32.mrb[0].mxu0
        %v1227 = vadd.f32 %v1107, %v1226
        %v1228 = vpop.f32.mrb[0].mxu0
        %1229 = vmatprep.mubr.bf16.mxu0 0
        %1230 = vmatmul.mubr.bf16.gmra.mrb[0].mxu0 %v1083
        %v1231 = vpop.f32.mrb[0].mxu0
        %v1232 = vadd.f32 %v1107, %v1231
        %v1233 = vpop.f32.mrb[0].mxu0
        %v1234 = vpop.f32.mrb[0].mxu0
        %v1235 = vadd.f32 %v1107, %v1234
        %v1236 = vpop.f32.mrb[0].mxu0
        %1237 = vmatprep.mubr.bf16.mxu0 0
        %1238 = vmatmul.mubr.bf16.gmra.mrb[0].mxu0 %v1084
        %v1239 = vpop.f32.mrb[0].mxu0
        %v1240 = vadd.f32 %v1107, %v1239
        %v1241 = vpop.f32.mrb[0].mxu0
        %v1242 = vpop.f32.mrb[0].mxu0
        %v1243 = vadd.f32 %v1107, %v1242
        %v1244 = vpop.f32.mrb[0].mxu0
        %1245 = vmatprep.mubr.bf16.mxu0 0
        %1246 = vmatmul.mubr.bf16.gmra.mrb[0].mxu0 %v1085
        %v1247 = vpop.f32.mrb[0].mxu0
        %v1248 = vadd.f32 %v1107, %v1247
        %v1249 = vpop.f32.mrb[0].mxu0
        %v1250 = vpop.f32.mrb[0].mxu0
        %v1251 = vadd.f32 %v1107, %v1250
        %v1252 = vpop.f32.mrb[0].mxu0
        %1253 = vdwg.mxu0
        %v1254 = vpack.c.bf16 %v1195, %v1192
        %v1255 = vpack.c.bf16 %v1203, %v1200
        %v1256 = vpack.c.bf16 %v1211, %v1208
        %v1257 = vpack.c.bf16 %v1219, %v1216
        %v1258 = vpack.c.bf16 %v1227, %v1224
        %v1259 = vpack.c.bf16 %v1235, %v1232
        %v1260 = vpack.c.bf16 %v1243, %v1240
        %v1261 = vpack.c.bf16 %v1251, %v1248
        %v1262 = vld [vmem:[#allocation2] sm:$0xff]
        %v1263 = vld [vmem:[#allocation2 + $0x10] sm:$0xff]
        %v1264 = vld [vmem:[#allocation2 + $0x20] sm:$0xff]
        %v1265 = vld [vmem:[#allocation2 + $0x30] sm:$0xff]
        %v1266 = vld [vmem:[#allocation2 + $0x40] sm:$0xff]
        %v1267 = vld [vmem:[#allocation2 + $0x50] sm:$0xff]
        %v1268 = vld [vmem:[#allocation2 + $0x60] sm:$0xff]
        %v1269 = vld [vmem:[#allocation2 + $0x70] sm:$0xff]
        %v1270 = vld [vmem:[#allocation2 + $0x80] sm:$0xff]
        %v1271 = vld [vmem:[#allocation2 + $0x90] sm:$0xff]
        %v1272 = vld [vmem:[#allocation2 + $0xa0] sm:$0xff]
        %v1273 = vld [vmem:[#allocation2 + $0xb0] sm:$0xff]
        %v1274 = vld [vmem:[#allocation2 + $0xc0] sm:$0xff]
        %v1275 = vld [vmem:[#allocation2 + $0xd0] sm:$0xff]
        %v1276 = vld [vmem:[#allocation2 + $0xe0] sm:$0xff]
        %v1277 = vld [vmem:[#allocation2 + $0xf0] sm:$0xff]
        %v1278 = vld [vmem:[#allocation2 + $0x8] sm:$0xff]
        %v1279 = vld [vmem:[#allocation2 + $0x18] sm:$0xff]
        %v1280 = vld [vmem:[#allocation2 + $0x28] sm:$0xff]
        %v1281 = vld [vmem:[#allocation2 + $0x38] sm:$0xff]
        %v1282 = vld [vmem:[#allocation2 + $0x48] sm:$0xff]
        %v1283 = vld [vmem:[#allocation2 + $0x58] sm:$0xff]
        %v1284 = vld [vmem:[#allocation2 + $0x68] sm:$0xff]
        %v1285 = vld [vmem:[#allocation2 + $0x78] sm:$0xff]
        %v1286 = vld [vmem:[#allocation2 + $0x88] sm:$0xff]
        %v1287 = vld [vmem:[#allocation2 + $0x98] sm:$0xff]
        %v1288 = vld [vmem:[#allocation2 + $0xa8] sm:$0xff]
        %v1289 = vld [vmem:[#allocation2 + $0xb8] sm:$0xff]
        %v1290 = vld [vmem:[#allocation2 + $0xc8] sm:$0xff]
        %v1291 = vld [vmem:[#allocation2 + $0xd8] sm:$0xff]
        %v1292 = vld [vmem:[#allocation2 + $0xe8] sm:$0xff]
        %v1293 = vld [vmem:[#allocation2 + $0xf8] sm:$0xff]
        %vm1294 = vcmask 261120
        %v1296 = vsel %vm1294, %v1254, 0
        %v1299 = vsel %vm1294, %v1255, 0
        %v1302 = vsel %vm1294, %v1256, 0
        %v1305 = vsel %vm1294, %v1257, 0
        %v1308 = vsel %vm1294, %v1258, 0
        %v1311 = vsel %vm1294, %v1259, 0
        %v1314 = vsel %vm1294, %v1260, 0
        %v1317 = vsel %vm1294, %v1261, 0
        %v1320 = vsel %vm1294, %v1262, 0
        %v1323 = vsel %vm1294, %v1263, 0
        %v1326 = vsel %vm1294, %v1264, 0
        %v1329 = vsel %vm1294, %v1265, 0
        %v1332 = vsel %vm1294, %v1266, 0
        %v1335 = vsel %vm1294, %v1267, 0
        %v1338 = vsel %vm1294, %v1268, 0
        %v1341 = vsel %vm1294, %v1269, 0
        %v1344 = vsel %vm1294, %v1270, 0
        %v1347 = vsel %vm1294, %v1271, 0
        %v1350 = vsel %vm1294, %v1272, 0
        %v1353 = vsel %vm1294, %v1273, 0
        %v1356 = vsel %vm1294, %v1274, 0
        %v1359 = vsel %vm1294, %v1275, 0
        %v1362 = vsel %vm1294, %v1276, 0
        %v1365 = vsel %vm1294, %v1277, 0
        %1367 = vmatprep.subr.bf16.mxu0 0
        %1368 = vmatpush1.bf16.xpose.msra.mxu0 %v1320
        %1369 = vmatprep.subr.bf16.mxu0 0
        %1370 = vmatpush1.bf16.xpose.msra.mxu0 %v1323
        %1371 = vmatprep.subr.bf16.mxu0 0
        %1372 = vmatpush1.bf16.xpose.msra.mxu0 %v1326
        %1373 = vmatprep.subr.bf16.mxu0 0
        %1374 = vmatpush1.bf16.xpose.msra.mxu0 %v1329
        %1375 = vmatprep.subr.bf16.mxu0 0
        %1376 = vmatpush1.bf16.xpose.msra.mxu0 %v1332
        %1377 = vmatprep.subr.bf16.mxu0 0
        %1378 = vmatpush1.bf16.xpose.msra.mxu0 %v1335
        %1379 = vmatprep.subr.bf16.mxu0 0
        %1380 = vmatpush1.bf16.xpose.msra.mxu0 %v1338
        %1381 = vmatprep.subr.bf16.mxu0 0
        %1382 = vmatpush1.bf16.xpose.msra.mxu0 %v1341
        %1383 = vmatprep.subr.bf16.mxu0 0
        %1384 = vmatpush1.bf16.xpose.msra.mxu0 %v1344
        %1385 = vmatprep.subr.bf16.mxu0 0
        %1386 = vmatpush1.bf16.xpose.msra.mxu0 %v1347
        %1387 = vmatprep.subr.bf16.mxu0 0
        %1388 = vmatpush1.bf16.xpose.msra.mxu0 %v1350
        %1389 = vmatprep.subr.bf16.mxu0 0
        %1390 = vmatpush1.bf16.xpose.msra.mxu0 %v1353
        %1391 = vmatprep.subr.bf16.mxu0 0
        %1392 = vmatpush1.bf16.xpose.msra.mxu0 %v1356
        %1393 = vmatprep.subr.bf16.mxu0 0
        %1394 = vmatpush1.bf16.xpose.msra.mxu0 %v1359
        %1395 = vmatprep.subr.bf16.mxu0 0
        %1396 = vmatpush1.bf16.xpose.msra.mxu0 %v1362
        %1397 = vmatprep.subr.bf16.mxu0 0
        %1398 = vmatpush1.bf16.xpose.msra.mxu0 %v1365
        %1399 = vmatprep.mubr.bf16.mxu0 0
        %1400 = vmatmul.mubr.bf16.gmra.mrb[0].mxu0 %v1296
        %v1401 = vpop.f32.mrb[0].mxu0
        %v1402 = vadd.f32 0.0, %v1401
        %v1403 = vpop.f32.mrb[0].mxu0
        %v1404 = vadd.f32 0.0, %v1403
        %v1405 = vpop.f32.mrb[0].mxu0
        %v1406 = vadd.f32 0.0, %v1405
        %v1407 = vpop.f32.mrb[0].mxu0
        %v1408 = vadd.f32 0.0, %v1407
        %1409 = vmatprep.mubr.bf16.mxu0 0
        %1410 = vmatmul.mubr.bf16.gmra.mrb[0].mxu0 %v1299
        %v1411 = vpop.f32.mrb[0].mxu0
        %v1412 = vadd.f32 0.0, %v1411
        %v1413 = vpop.f32.mrb[0].mxu0
        %v1414 = vadd.f32 0.0, %v1413
        %v1415 = vpop.f32.mrb[0].mxu0
        %v1416 = vadd.f32 0.0, %v1415
        %v1417 = vpop.f32.mrb[0].mxu0
        %v1418 = vadd.f32 0.0, %v1417
        %1419 = vmatprep.mubr.bf16.mxu0 0
        %1420 = vmatmul.mubr.bf16.gmra.mrb[0].mxu0 %v1302
        %v1421 = vpop.f32.mrb[0].mxu0
        %v1422 = vadd.f32 0.0, %v1421
        %v1423 = vpop.f32.mrb[0].mxu0
        %v1424 = vadd.f32 0.0, %v1423
        %v1425 = vpop.f32.mrb[0].mxu0
        %v1426 = vadd.f32 0.0, %v1425
        %v1427 = vpop.f32.mrb[0].mxu0
        %v1428 = vadd.f32 0.0, %v1427
        %1429 = vmatprep.mubr.bf16.mxu0 0
        %1430 = vmatmul.mubr.bf16.gmra.mrb[0].mxu0 %v1305
        %v1431 = vpop.f32.mrb[0].mxu0
        %v1432 = vadd.f32 0.0, %v1431
        %v1433 = vpop.f32.mrb[0].mxu0
        %v1434 = vadd.f32 0.0, %v1433
        %v1435 = vpop.f32.mrb[0].mxu0
        %v1436 = vadd.f32 0.0, %v1435
        %v1437 = vpop.f32.mrb[0].mxu0
        %v1438 = vadd.f32 0.0, %v1437
        %1439 = vmatprep.mubr.bf16.mxu0 0
        %1440 = vmatmul.mubr.bf16.gmra.mrb[0].mxu0 %v1308
        %v1441 = vpop.f32.mrb[0].mxu0
        %v1442 = vadd.f32 0.0, %v1441
        %v1443 = vpop.f32.mrb[0].mxu0
        %v1444 = vadd.f32 0.0, %v1443
        %v1445 = vpop.f32.mrb[0].mxu0
        %v1446 = vadd.f32 0.0, %v1445
        %v1447 = vpop.f32.mrb[0].mxu0
        %v1448 = vadd.f32 0.0, %v1447
        %1449 = vmatprep.mubr.bf16.mxu0 0
        %1450 = vmatmul.mubr.bf16.gmra.mrb[0].mxu0 %v1311
        %v1451 = vpop.f32.mrb[0].mxu0
        %v1452 = vadd.f32 0.0, %v1451
        %v1453 = vpop.f32.mrb[0].mxu0
        %v1454 = vadd.f32 0.0, %v1453
        %v1455 = vpop.f32.mrb[0].mxu0
        %v1456 = vadd.f32 0.0, %v1455
        %v1457 = vpop.f32.mrb[0].mxu0
        %v1458 = vadd.f32 0.0, %v1457
        %1459 = vmatprep.mubr.bf16.mxu0 0
        %1460 = vmatmul.mubr.bf16.gmra.mrb[0].mxu0 %v1314
        %v1461 = vpop.f32.mrb[0].mxu0
        %v1462 = vadd.f32 0.0, %v1461
        %v1463 = vpop.f32.mrb[0].mxu0
        %v1464 = vadd.f32 0.0, %v1463
        %v1465 = vpop.f32.mrb[0].mxu0
        %v1466 = vadd.f32 0.0, %v1465
        %v1467 = vpop.f32.mrb[0].mxu0
        %v1468 = vadd.f32 0.0, %v1467
        %1469 = vmatprep.mubr.bf16.mxu0 0
        %1470 = vmatmul.mubr.bf16.gmra.mrb[0].mxu0 %v1317
        %v1471 = vpop.f32.mrb[0].mxu0
        %v1472 = vadd.f32 0.0, %v1471
        %v1473 = vpop.f32.mrb[0].mxu0
        %v1474 = vadd.f32 0.0, %v1473
        %v1475 = vpop.f32.mrb[0].mxu0
        %v1476 = vadd.f32 0.0, %v1475
        %v1477 = vpop.f32.mrb[0].mxu0
        %v1478 = vadd.f32 0.0, %v1477
        %1479 = vdwg.mxu0
        %v1480 = vmax.f32 %v1402, %v1404
        %1481 = vmax.xlane.f32.xlu0 %v1480
        %v1482 = vpop.xlane.xlu0 %1481
        %v1483 = vmax.f32 %v1406, %v1408
        %1484 = vmax.xlane.f32.xlu0 %v1483
        %v1485 = vpop.xlane.xlu0 %1484
        %v1486 = vmax.f32 %v1412, %v1414
        %1487 = vmax.xlane.f32.xlu0 %v1486
        %v1488 = vpop.xlane.xlu0 %1487
        %v1489 = vmax.f32 %v1416, %v1418
        %1490 = vmax.xlane.f32.xlu0 %v1489
        %v1491 = vpop.xlane.xlu0 %1490
        %v1492 = vmax.f32 %v1422, %v1424
        %1493 = vmax.xlane.f32.xlu0 %v1492
        %v1494 = vpop.xlane.xlu0 %1493
        %v1495 = vmax.f32 %v1426, %v1428
        %1496 = vmax.xlane.f32.xlu0 %v1495
        %v1497 = vpop.xlane.xlu0 %1496
        %v1498 = vmax.f32 %v1432, %v1434
        %1499 = vmax.xlane.f32.xlu0 %v1498
        %v1500 = vpop.xlane.xlu0 %1499
        %v1501 = vmax.f32 %v1436, %v1438
        %1502 = vmax.xlane.f32.xlu0 %v1501
        %v1503 = vpop.xlane.xlu0 %1502
        %v1504 = vmax.f32 %v1442, %v1444
        %1505 = vmax.xlane.f32.xlu0 %v1504
        %v1506 = vpop.xlane.xlu0 %1505
        %v1507 = vmax.f32 %v1446, %v1448
        %1508 = vmax.xlane.f32.xlu0 %v1507
        %v1509 = vpop.xlane.xlu0 %1508
        %v1510 = vmax.f32 %v1452, %v1454
        %1511 = vmax.xlane.f32.xlu0 %v1510
        %v1512 = vpop.xlane.xlu0 %1511
        %v1513 = vmax.f32 %v1456, %v1458
        %1514 = vmax.xlane.f32.xlu0 %v1513
        %v1515 = vpop.xlane.xlu0 %1514
        %v1516 = vmax.f32 %v1462, %v1464
        %1517 = vmax.xlane.f32.xlu0 %v1516
        %v1518 = vpop.xlane.xlu0 %1517
        %v1519 = vmax.f32 %v1466, %v1468
        %1520 = vmax.xlane.f32.xlu0 %v1519
        %v1521 = vpop.xlane.xlu0 %1520
        %v1522 = vmax.f32 %v1472, %v1474
        %1523 = vmax.xlane.f32.xlu0 %v1522
        %v1524 = vpop.xlane.xlu0 %1523
        %v1525 = vmax.f32 %v1476, %v1478
        %1526 = vmax.xlane.f32.xlu0 %v1525
        %v1527 = vpop.xlane.xlu0 %1526
        %v1528 = vsub.f32 %v1402, %v1482
        %v1529 = vsub.f32 %v1404, %v1482
        %v1530 = vsub.f32 %v1406, %v1485
        %v1531 = vsub.f32 %v1408, %v1485
        %v1532 = vsub.f32 %v1412, %v1488
        %v1533 = vsub.f32 %v1414, %v1488
        %v1534 = vsub.f32 %v1416, %v1491
        %v1535 = vsub.f32 %v1418, %v1491
        %v1536 = vsub.f32 %v1422, %v1494
        %v1537 = vsub.f32 %v1424, %v1494
        %v1538 = vsub.f32 %v1426, %v1497
        %v1539 = vsub.f32 %v1428, %v1497
        %v1540 = vsub.f32 %v1432, %v1500
        %v1541 = vsub.f32 %v1434, %v1500
        %v1542 = vsub.f32 %v1436, %v1503
        %v1543 = vsub.f32 %v1438, %v1503
        %v1544 = vsub.f32 %v1442, %v1506
        %v1545 = vsub.f32 %v1444, %v1506
        %v1546 = vsub.f32 %v1446, %v1509
        %v1547 = vsub.f32 %v1448, %v1509
        %v1548 = vsub.f32 %v1452, %v1512
        %v1549 = vsub.f32 %v1454, %v1512
        %v1550 = vsub.f32 %v1456, %v1515
        %v1551 = vsub.f32 %v1458, %v1515
        %v1552 = vsub.f32 %v1462, %v1518
        %v1553 = vsub.f32 %v1464, %v1518
        %v1554 = vsub.f32 %v1466, %v1521
        %v1555 = vsub.f32 %v1468, %v1521
        %v1556 = vsub.f32 %v1472, %v1524
        %v1557 = vsub.f32 %v1474, %v1524
        %v1558 = vsub.f32 %v1476, %v1527
        %v1559 = vsub.f32 %v1478, %v1527
        %v1560 = vmul.f32 %v1528, 1.442695
        %v1561 = vpow.pop %v1560
        %v1562 = vmul.f32 %v1529, 1.442695
        %v1563 = vpow.pop %v1562
        %v1564 = vmul.f32 %v1530, 1.442695
        %v1565 = vpow.pop %v1564
        %v1566 = vmul.f32 %v1531, 1.442695
        %v1567 = vpow.pop %v1566
        %v1568 = vmul.f32 %v1532, 1.442695
        %v1569 = vpow.pop %v1568
        %v1570 = vmul.f32 %v1533, 1.442695
        %v1571 = vpow.pop %v1570
        %v1572 = vmul.f32 %v1534, 1.442695
        %v1573 = vpow.pop %v1572
        %v1574 = vmul.f32 %v1535, 1.442695
        %v1575 = vpow.pop %v1574
        %v1576 = vmul.f32 %v1536, 1.442695
        %v1577 = vpow.pop %v1576
        %v1578 = vmul.f32 %v1537, 1.442695
        %v1579 = vpow.pop %v1578
        %v1580 = vmul.f32 %v1538, 1.442695
        %v1581 = vpow.pop %v1580
        %v1582 = vmul.f32 %v1539, 1.442695
        %v1583 = vpow.pop %v1582
        %v1584 = vmul.f32 %v1540, 1.442695
        %v1585 = vpow.pop %v1584
        %v1586 = vmul.f32 %v1541, 1.442695
        %v1587 = vpow.pop %v1586
        %v1588 = vmul.f32 %v1542, 1.442695
        %v1589 = vpow.pop %v1588
        %v1590 = vmul.f32 %v1543, 1.442695
        %v1591 = vpow.pop %v1590
        %v1592 = vmul.f32 %v1544, 1.442695
        %v1593 = vpow.pop %v1592
        %v1594 = vmul.f32 %v1545, 1.442695
        %v1595 = vpow.pop %v1594
        %v1596 = vmul.f32 %v1546, 1.442695
        %v1597 = vpow.pop %v1596
        %v1598 = vmul.f32 %v1547, 1.442695
        %v1599 = vpow.pop %v1598
        %v1600 = vmul.f32 %v1548, 1.442695
        %v1601 = vpow.pop %v1600
        %v1602 = vmul.f32 %v1549, 1.442695
        %v1603 = vpow.pop %v1602
        %v1604 = vmul.f32 %v1550, 1.442695
        %v1605 = vpow.pop %v1604
        %v1606 = vmul.f32 %v1551, 1.442695
        %v1607 = vpow.pop %v1606
        %v1608 = vmul.f32 %v1552, 1.442695
        %v1609 = vpow.pop %v1608
        %v1610 = vmul.f32 %v1553, 1.442695
        %v1611 = vpow.pop %v1610
        %v1612 = vmul.f32 %v1554, 1.442695
        %v1613 = vpow.pop %v1612
        %v1614 = vmul.f32 %v1555, 1.442695
        %v1615 = vpow.pop %v1614
        %v1616 = vmul.f32 %v1556, 1.442695
        %v1617 = vpow.pop %v1616
        %v1618 = vmul.f32 %v1557, 1.442695
        %v1619 = vpow.pop %v1618
        %v1620 = vmul.f32 %v1558, 1.442695
        %v1621 = vpow.pop %v1620
        %v1622 = vmul.f32 %v1559, 1.442695
        %v1623 = vpow.pop %v1622
        %v1624 = vadd.f32 %v1561, %v1563
        %1625 = vadd.xlane.f32.xlu0 %v1624
        %v1626 = vpop.xlane.xlu0 %1625
        %v1627 = vadd.f32 %v1565, %v1567
        %1628 = vadd.xlane.f32.xlu0 %v1627
        %v1629 = vpop.xlane.xlu0 %1628
        %v1630 = vadd.f32 %v1569, %v1571
        %1631 = vadd.xlane.f32.xlu0 %v1630
        %v1632 = vpop.xlane.xlu0 %1631
        %v1633 = vadd.f32 %v1573, %v1575
        %1634 = vadd.xlane.f32.xlu0 %v1633
        %v1635 = vpop.xlane.xlu0 %1634
        %v1636 = vadd.f32 %v1577, %v1579
        %1637 = vadd.xlane.f32.xlu0 %v1636
        %v1638 = vpop.xlane.xlu0 %1637
        %v1639 = vadd.f32 %v1581, %v1583
        %1640 = vadd.xlane.f32.xlu0 %v1639
        %v1641 = vpop.xlane.xlu0 %1640
        %v1642 = vadd.f32 %v1585, %v1587
        %1643 = vadd.xlane.f32.xlu0 %v1642
        %v1644 = vpop.xlane.xlu0 %1643
        %v1645 = vadd.f32 %v1589, %v1591
        %1646 = vadd.xlane.f32.xlu0 %v1645
        %v1647 = vpop.xlane.xlu0 %1646
        %v1648 = vadd.f32 %v1593, %v1595
        %1649 = vadd.xlane.f32.xlu0 %v1648
        %v1650 = vpop.xlane.xlu0 %1649
        %v1651 = vadd.f32 %v1597, %v1599
        %1652 = vadd.xlane.f32.xlu0 %v1651
        %v1653 = vpop.xlane.xlu0 %1652
        %v1654 = vadd.f32 %v1601, %v1603
        %1655 = vadd.xlane.f32.xlu0 %v1654
        %v1656 = vpop.xlane.xlu0 %1655
        %v1657 = vadd.f32 %v1605, %v1607
        %1658 = vadd.xlane.f32.xlu0 %v1657
        %v1659 = vpop.xlane.xlu0 %1658
        %v1660 = vadd.f32 %v1609, %v1611
        %1661 = vadd.xlane.f32.xlu0 %v1660
        %v1662 = vpop.xlane.xlu0 %1661
        %v1663 = vadd.f32 %v1613, %v1615
        %1664 = vadd.xlane.f32.xlu0 %v1663
        %v1665 = vpop.xlane.xlu0 %1664
        %v1666 = vadd.f32 %v1617, %v1619
        %1667 = vadd.xlane.f32.xlu0 %v1666
        %v1668 = vpop.xlane.xlu0 %1667
        %v1669 = vadd.f32 %v1621, %v1623
        %1670 = vadd.xlane.f32.xlu0 %v1669
        %v1671 = vpop.xlane.xlu0 %1670
        %v1672 = vrcp.pop %v1626
        %v1673 = vrcp.pop %v1629
        %v1674 = vrcp.pop %v1632
        %v1675 = vrcp.pop %v1635
        %v1676 = vrcp.pop %v1638
        %v1677 = vrcp.pop %v1641
        %v1678 = vrcp.pop %v1644
        %v1679 = vrcp.pop %v1647
        %v1680 = vrcp.pop %v1650
        %v1681 = vrcp.pop %v1653
        %v1682 = vrcp.pop %v1656
        %v1683 = vrcp.pop %v1659
        %v1684 = vrcp.pop %v1662
        %v1685 = vrcp.pop %v1665
        %v1686 = vrcp.pop %v1668
        %v1687 = vrcp.pop %v1671
        %v1688 = vmul.f32 %v1561, %v1672
        %v1689 = vmul.f32 %v1563, %v1672
        %v1690 = vmul.f32 %v1565, %v1673
        %v1691 = vmul.f32 %v1567, %v1673
        %v1692 = vmul.f32 %v1569, %v1674
        %v1693 = vmul.f32 %v1571, %v1674
        %v1694 = vmul.f32 %v1573, %v1675
        %v1695 = vmul.f32 %v1575, %v1675
        %v1696 = vmul.f32 %v1577, %v1676
        %v1697 = vmul.f32 %v1579, %v1676
        %v1698 = vmul.f32 %v1581, %v1677
        %v1699 = vmul.f32 %v1583, %v1677
        %v1700 = vmul.f32 %v1585, %v1678
        %v1701 = vmul.f32 %v1587, %v1678
        %v1702 = vmul.f32 %v1589, %v1679
        %v1703 = vmul.f32 %v1591, %v1679
        %v1704 = vmul.f32 %v1593, %v1680
        %v1705 = vmul.f32 %v1595, %v1680
        %v1706 = vmul.f32 %v1597, %v1681
        %v1707 = vmul.f32 %v1599, %v1681
        %v1708 = vmul.f32 %v1601, %v1682
        %v1709 = vmul.f32 %v1603, %v1682
        %v1710 = vmul.f32 %v1605, %v1683
        %v1711 = vmul.f32 %v1607, %v1683
        %v1712 = vmul.f32 %v1609, %v1684
        %v1713 = vmul.f32 %v1611, %v1684
        %v1714 = vmul.f32 %v1613, %v1685
        %v1715 = vmul.f32 %v1615, %v1685
        %v1716 = vmul.f32 %v1617, %v1686
        %v1717 = vmul.f32 %v1619, %v1686
        %v1718 = vmul.f32 %v1621, %v1687
        %v1719 = vmul.f32 %v1623, %v1687
        %v1720 = vpack.c.bf16 %v1690, %v1688
        %v1721 = vpack.c.bf16 %v1691, %v1689
        %v1722 = vpack.c.bf16 %v1694, %v1692
        %v1723 = vpack.c.bf16 %v1695, %v1693
        %v1724 = vpack.c.bf16 %v1698, %v1696
        %v1725 = vpack.c.bf16 %v1699, %v1697
        %v1726 = vpack.c.bf16 %v1702, %v1700
        %v1727 = vpack.c.bf16 %v1703, %v1701
        %v1728 = vpack.c.bf16 %v1706, %v1704
        %v1729 = vpack.c.bf16 %v1707, %v1705
        %v1730 = vpack.c.bf16 %v1710, %v1708
        %v1731 = vpack.c.bf16 %v1711, %v1709
        %v1732 = vpack.c.bf16 %v1714, %v1712
        %v1733 = vpack.c.bf16 %v1715, %v1713
        %v1734 = vpack.c.bf16 %v1718, %v1716
        %v1735 = vpack.c.bf16 %v1719, %v1717
        %v1752 = vunpack.c.l.b16 %v1720
        %v1753 = vunpack.c.l.b16 %v1721
        %v1754 = vunpack.c.h.b16 %v1720
        %v1755 = vunpack.c.h.b16 %v1721
        %v1756 = vunpack.c.l.b16 %v1722
        %v1757 = vunpack.c.l.b16 %v1723
        %v1758 = vunpack.c.h.b16 %v1722
        %v1759 = vunpack.c.h.b16 %v1723
        %v1760 = vunpack.c.l.b16 %v1724
        %v1761 = vunpack.c.l.b16 %v1725
        %v1762 = vunpack.c.h.b16 %v1724
        %v1763 = vunpack.c.h.b16 %v1725
        %v1764 = vunpack.c.l.b16 %v1726
        %v1765 = vunpack.c.l.b16 %v1727
        %v1766 = vunpack.c.h.b16 %v1726
        %v1767 = vunpack.c.h.b16 %v1727
        %v1768 = vunpack.c.l.b16 %v1728
        %v1769 = vunpack.c.l.b16 %v1729
        %v1770 = vunpack.c.h.b16 %v1728
        %v1771 = vunpack.c.h.b16 %v1729
        %v1772 = vunpack.c.l.b16 %v1730
        %v1773 = vunpack.c.l.b16 %v1731
        %v1774 = vunpack.c.h.b16 %v1730
        %v1775 = vunpack.c.h.b16 %v1731
        %v1776 = vunpack.c.l.b16 %v1732
        %v1777 = vunpack.c.l.b16 %v1733
        %v1778 = vunpack.c.h.b16 %v1732
        %v1779 = vunpack.c.h.b16 %v1733
        %v1780 = vunpack.c.l.b16 %v1734
        %v1781 = vunpack.c.l.b16 %v1735
        %v1782 = vunpack.c.h.b16 %v1734
        %v1783 = vunpack.c.h.b16 %v1735
        %v1784 = vpack.c.b16 %v1753, %v1752
        %v1785 = vpack.c.b16 %v1755, %v1754
        %v1786 = vpack.c.b16 %v1757, %v1756
        %v1787 = vpack.c.b16 %v1759, %v1758
        %v1788 = vpack.c.b16 %v1761, %v1760
        %v1789 = vpack.c.b16 %v1763, %v1762
        %v1790 = vpack.c.b16 %v1765, %v1764
        %v1791 = vpack.c.b16 %v1767, %v1766
        %v1792 = vpack.c.b16 %v1769, %v1768
        %v1793 = vpack.c.b16 %v1771, %v1770
        %v1794 = vpack.c.b16 %v1773, %v1772
        %v1795 = vpack.c.b16 %v1775, %v1774
        %v1796 = vpack.c.b16 %v1777, %v1776
        %v1797 = vpack.c.b16 %v1779, %v1778
        %v1798 = vpack.c.b16 %v1781, %v1780
        %v1799 = vpack.c.b16 %v1783, %v1782
        %1816 = vst [vmem:[%s639] sm:$0xff] %v1784
        %1817 = vst [vmem:[%s639 + $0x8] sm:$0xff] %v1785
        %1818 = vst [vmem:[%s639 + $0x10] sm:$0xff] %v1786
        %1819 = vst [vmem:[%s639 + $0x18] sm:$0xff] %v1787
        %1820 = vst [vmem:[%s639 + $0x20] sm:$0xff] %v1788
        %1821 = vst [vmem:[%s639 + $0x28] sm:$0xff] %v1789
        %1822 = vst [vmem:[%s639 + $0x30] sm:$0xff] %v1790
        %1823 = vst [vmem:[%s639 + $0x38] sm:$0xff] %v1791
        %1824 = vst [vmem:[%s639 + $0x40] sm:$0xff] %v1792
        %1825 = vst [vmem:[%s639 + $0x48] sm:$0xff] %v1793
        %1826 = vst [vmem:[%s639 + $0x50] sm:$0xff] %v1794
        %1827 = vst [vmem:[%s639 + $0x58] sm:$0xff] %v1795
        %1828 = vst [vmem:[%s639 + $0x60] sm:$0xff] %v1796
        %1829 = vst [vmem:[%s639 + $0x68] sm:$0xff] %v1797
        %1830 = vst [vmem:[%s639 + $0x70] sm:$0xff] %v1798
        %1831 = vst [vmem:[%s639 + $0x78] sm:$0xff] %v1799
        %1832 = vmatprep.subr.bf16.mxu0 0
        %1833 = vmatpush1.bf16.msra.mxu0 %v1278
        %1834 = vmatprep.subr.bf16.mxu0 0
        %1835 = vmatpush1.bf16.msra.mxu0 %v1279
        %1836 = vmatprep.subr.bf16.mxu0 0
        %1837 = vmatpush1.bf16.msra.mxu0 %v1280
        %1838 = vmatprep.subr.bf16.mxu0 0
        %1839 = vmatpush1.bf16.msra.mxu0 %v1281
        %1840 = vmatprep.subr.bf16.mxu0 0
        %1841 = vmatpush1.bf16.msra.mxu0 %v1282
        %1842 = vmatprep.subr.bf16.mxu0 0
        %1843 = vmatpush1.bf16.msra.mxu0 %v1283
        %1844 = vmatprep.subr.bf16.mxu0 0
        %1845 = vmatpush1.bf16.msra.mxu0 %v1284
        %1846 = vmatprep.subr.bf16.mxu0 0
        %1847 = vmatpush1.bf16.msra.mxu0 %v1285
        %1848 = vmatprep.subr.bf16.mxu0 0
        %1849 = vmatpush1.bf16.msra.mxu0 %v1286
        %1850 = vmatprep.subr.bf16.mxu0 0
        %1851 = vmatpush1.bf16.msra.mxu0 %v1287
        %1852 = vmatprep.subr.bf16.mxu0 0
        %1853 = vmatpush1.bf16.msra.mxu0 %v1288
        %1854 = vmatprep.subr.bf16.mxu0 0
        %1855 = vmatpush1.bf16.msra.mxu0 %v1289
        %1856 = vmatprep.subr.bf16.mxu0 0
        %1857 = vmatpush1.bf16.msra.mxu0 %v1290
        %1858 = vmatprep.subr.bf16.mxu0 0
        %1859 = vmatpush1.bf16.msra.mxu0 %v1291
        %1860 = vmatprep.subr.bf16.mxu0 0
        %1861 = vmatpush1.bf16.msra.mxu0 %v1292
        %1862 = vmatprep.subr.bf16.mxu0 0
        %1863 = vmatpush1.bf16.msra.mxu0 %v1293
        %1864 = vmatprep.mubr.bf16.mxu0 %v1721
        %1865 = vmatmul.mubr.bf16.gmra.mrb[0].mxu0 %v1720
        %v1866 = vpop.f32.mrb[0].mxu0
        %v1867 = vadd.f32 0.0, %v1866
        %v1868 = vpop.f32.mrb[0].mxu0
        %v1869 = vpop.f32.mrb[0].mxu0
        %v1870 = vadd.f32 0.0, %v1869
        %v1871 = vpop.f32.mrb[0].mxu0
        %1872 = vmatprep.mubr.bf16.mxu0 %v1723
        %1873 = vmatmul.mubr.bf16.gmra.mrb[0].mxu0 %v1722
        %v1874 = vpop.f32.mrb[0].mxu0
        %v1875 = vadd.f32 0.0, %v1874
        %v1876 = vpop.f32.mrb[0].mxu0
        %v1877 = vpop.f32.mrb[0].mxu0
        %v1878 = vadd.f32 0.0, %v1877
        %v1879 = vpop.f32.mrb[0].mxu0
        %1880 = vmatprep.mubr.bf16.mxu0 %v1725
        %1881 = vmatmul.mubr.bf16.gmra.mrb[0].mxu0 %v1724
        %v1882 = vpop.f32.mrb[0].mxu0
        %v1883 = vadd.f32 0.0, %v1882
        %v1884 = vpop.f32.mrb[0].mxu0
        %v1885 = vpop.f32.mrb[0].mxu0
        %v1886 = vadd.f32 0.0, %v1885
        %v1887 = vpop.f32.mrb[0].mxu0
        %1888 = vmatprep.mubr.bf16.mxu0 %v1727
        %1889 = vmatmul.mubr.bf16.gmra.mrb[0].mxu0 %v1726
        %v1890 = vpop.f32.mrb[0].mxu0
        %v1891 = vadd.f32 0.0, %v1890
        %v1892 = vpop.f32.mrb[0].mxu0
        %v1893 = vpop.f32.mrb[0].mxu0
        %v1894 = vadd.f32 0.0, %v1893
        %v1895 = vpop.f32.mrb[0].mxu0
        %1896 = vmatprep.mubr.bf16.mxu0 %v1729
        %1897 = vmatmul.mubr.bf16.gmra.mrb[0].mxu0 %v1728
        %v1898 = vpop.f32.mrb[0].mxu0
        %v1899 = vadd.f32 0.0, %v1898
        %v1900 = vpop.f32.mrb[0].mxu0
        %v1901 = vpop.f32.mrb[0].mxu0
        %v1902 = vadd.f32 0.0, %v1901
        %v1903 = vpop.f32.mrb[0].mxu0
        %1904 = vmatprep.mubr.bf16.mxu0 %v1731
        %1905 = vmatmul.mubr.bf16.gmra.mrb[0].mxu0 %v1730
        %v1906 = vpop.f32.mrb[0].mxu0
        %v1907 = vadd.f32 0.0, %v1906
        %v1908 = vpop.f32.mrb[0].mxu0
        %v1909 = vpop.f32.mrb[0].mxu0
        %v1910 = vadd.f32 0.0, %v1909
        %v1911 = vpop.f32.mrb[0].mxu0
        %1912 = vmatprep.mubr.bf16.mxu0 %v1733
        %1913 = vmatmul.mubr.bf16.gmra.mrb[0].mxu0 %v1732
        %v1914 = vpop.f32.mrb[0].mxu0
        %v1915 = vadd.f32 0.0, %v1914
        %v1916 = vpop.f32.mrb[0].mxu0
        %v1917 = vpop.f32.mrb[0].mxu0
        %v1918 = vadd.f32 0.0, %v1917
        %v1919 = vpop.f32.mrb[0].mxu0
        %1920 = vmatprep.mubr.bf16.mxu0 %v1735
        %1921 = vmatmul.mubr.bf16.gmra.mrb[0].mxu0 %v1734
        %v1922 = vpop.f32.mrb[0].mxu0
        %v1923 = vadd.f32 0.0, %v1922
        %v1924 = vpop.f32.mrb[0].mxu0
        %v1925 = vpop.f32.mrb[0].mxu0
        %v1926 = vadd.f32 0.0, %v1925
        %v1927 = vpop.f32.mrb[0].mxu0
        %1928 = vdwg.mxu0
        %v1929 = vpack.c.bf16 %v1870, %v1867
        %v1930 = vpack.c.bf16 %v1878, %v1875
        %v1931 = vpack.c.bf16 %v1886, %v1883
        %v1932 = vpack.c.bf16 %v1894, %v1891
        %v1933 = vpack.c.bf16 %v1902, %v1899
        %v1934 = vpack.c.bf16 %v1910, %v1907
        %v1935 = vpack.c.bf16 %v1918, %v1915
        %v1936 = vpack.c.bf16 %v1926, %v1923
        %1937 = vst.msk [vmem:[#allocation3] sm:$0xff] %vm1294, %v1929
        %1938 = vst.msk [vmem:[#allocation3 + $0x8] sm:$0xff] %vm1294, %v1930
        %1939 = vst.msk [vmem:[#allocation3 + $0x10] sm:$0xff] %vm1294, %v1931
        %1940 = vst.msk [vmem:[#allocation3 + $0x18] sm:$0xff] %vm1294, %v1932
        %1941 = vst.msk [vmem:[#allocation3 + $0x20] sm:$0xff] %vm1294, %v1933
        %1942 = vst.msk [vmem:[#allocation3 + $0x28] sm:$0xff] %vm1294, %v1934
        %1943 = vst.msk [vmem:[#allocation3 + $0x30] sm:$0xff] %vm1294, %v1935
        %1944 = vst.msk [vmem:[#allocation3 + $0x38] sm:$0xff] %vm1294, %v1936
        %v1945 = vld [vmem:[#allocation2] sm:$0xff]
        %v1946 = vld [vmem:[#allocation2 + $0x10] sm:$0xff]
        %v1947 = vld [vmem:[#allocation2 + $0x20] sm:$0xff]
        %v1948 = vld [vmem:[#allocation2 + $0x30] sm:$0xff]
        %v1949 = vld [vmem:[#allocation2 + $0x40] sm:$0xff]
        %v1950 = vld [vmem:[#allocation2 + $0x50] sm:$0xff]
        %v1951 = vld [vmem:[#allocation2 + $0x60] sm:$0xff]
        %v1952 = vld [vmem:[#allocation2 + $0x70] sm:$0xff]
        %v1953 = vld [vmem:[#allocation2 + $0x80] sm:$0xff]
        %v1954 = vld [vmem:[#allocation2 + $0x90] sm:$0xff]
        %v1955 = vld [vmem:[#allocation2 + $0xa0] sm:$0xff]
        %v1956 = vld [vmem:[#allocation2 + $0xb0] sm:$0xff]
        %v1957 = vld [vmem:[#allocation2 + $0xc0] sm:$0xff]
        %v1958 = vld [vmem:[#allocation2 + $0xd0] sm:$0xff]
        %v1959 = vld [vmem:[#allocation2 + $0xe0] sm:$0xff]
        %v1960 = vld [vmem:[#allocation2 + $0xf0] sm:$0xff]
        %v1961 = vld [vmem:[#allocation2 + $0x8] sm:$0xff]
        %v1962 = vld [vmem:[#allocation2 + $0x18] sm:$0xff]
        %v1963 = vld [vmem:[#allocation2 + $0x28] sm:$0xff]
        %v1964 = vld [vmem:[#allocation2 + $0x38] sm:$0xff]
        %v1965 = vld [vmem:[#allocation2 + $0x48] sm:$0xff]
        %v1966 = vld [vmem:[#allocation2 + $0x58] sm:$0xff]
        %v1967 = vld [vmem:[#allocation2 + $0x68] sm:$0xff]
        %v1968 = vld [vmem:[#allocation2 + $0x78] sm:$0xff]
        %v1969 = vld [vmem:[#allocation2 + $0x88] sm:$0xff]
        %v1970 = vld [vmem:[#allocation2 + $0x98] sm:$0xff]
        %v1971 = vld [vmem:[#allocation2 + $0xa8] sm:$0xff]
        %v1972 = vld [vmem:[#allocation2 + $0xb8] sm:$0xff]
        %v1973 = vld [vmem:[#allocation2 + $0xc8] sm:$0xff]
        %v1974 = vld [vmem:[#allocation2 + $0xd8] sm:$0xff]
        %v1975 = vld [vmem:[#allocation2 + $0xe8] sm:$0xff]
        %v1976 = vld [vmem:[#allocation2 + $0xf8] sm:$0xff]
        %1985 = vrot.lane.b32.xlu0 %v1254, 96
        %v1986 = vpop.permute.xlu0 %1985
        %1987 = vrot.lane.b32.xlu0 %v1255, 96
        %v1988 = vpop.permute.xlu0 %1987
        %1989 = vrot.lane.b32.xlu0 %v1256, 96
        %v1990 = vpop.permute.xlu0 %1989
        %1991 = vrot.lane.b32.xlu0 %v1257, 96
        %v1992 = vpop.permute.xlu0 %1991
        %1993 = vrot.lane.b32.xlu0 %v1258, 96
        %v1994 = vpop.permute.xlu0 %1993
        %1995 = vrot.lane.b32.xlu0 %v1259, 96
        %v1996 = vpop.permute.xlu0 %1995
        %1997 = vrot.lane.b32.xlu0 %v1260, 96
        %v1998 = vpop.permute.xlu0 %1997
        %1999 = vrot.lane.b32.xlu0 %v1261, 96
        %v2000 = vpop.permute.xlu0 %1999
        %2017 = vrot.lane.b32.xlu0 %v1945, 96
        %v2018 = vpop.permute.xlu0 %2017
        %2019 = vrot.lane.b32.xlu0 %v1946, 96
        %v2020 = vpop.permute.xlu0 %2019
        %2021 = vrot.lane.b32.xlu0 %v1947, 96
        %v2022 = vpop.permute.xlu0 %2021
        %2023 = vrot.lane.b32.xlu0 %v1948, 96
        %v2024 = vpop.permute.xlu0 %2023
        %2025 = vrot.lane.b32.xlu0 %v1949, 96
        %v2026 = vpop.permute.xlu0 %2025
        %2027 = vrot.lane.b32.xlu0 %v1950, 96
        %v2028 = vpop.permute.xlu0 %2027
        %2029 = vrot.lane.b32.xlu0 %v1951, 96
        %v2030 = vpop.permute.xlu0 %2029
        %2031 = vrot.lane.b32.xlu0 %v1952, 96
        %v2032 = vpop.permute.xlu0 %2031
        %2033 = vrot.lane.b32.xlu0 %v1953, 96
        %v2034 = vpop.permute.xlu0 %2033
        %2035 = vrot.lane.b32.xlu0 %v1954, 96
        %v2036 = vpop.permute.xlu0 %2035
        %2037 = vrot.lane.b32.xlu0 %v1955, 96
        %v2038 = vpop.permute.xlu0 %2037
        %2039 = vrot.lane.b32.xlu0 %v1956, 96
        %v2040 = vpop.permute.xlu0 %2039
        %2041 = vrot.lane.b32.xlu0 %v1957, 96
        %v2042 = vpop.permute.xlu0 %2041
        %2043 = vrot.lane.b32.xlu0 %v1958, 96
        %v2044 = vpop.permute.xlu0 %2043
        %2045 = vrot.lane.b32.xlu0 %v1959, 96
        %v2046 = vpop.permute.xlu0 %2045
        %2047 = vrot.lane.b32.xlu0 %v1960, 96
        %v2048 = vpop.permute.xlu0 %2047
        %v2050 = vsel %vm1294, %v1986, 0
        %v2053 = vsel %vm1294, %v1988, 0
        %v2056 = vsel %vm1294, %v1990, 0
        %v2059 = vsel %vm1294, %v1992, 0
        %v2062 = vsel %vm1294, %v1994, 0
        %v2065 = vsel %vm1294, %v1996, 0
        %v2068 = vsel %vm1294, %v1998, 0
        %v2071 = vsel %vm1294, %v2000, 0
        %v2074 = vsel %vm1294, %v2018, 0
        %v2077 = vsel %vm1294, %v2020, 0
        %v2080 = vsel %vm1294, %v2022, 0
        %v2083 = vsel %vm1294, %v2024, 0
        %v2086 = vsel %vm1294, %v2026, 0
        %v2089 = vsel %vm1294, %v2028, 0
        %v2092 = vsel %vm1294, %v2030, 0
        %v2095 = vsel %vm1294, %v2032, 0
        %v2098 = vsel %vm1294, %v2034, 0
        %v2101 = vsel %vm1294, %v2036, 0
        %v2104 = vsel %vm1294, %v2038, 0
        %v2107 = vsel %vm1294, %v2040, 0
        %v2110 = vsel %vm1294, %v2042, 0
        %v2113 = vsel %vm1294, %v2044, 0
        %v2116 = vsel %vm1294, %v2046, 0
        %v2119 = vsel %vm1294, %v2048, 0
        %2121 = vmatprep.subr.bf16.mxu0 0
        %2122 = vmatpush1.bf16.xpose.msra.mxu0 %v2074
        %2123 = vmatprep.subr.bf16.mxu0 0
        %2124 = vmatpush1.bf16.xpose.msra.mxu0 %v2077
        %2125 = vmatprep.subr.bf16.mxu0 0
        %2126 = vmatpush1.bf16.xpose.msra.mxu0 %v2080
        %2127 = vmatprep.subr.bf16.mxu0 0
        %2128 = vmatpush1.bf16.xpose.msra.mxu0 %v2083
        %2129 = vmatprep.subr.bf16.mxu0 0
        %2130 = vmatpush1.bf16.xpose.msra.mxu0 %v2086
        %2131 = vmatprep.subr.bf16.mxu0 0
        %2132 = vmatpush1.bf16.xpose.msra.mxu0 %v2089
        %2133 = vmatprep.subr.bf16.mxu0 0
        %2134 = vmatpush1.bf16.xpose.msra.mxu0 %v2092
        %2135 = vmatprep.subr.bf16.mxu0 0
        %2136 = vmatpush1.bf16.xpose.msra.mxu0 %v2095
        %2137 = vmatprep.subr.bf16.mxu0 0
        %2138 = vmatpush1.bf16.xpose.msra.mxu0 %v2098
        %2139 = vmatprep.subr.bf16.mxu0 0
        %2140 = vmatpush1.bf16.xpose.msra.mxu0 %v2101
        %2141 = vmatprep.subr.bf16.mxu0 0
        %2142 = vmatpush1.bf16.xpose.msra.mxu0 %v2104
        %2143 = vmatprep.subr.bf16.mxu0 0
        %2144 = vmatpush1.bf16.xpose.msra.mxu0 %v2107
        %2145 = vmatprep.subr.bf16.mxu0 0
        %2146 = vmatpush1.bf16.xpose.msra.mxu0 %v2110
        %2147 = vmatprep.subr.bf16.mxu0 0
        %2148 = vmatpush1.bf16.xpose.msra.mxu0 %v2113
        %2149 = vmatprep.subr.bf16.mxu0 0
        %2150 = vmatpush1.bf16.xpose.msra.mxu0 %v2116
        %2151 = vmatprep.subr.bf16.mxu0 0
        %2152 = vmatpush1.bf16.xpose.msra.mxu0 %v2119
        %2153 = vmatprep.mubr.bf16.mxu0 0
        %2154 = vmatmul.mubr.bf16.gmra.mrb[0].mxu0 %v2050
        %v2155 = vpop.f32.mrb[0].mxu0
        %v2156 = vadd.f32 0.0, %v2155
        %v2157 = vpop.f32.mrb[0].mxu0
        %v2158 = vadd.f32 0.0, %v2157
        %v2159 = vpop.f32.mrb[0].mxu0
        %v2160 = vadd.f32 0.0, %v2159
        %v2161 = vpop.f32.mrb[0].mxu0
        %v2162 = vadd.f32 0.0, %v2161
        %2163 = vmatprep.mubr.bf16.mxu0 0
        %2164 = vmatmul.mubr.bf16.gmra.mrb[0].mxu0 %v2053
        %v2165 = vpop.f32.mrb[0].mxu0
        %v2166 = vadd.f32 0.0, %v2165
        %v2167 = vpop.f32.mrb[0].mxu0
        %v2168 = vadd.f32 0.0, %v2167
        %v2169 = vpop.f32.mrb[0].mxu0
        %v2170 = vadd.f32 0.0, %v2169
        %v2171 = vpop.f32.mrb[0].mxu0
        %v2172 = vadd.f32 0.0, %v2171
        %2173 = vmatprep.mubr.bf16.mxu0 0
        %2174 = vmatmul.mubr.bf16.gmra.mrb[0].mxu0 %v2056
        %v2175 = vpop.f32.mrb[0].mxu0
        %v2176 = vadd.f32 0.0, %v2175
        %v2177 = vpop.f32.mrb[0].mxu0
        %v2178 = vadd.f32 0.0, %v2177
        %v2179 = vpop.f32.mrb[0].mxu0
        %v2180 = vadd.f32 0.0, %v2179
        %v2181 = vpop.f32.mrb[0].mxu0
        %v2182 = vadd.f32 0.0, %v2181
        %2183 = vmatprep.mubr.bf16.mxu0 0
        %2184 = vmatmul.mubr.bf16.gmra.mrb[0].mxu0 %v2059
        %v2185 = vpop.f32.mrb[0].mxu0
        %v2186 = vadd.f32 0.0, %v2185
        %v2187 = vpop.f32.mrb[0].mxu0
        %v2188 = vadd.f32 0.0, %v2187
        %v2189 = vpop.f32.mrb[0].mxu0
        %v2190 = vadd.f32 0.0, %v2189
        %v2191 = vpop.f32.mrb[0].mxu0
        %v2192 = vadd.f32 0.0, %v2191
        %2193 = vmatprep.mubr.bf16.mxu0 0
        %2194 = vmatmul.mubr.bf16.gmra.mrb[0].mxu0 %v2062
        %v2195 = vpop.f32.mrb[0].mxu0
        %v2196 = vadd.f32 0.0, %v2195
        %v2197 = vpop.f32.mrb[0].mxu0
        %v2198 = vadd.f32 0.0, %v2197
        %v2199 = vpop.f32.mrb[0].mxu0
        %v2200 = vadd.f32 0.0, %v2199
        %v2201 = vpop.f32.mrb[0].mxu0
        %v2202 = vadd.f32 0.0, %v2201
        %2203 = vmatprep.mubr.bf16.mxu0 0
        %2204 = vmatmul.mubr.bf16.gmra.mrb[0].mxu0 %v2065
        %v2205 = vpop.f32.mrb[0].mxu0
        %v2206 = vadd.f32 0.0, %v2205
        %v2207 = vpop.f32.mrb[0].mxu0
        %v2208 = vadd.f32 0.0, %v2207
        %v2209 = vpop.f32.mrb[0].mxu0
        %v2210 = vadd.f32 0.0, %v2209
        %v2211 = vpop.f32.mrb[0].mxu0
        %v2212 = vadd.f32 0.0, %v2211
        %2213 = vmatprep.mubr.bf16.mxu0 0
        %2214 = vmatmul.mubr.bf16.gmra.mrb[0].mxu0 %v2068
        %v2215 = vpop.f32.mrb[0].mxu0
        %v2216 = vadd.f32 0.0, %v2215
        %v2217 = vpop.f32.mrb[0].mxu0
        %v2218 = vadd.f32 0.0, %v2217
        %v2219 = vpop.f32.mrb[0].mxu0
        %v2220 = vadd.f32 0.0, %v2219
        %v2221 = vpop.f32.mrb[0].mxu0
        %v2222 = vadd.f32 0.0, %v2221
        %2223 = vmatprep.mubr.bf16.mxu0 0
        %2224 = vmatmul.mubr.bf16.gmra.mrb[0].mxu0 %v2071
        %v2225 = vpop.f32.mrb[0].mxu0
        %v2226 = vadd.f32 0.0, %v2225
        %v2227 = vpop.f32.mrb[0].mxu0
        %v2228 = vadd.f32 0.0, %v2227
        %v2229 = vpop.f32.mrb[0].mxu0
        %v2230 = vadd.f32 0.0, %v2229
        %v2231 = vpop.f32.mrb[0].mxu0
        %v2232 = vadd.f32 0.0, %v2231
        %2233 = vdwg.mxu0
        %v2234 = vmax.f32 %v2156, %v2158
        %2235 = vmax.xlane.f32.xlu0 %v2234
        %v2236 = vpop.xlane.xlu0 %2235
        %v2237 = vmax.f32 %v2160, %v2162
        %2238 = vmax.xlane.f32.xlu0 %v2237
        %v2239 = vpop.xlane.xlu0 %2238
        %v2240 = vmax.f32 %v2166, %v2168
        %2241 = vmax.xlane.f32.xlu0 %v2240
        %v2242 = vpop.xlane.xlu0 %2241
        %v2243 = vmax.f32 %v2170, %v2172
        %2244 = vmax.xlane.f32.xlu0 %v2243
        %v2245 = vpop.xlane.xlu0 %2244
        %v2246 = vmax.f32 %v2176, %v2178
        %2247 = vmax.xlane.f32.xlu0 %v2246
        %v2248 = vpop.xlane.xlu0 %2247
        %v2249 = vmax.f32 %v2180, %v2182
        %2250 = vmax.xlane.f32.xlu0 %v2249
        %v2251 = vpop.xlane.xlu0 %2250
        %v2252 = vmax.f32 %v2186, %v2188
        %2253 = vmax.xlane.f32.xlu0 %v2252
        %v2254 = vpop.xlane.xlu0 %2253
        %v2255 = vmax.f32 %v2190, %v2192
        %2256 = vmax.xlane.f32.xlu0 %v2255
        %v2257 = vpop.xlane.xlu0 %2256
        %v2258 = vmax.f32 %v2196, %v2198
        %2259 = vmax.xlane.f32.xlu0 %v2258
        %v2260 = vpop.xlane.xlu0 %2259
        %v2261 = vmax.f32 %v2200, %v2202
        %2262 = vmax.xlane.f32.xlu0 %v2261
        %v2263 = vpop.xlane.xlu0 %2262
        %v2264 = vmax.f32 %v2206, %v2208
        %2265 = vmax.xlane.f32.xlu0 %v2264
        %v2266 = vpop.xlane.xlu0 %2265
        %v2267 = vmax.f32 %v2210, %v2212
        %2268 = vmax.xlane.f32.xlu0 %v2267
        %v2269 = vpop.xlane.xlu0 %2268
        %v2270 = vmax.f32 %v2216, %v2218
        %2271 = vmax.xlane.f32.xlu0 %v2270
        %v2272 = vpop.xlane.xlu0 %2271
        %v2273 = vmax.f32 %v2220, %v2222
        %2274 = vmax.xlane.f32.xlu0 %v2273
        %v2275 = vpop.xlane.xlu0 %2274
        %v2276 = vmax.f32 %v2226, %v2228
        %2277 = vmax.xlane.f32.xlu0 %v2276
        %v2278 = vpop.xlane.xlu0 %2277
        %v2279 = vmax.f32 %v2230, %v2232
        %2280 = vmax.xlane.f32.xlu0 %v2279
        %v2281 = vpop.xlane.xlu0 %2280
        %v2282 = vsub.f32 %v2156, %v2236
        %v2283 = vsub.f32 %v2158, %v2236
        %v2284 = vsub.f32 %v2160, %v2239
        %v2285 = vsub.f32 %v2162, %v2239
        %v2286 = vsub.f32 %v2166, %v2242
        %v2287 = vsub.f32 %v2168, %v2242
        %v2288 = vsub.f32 %v2170, %v2245
        %v2289 = vsub.f32 %v2172, %v2245
        %v2290 = vsub.f32 %v2176, %v2248
        %v2291 = vsub.f32 %v2178, %v2248
        %v2292 = vsub.f32 %v2180, %v2251
        %v2293 = vsub.f32 %v2182, %v2251
        %v2294 = vsub.f32 %v2186, %v2254
        %v2295 = vsub.f32 %v2188, %v2254
        %v2296 = vsub.f32 %v2190, %v2257
        %v2297 = vsub.f32 %v2192, %v2257
        %v2298 = vsub.f32 %v2196, %v2260
        %v2299 = vsub.f32 %v2198, %v2260
        %v2300 = vsub.f32 %v2200, %v2263
        %v2301 = vsub.f32 %v2202, %v2263
        %v2302 = vsub.f32 %v2206, %v2266
        %v2303 = vsub.f32 %v2208, %v2266
        %v2304 = vsub.f32 %v2210, %v2269
        %v2305 = vsub.f32 %v2212, %v2269
        %v2306 = vsub.f32 %v2216, %v2272
        %v2307 = vsub.f32 %v2218, %v2272
        %v2308 = vsub.f32 %v2220, %v2275
        %v2309 = vsub.f32 %v2222, %v2275
        %v2310 = vsub.f32 %v2226, %v2278
        %v2311 = vsub.f32 %v2228, %v2278
        %v2312 = vsub.f32 %v2230, %v2281
        %v2313 = vsub.f32 %v2232, %v2281
        %v2314 = vmul.f32 %v2282, 1.442695
        %v2315 = vpow.pop %v2314
        %v2316 = vmul.f32 %v2283, 1.442695
        %v2317 = vpow.pop %v2316
        %v2318 = vmul.f32 %v2284, 1.442695
        %v2319 = vpow.pop %v2318
        %v2320 = vmul.f32 %v2285, 1.442695
        %v2321 = vpow.pop %v2320
        %v2322 = vmul.f32 %v2286, 1.442695
        %v2323 = vpow.pop %v2322
        %v2324 = vmul.f32 %v2287, 1.442695
        %v2325 = vpow.pop %v2324
        %v2326 = vmul.f32 %v2288, 1.442695
        %v2327 = vpow.pop %v2326
        %v2328 = vmul.f32 %v2289, 1.442695
        %v2329 = vpow.pop %v2328
        %v2330 = vmul.f32 %v2290, 1.442695
        %v2331 = vpow.pop %v2330
        %v2332 = vmul.f32 %v2291, 1.442695
        %v2333 = vpow.pop %v2332
        %v2334 = vmul.f32 %v2292, 1.442695
        %v2335 = vpow.pop %v2334
        %v2336 = vmul.f32 %v2293, 1.442695
        %v2337 = vpow.pop %v2336
        %v2338 = vmul.f32 %v2294, 1.442695
        %v2339 = vpow.pop %v2338
        %v2340 = vmul.f32 %v2295, 1.442695
        %v2341 = vpow.pop %v2340
        %v2342 = vmul.f32 %v2296, 1.442695
        %v2343 = vpow.pop %v2342
        %v2344 = vmul.f32 %v2297, 1.442695
        %v2345 = vpow.pop %v2344
        %v2346 = vmul.f32 %v2298, 1.442695
        %v2347 = vpow.pop %v2346
        %v2348 = vmul.f32 %v2299, 1.442695
        %v2349 = vpow.pop %v2348
        %v2350 = vmul.f32 %v2300, 1.442695
        %v2351 = vpow.pop %v2350
        %v2352 = vmul.f32 %v2301, 1.442695
        %v2353 = vpow.pop %v2352
        %v2354 = vmul.f32 %v2302, 1.442695
        %v2355 = vpow.pop %v2354
        %v2356 = vmul.f32 %v2303, 1.442695
        %v2357 = vpow.pop %v2356
        %v2358 = vmul.f32 %v2304, 1.442695
        %v2359 = vpow.pop %v2358
        %v2360 = vmul.f32 %v2305, 1.442695
        %v2361 = vpow.pop %v2360
        %v2362 = vmul.f32 %v2306, 1.442695
        %v2363 = vpow.pop %v2362
        %v2364 = vmul.f32 %v2307, 1.442695
        %v2365 = vpow.pop %v2364
        %v2366 = vmul.f32 %v2308, 1.442695
        %v2367 = vpow.pop %v2366
        %v2368 = vmul.f32 %v2309, 1.442695
        %v2369 = vpow.pop %v2368
        %v2370 = vmul.f32 %v2310, 1.442695
        %v2371 = vpow.pop %v2370
        %v2372 = vmul.f32 %v2311, 1.442695
        %v2373 = vpow.pop %v2372
        %v2374 = vmul.f32 %v2312, 1.442695
        %v2375 = vpow.pop %v2374
        %v2376 = vmul.f32 %v2313, 1.442695
        %v2377 = vpow.pop %v2376
        %v2378 = vadd.f32 %v2315, %v2317
        %2379 = vadd.xlane.f32.xlu0 %v2378
        %v2380 = vpop.xlane.xlu0 %2379
        %v2381 = vadd.f32 %v2319, %v2321
        %2382 = vadd.xlane.f32.xlu0 %v2381
        %v2383 = vpop.xlane.xlu0 %2382
        %v2384 = vadd.f32 %v2323, %v2325
        %2385 = vadd.xlane.f32.xlu0 %v2384
        %v2386 = vpop.xlane.xlu0 %2385
        %v2387 = vadd.f32 %v2327, %v2329
        %2388 = vadd.xlane.f32.xlu0 %v2387
        %v2389 = vpop.xlane.xlu0 %2388
        %v2390 = vadd.f32 %v2331, %v2333
        %2391 = vadd.xlane.f32.xlu0 %v2390
        %v2392 = vpop.xlane.xlu0 %2391
        %v2393 = vadd.f32 %v2335, %v2337
        %2394 = vadd.xlane.f32.xlu0 %v2393
        %v2395 = vpop.xlane.xlu0 %2394
        %v2396 = vadd.f32 %v2339, %v2341
        %2397 = vadd.xlane.f32.xlu0 %v2396
        %v2398 = vpop.xlane.xlu0 %2397
        %v2399 = vadd.f32 %v2343, %v2345
        %2400 = vadd.xlane.f32.xlu0 %v2399
        %v2401 = vpop.xlane.xlu0 %2400
        %v2402 = vadd.f32 %v2347, %v2349
        %2403 = vadd.xlane.f32.xlu0 %v2402
        %v2404 = vpop.xlane.xlu0 %2403
        %v2405 = vadd.f32 %v2351, %v2353
        %2406 = vadd.xlane.f32.xlu0 %v2405
        %v2407 = vpop.xlane.xlu0 %2406
        %v2408 = vadd.f32 %v2355, %v2357
        %2409 = vadd.xlane.f32.xlu0 %v2408
        %v2410 = vpop.xlane.xlu0 %2409
        %v2411 = vadd.f32 %v2359, %v2361
        %2412 = vadd.xlane.f32.xlu0 %v2411
        %v2413 = vpop.xlane.xlu0 %2412
        %v2414 = vadd.f32 %v2363, %v2365
        %2415 = vadd.xlane.f32.xlu0 %v2414
        %v2416 = vpop.xlane.xlu0 %2415
        %v2417 = vadd.f32 %v2367, %v2369
        %2418 = vadd.xlane.f32.xlu0 %v2417
        %v2419 = vpop.xlane.xlu0 %2418
        %v2420 = vadd.f32 %v2371, %v2373
        %2421 = vadd.xlane.f32.xlu0 %v2420
        %v2422 = vpop.xlane.xlu0 %2421
        %v2423 = vadd.f32 %v2375, %v2377
        %2424 = vadd.xlane.f32.xlu0 %v2423
        %v2425 = vpop.xlane.xlu0 %2424
        %v2426 = vrcp.pop %v2380
        %v2427 = vrcp.pop %v2383
        %v2428 = vrcp.pop %v2386
        %v2429 = vrcp.pop %v2389
        %v2430 = vrcp.pop %v2392
        %v2431 = vrcp.pop %v2395
        %v2432 = vrcp.pop %v2398
        %v2433 = vrcp.pop %v2401
        %v2434 = vrcp.pop %v2404
        %v2435 = vrcp.pop %v2407
        %v2436 = vrcp.pop %v2410
        %v2437 = vrcp.pop %v2413
        %v2438 = vrcp.pop %v2416
        %v2439 = vrcp.pop %v2419
        %v2440 = vrcp.pop %v2422
        %v2441 = vrcp.pop %v2425
        %v2442 = vmul.f32 %v2315, %v2426
        %v2443 = vmul.f32 %v2317, %v2426
        %v2444 = vmul.f32 %v2319, %v2427
        %v2445 = vmul.f32 %v2321, %v2427
        %v2446 = vmul.f32 %v2323, %v2428
        %v2447 = vmul.f32 %v2325, %v2428
        %v2448 = vmul.f32 %v2327, %v2429
        %v2449 = vmul.f32 %v2329, %v2429
        %v2450 = vmul.f32 %v2331, %v2430
        %v2451 = vmul.f32 %v2333, %v2430
        %v2452 = vmul.f32 %v2335, %v2431
        %v2453 = vmul.f32 %v2337, %v2431
        %v2454 = vmul.f32 %v2339, %v2432
        %v2455 = vmul.f32 %v2341, %v2432
        %v2456 = vmul.f32 %v2343, %v2433
        %v2457 = vmul.f32 %v2345, %v2433
        %v2458 = vmul.f32 %v2347, %v2434
        %v2459 = vmul.f32 %v2349, %v2434
        %v2460 = vmul.f32 %v2351, %v2435
        %v2461 = vmul.f32 %v2353, %v2435
        %v2462 = vmul.f32 %v2355, %v2436
        %v2463 = vmul.f32 %v2357, %v2436
        %v2464 = vmul.f32 %v2359, %v2437
        %v2465 = vmul.f32 %v2361, %v2437
        %v2466 = vmul.f32 %v2363, %v2438
        %v2467 = vmul.f32 %v2365, %v2438
        %v2468 = vmul.f32 %v2367, %v2439
        %v2469 = vmul.f32 %v2369, %v2439
        %v2470 = vmul.f32 %v2371, %v2440
        %v2471 = vmul.f32 %v2373, %v2440
        %v2472 = vmul.f32 %v2375, %v2441
        %v2473 = vmul.f32 %v2377, %v2441
        %v2474 = vpack.c.bf16 %v2444, %v2442
        %v2475 = vpack.c.bf16 %v2445, %v2443
        %v2476 = vpack.c.bf16 %v2448, %v2446
        %v2477 = vpack.c.bf16 %v2449, %v2447
        %v2478 = vpack.c.bf16 %v2452, %v2450
        %v2479 = vpack.c.bf16 %v2453, %v2451
        %v2480 = vpack.c.bf16 %v2456, %v2454
        %v2481 = vpack.c.bf16 %v2457, %v2455
        %v2482 = vpack.c.bf16 %v2460, %v2458
        %v2483 = vpack.c.bf16 %v2461, %v2459
        %v2484 = vpack.c.bf16 %v2464, %v2462
        %v2485 = vpack.c.bf16 %v2465, %v2463
        %v2486 = vpack.c.bf16 %v2468, %v2466
        %v2487 = vpack.c.bf16 %v2469, %v2467
        %v2488 = vpack.c.bf16 %v2472, %v2470
        %v2489 = vpack.c.bf16 %v2473, %v2471
        %v2506 = vunpack.c.l.b16 %v2474
        %v2507 = vunpack.c.l.b16 %v2475
        %v2508 = vunpack.c.h.b16 %v2474
        %v2509 = vunpack.c.h.b16 %v2475
        %v2510 = vunpack.c.l.b16 %v2476
        %v2511 = vunpack.c.l.b16 %v2477
        %v2512 = vunpack.c.h.b16 %v2476
        %v2513 = vunpack.c.h.b16 %v2477
        %v2514 = vunpack.c.l.b16 %v2478
        %v2515 = vunpack.c.l.b16 %v2479
        %v2516 = vunpack.c.h.b16 %v2478
        %v2517 = vunpack.c.h.b16 %v2479
        %v2518 = vunpack.c.l.b16 %v2480
        %v2519 = vunpack.c.l.b16 %v2481
        %v2520 = vunpack.c.h.b16 %v2480
        %v2521 = vunpack.c.h.b16 %v2481
        %v2522 = vunpack.c.l.b16 %v2482
        %v2523 = vunpack.c.l.b16 %v2483
        %v2524 = vunpack.c.h.b16 %v2482
        %v2525 = vunpack.c.h.b16 %v2483
        %v2526 = vunpack.c.l.b16 %v2484
        %v2527 = vunpack.c.l.b16 %v2485
        %v2528 = vunpack.c.h.b16 %v2484
        %v2529 = vunpack.c.h.b16 %v2485
        %v2530 = vunpack.c.l.b16 %v2486
        %v2531 = vunpack.c.l.b16 %v2487
        %v2532 = vunpack.c.h.b16 %v2486
        %v2533 = vunpack.c.h.b16 %v2487
        %v2534 = vunpack.c.l.b16 %v2488
        %v2535 = vunpack.c.l.b16 %v2489
        %v2536 = vunpack.c.h.b16 %v2488
        %v2537 = vunpack.c.h.b16 %v2489
        %v2538 = vpack.c.b16 %v2507, %v2506
        %v2539 = vpack.c.b16 %v2509, %v2508
        %v2540 = vpack.c.b16 %v2511, %v2510
        %v2541 = vpack.c.b16 %v2513, %v2512
        %v2542 = vpack.c.b16 %v2515, %v2514
        %v2543 = vpack.c.b16 %v2517, %v2516
        %v2544 = vpack.c.b16 %v2519, %v2518
        %v2545 = vpack.c.b16 %v2521, %v2520
        %v2546 = vpack.c.b16 %v2523, %v2522
        %v2547 = vpack.c.b16 %v2525, %v2524
        %v2548 = vpack.c.b16 %v2527, %v2526
        %v2549 = vpack.c.b16 %v2529, %v2528
        %v2550 = vpack.c.b16 %v2531, %v2530
        %v2551 = vpack.c.b16 %v2533, %v2532
        %v2552 = vpack.c.b16 %v2535, %v2534
        %v2553 = vpack.c.b16 %v2537, %v2536
        %s2570 = scalar_lea.vmem %s639, 128 [#allocation16]
        %2571 = vst [vmem:[%s2570] sm:$0xff] %v2538
        %2572 = vst [vmem:[%s2570 + $0x8] sm:$0xff] %v2539
        %2573 = vst [vmem:[%s2570 + $0x10] sm:$0xff] %v2540
        %2574 = vst [vmem:[%s2570 + $0x18] sm:$0xff] %v2541
        %2575 = vst [vmem:[%s2570 + $0x20] sm:$0xff] %v2542
        %2576 = vst [vmem:[%s2570 + $0x28] sm:$0xff] %v2543
        %2577 = vst [vmem:[%s2570 + $0x30] sm:$0xff] %v2544
        %2578 = vst [vmem:[%s2570 + $0x38] sm:$0xff] %v2545
        %2579 = vst [vmem:[%s2570 + $0x40] sm:$0xff] %v2546
        %2580 = vst [vmem:[%s2570 + $0x48] sm:$0xff] %v2547
        %2581 = vst [vmem:[%s2570 + $0x50] sm:$0xff] %v2548
        %2582 = vst [vmem:[%s2570 + $0x58] sm:$0xff] %v2549
        %2583 = vst [vmem:[%s2570 + $0x60] sm:$0xff] %v2550
        %2584 = vst [vmem:[%s2570 + $0x68] sm:$0xff] %v2551
        %2585 = vst [vmem:[%s2570 + $0x70] sm:$0xff] %v2552
        %2586 = vst [vmem:[%s2570 + $0x78] sm:$0xff] %v2553
        %2603 = vrot.lane.b32.xlu0 %v1961, 96
        %v2604 = vpop.permute.xlu0 %2603
        %2605 = vrot.lane.b32.xlu0 %v1962, 96
        %v2606 = vpop.permute.xlu0 %2605
        %2607 = vrot.lane.b32.xlu0 %v1963, 96
        %v2608 = vpop.permute.xlu0 %2607
        %2609 = vrot.lane.b32.xlu0 %v1964, 96
        %v2610 = vpop.permute.xlu0 %2609
        %2611 = vrot.lane.b32.xlu0 %v1965, 96
        %v2612 = vpop.permute.xlu0 %2611
        %2613 = vrot.lane.b32.xlu0 %v1966, 96
        %v2614 = vpop.permute.xlu0 %2613
        %2615 = vrot.lane.b32.xlu0 %v1967, 96
        %v2616 = vpop.permute.xlu0 %2615
        %2617 = vrot.lane.b32.xlu0 %v1968, 96
        %v2618 = vpop.permute.xlu0 %2617
        %2619 = vrot.lane.b32.xlu0 %v1969, 96
        %v2620 = vpop.permute.xlu0 %2619
        %2621 = vrot.lane.b32.xlu0 %v1970, 96
        %v2622 = vpop.permute.xlu0 %2621
        %2623 = vrot.lane.b32.xlu0 %v1971, 96
        %v2624 = vpop.permute.xlu0 %2623
        %2625 = vrot.lane.b32.xlu0 %v1972, 96
        %v2626 = vpop.permute.xlu0 %2625
        %2627 = vrot.lane.b32.xlu0 %v1973, 96
        %v2628 = vpop.permute.xlu0 %2627
        %2629 = vrot.lane.b32.xlu0 %v1974, 96
        %v2630 = vpop.permute.xlu0 %2629
        %2631 = vrot.lane.b32.xlu0 %v1975, 96
        %v2632 = vpop.permute.xlu0 %2631
        %2633 = vrot.lane.b32.xlu0 %v1976, 96
        %v2634 = vpop.permute.xlu0 %2633
        %2651 = vmatprep.subr.bf16.mxu0 0
        %2652 = vmatpush1.bf16.msra.mxu0 %v2604
        %2653 = vmatprep.subr.bf16.mxu0 0
        %2654 = vmatpush1.bf16.msra.mxu0 %v2606
        %2655 = vmatprep.subr.bf16.mxu0 0
        %2656 = vmatpush1.bf16.msra.mxu0 %v2608
        %2657 = vmatprep.subr.bf16.mxu0 0
        %2658 = vmatpush1.bf16.msra.mxu0 %v2610
        %2659 = vmatprep.subr.bf16.mxu0 0
        %2660 = vmatpush1.bf16.msra.mxu0 %v2612
        %2661 = vmatprep.subr.bf16.mxu0 0
        %2662 = vmatpush1.bf16.msra.mxu0 %v2614
        %2663 = vmatprep.subr.bf16.mxu0 0
        %2664 = vmatpush1.bf16.msra.mxu0 %v2616
        %2665 = vmatprep.subr.bf16.mxu0 0
        %2666 = vmatpush1.bf16.msra.mxu0 %v2618
        %2667 = vmatprep.subr.bf16.mxu0 0
        %2668 = vmatpush1.bf16.msra.mxu0 %v2620
        %2669 = vmatprep.subr.bf16.mxu0 0
        %2670 = vmatpush1.bf16.msra.mxu0 %v2622
        %2671 = vmatprep.subr.bf16.mxu0 0
        %2672 = vmatpush1.bf16.msra.mxu0 %v2624
        %2673 = vmatprep.subr.bf16.mxu0 0
        %2674 = vmatpush1.bf16.msra.mxu0 %v2626
        %2675 = vmatprep.subr.bf16.mxu0 0
        %2676 = vmatpush1.bf16.msra.mxu0 %v2628
        %2677 = vmatprep.subr.bf16.mxu0 0
        %2678 = vmatpush1.bf16.msra.mxu0 %v2630
        %2679 = vmatprep.subr.bf16.mxu0 0
        %2680 = vmatpush1.bf16.msra.mxu0 %v2632
        %2681 = vmatprep.subr.bf16.mxu0 0
        %2682 = vmatpush1.bf16.msra.mxu0 %v2634
        %2683 = vmatprep.mubr.bf16.mxu0 %v2475
        %2684 = vmatmul.mubr.bf16.gmra.mrb[0].mxu0 %v2474
        %v2685 = vpop.f32.mrb[0].mxu0
        %v2686 = vadd.f32 0.0, %v2685
        %v2687 = vpop.f32.mrb[0].mxu0
        %v2688 = vpop.f32.mrb[0].mxu0
        %v2689 = vadd.f32 0.0, %v2688
        %v2690 = vpop.f32.mrb[0].mxu0
        %2691 = vmatprep.mubr.bf16.mxu0 %v2477
        %2692 = vmatmul.mubr.bf16.gmra.mrb[0].mxu0 %v2476
        %v2693 = vpop.f32.mrb[0].mxu0
        %v2694 = vadd.f32 0.0, %v2693
        %v2695 = vpop.f32.mrb[0].mxu0
        %v2696 = vpop.f32.mrb[0].mxu0
        %v2697 = vadd.f32 0.0, %v2696
        %v2698 = vpop.f32.mrb[0].mxu0
        %2699 = vmatprep.mubr.bf16.mxu0 %v2479
        %2700 = vmatmul.mubr.bf16.gmra.mrb[0].mxu0 %v2478
        %v2701 = vpop.f32.mrb[0].mxu0
        %v2702 = vadd.f32 0.0, %v2701
        %v2703 = vpop.f32.mrb[0].mxu0
        %v2704 = vpop.f32.mrb[0].mxu0
        %v2705 = vadd.f32 0.0, %v2704
        %v2706 = vpop.f32.mrb[0].mxu0
        %2707 = vmatprep.mubr.bf16.mxu0 %v2481
        %2708 = vmatmul.mubr.bf16.gmra.mrb[0].mxu0 %v2480
        %v2709 = vpop.f32.mrb[0].mxu0
        %v2710 = vadd.f32 0.0, %v2709
        %v2711 = vpop.f32.mrb[0].mxu0
        %v2712 = vpop.f32.mrb[0].mxu0
        %v2713 = vadd.f32 0.0, %v2712
        %v2714 = vpop.f32.mrb[0].mxu0
        %2715 = vmatprep.mubr.bf16.mxu0 %v2483
        %2716 = vmatmul.mubr.bf16.gmra.mrb[0].mxu0 %v2482
        %v2717 = vpop.f32.mrb[0].mxu0
        %v2718 = vadd.f32 0.0, %v2717
        %v2719 = vpop.f32.mrb[0].mxu0
        %v2720 = vpop.f32.mrb[0].mxu0
        %v2721 = vadd.f32 0.0, %v2720
        %v2722 = vpop.f32.mrb[0].mxu0
        %2723 = vmatprep.mubr.bf16.mxu0 %v2485
        %2724 = vmatmul.mubr.bf16.gmra.mrb[0].mxu0 %v2484
        %v2725 = vpop.f32.mrb[0].mxu0
        %v2726 = vadd.f32 0.0, %v2725
        %v2727 = vpop.f32.mrb[0].mxu0
        %v2728 = vpop.f32.mrb[0].mxu0
        %v2729 = vadd.f32 0.0, %v2728
        %v2730 = vpop.f32.mrb[0].mxu0
        %2731 = vmatprep.mubr.bf16.mxu0 %v2487
        %2732 = vmatmul.mubr.bf16.gmra.mrb[0].mxu0 %v2486
        %v2733 = vpop.f32.mrb[0].mxu0
        %v2734 = vadd.f32 0.0, %v2733
        %v2735 = vpop.f32.mrb[0].mxu0
        %v2736 = vpop.f32.mrb[0].mxu0
        %v2737 = vadd.f32 0.0, %v2736
        %v2738 = vpop.f32.mrb[0].mxu0
        %2739 = vmatprep.mubr.bf16.mxu0 %v2489
        %2740 = vmatmul.mubr.bf16.gmra.mrb[0].mxu0 %v2488
        %v2741 = vpop.f32.mrb[0].mxu0
        %v2742 = vadd.f32 0.0, %v2741
        %v2743 = vpop.f32.mrb[0].mxu0
        %v2744 = vpop.f32.mrb[0].mxu0
        %v2745 = vadd.f32 0.0, %v2744
        %v2746 = vpop.f32.mrb[0].mxu0
        %2747 = vdwg.mxu0
        %v2748 = vpack.c.bf16 %v2689, %v2686
        %v2749 = vpack.c.bf16 %v2697, %v2694
        %v2750 = vpack.c.bf16 %v2705, %v2702
        %v2751 = vpack.c.bf16 %v2713, %v2710
        %v2752 = vpack.c.bf16 %v2721, %v2718
        %v2753 = vpack.c.bf16 %v2729, %v2726
        %v2754 = vpack.c.bf16 %v2737, %v2734
        %v2755 = vpack.c.bf16 %v2745, %v2742
        %2764 = vrot.lane.b32.xlu0 %v2748, 32
        %v2765 = vpop.permute.xlu0 %2764
        %2766 = vrot.lane.b32.xlu0 %v2749, 32
        %v2767 = vpop.permute.xlu0 %2766
        %2768 = vrot.lane.b32.xlu0 %v2750, 32
        %v2769 = vpop.permute.xlu0 %2768
        %2770 = vrot.lane.b32.xlu0 %v2751, 32
        %v2771 = vpop.permute.xlu0 %2770
        %2772 = vrot.lane.b32.xlu0 %v2752, 32
        %v2773 = vpop.permute.xlu0 %2772
        %2774 = vrot.lane.b32.xlu0 %v2753, 32
        %v2775 = vpop.permute.xlu0 %2774
        %2776 = vrot.lane.b32.xlu0 %v2754, 32
        %v2777 = vpop.permute.xlu0 %2776
        %2778 = vrot.lane.b32.xlu0 %v2755, 32
        %v2779 = vpop.permute.xlu0 %2778
        %vm2788 = vcmask 523520
        %2789 = vst.msk [vmem:[#allocation3] sm:$0xff] %vm2788, %v2765
        %2790 = vst.msk [vmem:[#allocation3 + $0x8] sm:$0xff] %vm2788, %v2767
        %2791 = vst.msk [vmem:[#allocation3 + $0x10] sm:$0xff] %vm2788, %v2769
        %2792 = vst.msk [vmem:[#allocation3 + $0x18] sm:$0xff] %vm2788, %v2771
        %2793 = vst.msk [vmem:[#allocation3 + $0x20] sm:$0xff] %vm2788, %v2773
        %2794 = vst.msk [vmem:[#allocation3 + $0x28] sm:$0xff] %vm2788, %v2775
        %2795 = vst.msk [vmem:[#allocation3 + $0x30] sm:$0xff] %vm2788, %v2777
        %2796 = vst.msk [vmem:[#allocation3 + $0x38] sm:$0xff] %vm2788, %v2779
        %v2797 = vld [vmem:[#allocation2] sm:$0xff]
        %v2798 = vld [vmem:[#allocation2 + $0x10] sm:$0xff]
        %v2799 = vld [vmem:[#allocation2 + $0x20] sm:$0xff]
        %v2800 = vld [vmem:[#allocation2 + $0x30] sm:$0xff]
        %v2801 = vld [vmem:[#allocation2 + $0x40] sm:$0xff]
        %v2802 = vld [vmem:[#allocation2 + $0x50] sm:$0xff]
        %v2803 = vld [vmem:[#allocation2 + $0x60] sm:$0xff]
        %v2804 = vld [vmem:[#allocation2 + $0x70] sm:$0xff]
        %v2805 = vld [vmem:[#allocation2 + $0x80] sm:$0xff]
        %v2806 = vld [vmem:[#allocation2 + $0x90] sm:$0xff]
        %v2807 = vld [vmem:[#allocation2 + $0xa0] sm:$0xff]
        %v2808 = vld [vmem:[#allocation2 + $0xb0] sm:$0xff]
        %v2809 = vld [vmem:[#allocation2 + $0xc0] sm:$0xff]
        %v2810 = vld [vmem:[#allocation2 + $0xd0] sm:$0xff]
        %v2811 = vld [vmem:[#allocation2 + $0xe0] sm:$0xff]
        %v2812 = vld [vmem:[#allocation2 + $0xf0] sm:$0xff]
        %v2813 = vld [vmem:[#allocation2 + $0x8] sm:$0xff]
        %v2814 = vld [vmem:[#allocation2 + $0x18] sm:$0xff]
        %v2815 = vld [vmem:[#allocation2 + $0x28] sm:$0xff]
        %v2816 = vld [vmem:[#allocation2 + $0x38] sm:$0xff]
        %v2817 = vld [vmem:[#allocation2 + $0x48] sm:$0xff]
        %v2818 = vld [vmem:[#allocation2 + $0x58] sm:$0xff]
        %v2819 = vld [vmem:[#allocation2 + $0x68] sm:$0xff]
        %v2820 = vld [vmem:[#allocation2 + $0x78] sm:$0xff]
        %v2821 = vld [vmem:[#allocation2 + $0x88] sm:$0xff]
        %v2822 = vld [vmem:[#allocation2 + $0x98] sm:$0xff]
        %v2823 = vld [vmem:[#allocation2 + $0xa8] sm:$0xff]
        %v2824 = vld [vmem:[#allocation2 + $0xb8] sm:$0xff]
        %v2825 = vld [vmem:[#allocation2 + $0xc8] sm:$0xff]
        %v2826 = vld [vmem:[#allocation2 + $0xd8] sm:$0xff]
        %v2827 = vld [vmem:[#allocation2 + $0xe8] sm:$0xff]
        %v2828 = vld [vmem:[#allocation2 + $0xf8] sm:$0xff]
        %2829 = vrot.lane.b32.xlu0 %v1254, 64
        %v2830 = vpop.permute.xlu0 %2829
        %2831 = vrot.lane.b32.xlu0 %v1255, 64
        %v2832 = vpop.permute.xlu0 %2831
        %2833 = vrot.lane.b32.xlu0 %v1256, 64
        %v2834 = vpop.permute.xlu0 %2833
        %2835 = vrot.lane.b32.xlu0 %v1257, 64
        %v2836 = vpop.permute.xlu0 %2835
        %2837 = vrot.lane.b32.xlu0 %v1258, 64
        %v2838 = vpop.permute.xlu0 %2837
        %2839 = vrot.lane.b32.xlu0 %v1259, 64
        %v2840 = vpop.permute.xlu0 %2839
        %2841 = vrot.lane.b32.xlu0 %v1260, 64
        %v2842 = vpop.permute.xlu0 %2841
        %2843 = vrot.lane.b32.xlu0 %v1261, 64
        %v2844 = vpop.permute.xlu0 %2843
        %2861 = vrot.lane.b32.xlu0 %v2797, 64
        %v2862 = vpop.permute.xlu0 %2861
        %2863 = vrot.lane.b32.xlu0 %v2798, 64
        %v2864 = vpop.permute.xlu0 %2863
        %2865 = vrot.lane.b32.xlu0 %v2799, 64
        %v2866 = vpop.permute.xlu0 %2865
        %2867 = vrot.lane.b32.xlu0 %v2800, 64
        %v2868 = vpop.permute.xlu0 %2867
        %2869 = vrot.lane.b32.xlu0 %v2801, 64
        %v2870 = vpop.permute.xlu0 %2869
        %2871 = vrot.lane.b32.xlu0 %v2802, 64
        %v2872 = vpop.permute.xlu0 %2871
        %2873 = vrot.lane.b32.xlu0 %v2803, 64
        %v2874 = vpop.permute.xlu0 %2873
        %2875 = vrot.lane.b32.xlu0 %v2804, 64
        %v2876 = vpop.permute.xlu0 %2875
        %2877 = vrot.lane.b32.xlu0 %v2805, 64
        %v2878 = vpop.permute.xlu0 %2877
        %2879 = vrot.lane.b32.xlu0 %v2806, 64
        %v2880 = vpop.permute.xlu0 %2879
        %2881 = vrot.lane.b32.xlu0 %v2807, 64
        %v2882 = vpop.permute.xlu0 %2881
        %2883 = vrot.lane.b32.xlu0 %v2808, 64
        %v2884 = vpop.permute.xlu0 %2883
        %2885 = vrot.lane.b32.xlu0 %v2809, 64
        %v2886 = vpop.permute.xlu0 %2885
        %2887 = vrot.lane.b32.xlu0 %v2810, 64
        %v2888 = vpop.permute.xlu0 %2887
        %2889 = vrot.lane.b32.xlu0 %v2811, 64
        %v2890 = vpop.permute.xlu0 %2889
        %2891 = vrot.lane.b32.xlu0 %v2812, 64
        %v2892 = vpop.permute.xlu0 %2891
        %v2894 = vsel %vm1294, %v2830, 0
        %v2897 = vsel %vm1294, %v2832, 0
        %v2900 = vsel %vm1294, %v2834, 0
        %v2903 = vsel %vm1294, %v2836, 0
        %v2906 = vsel %vm1294, %v2838, 0
        %v2909 = vsel %vm1294, %v2840, 0
        %v2912 = vsel %vm1294, %v2842, 0
        %v2915 = vsel %vm1294, %v2844, 0
        %v2918 = vsel %vm1294, %v2862, 0
        %v2921 = vsel %vm1294, %v2864, 0
        %v2924 = vsel %vm1294, %v2866, 0
        %v2927 = vsel %vm1294, %v2868, 0
        %v2930 = vsel %vm1294, %v2870, 0
        %v2933 = vsel %vm1294, %v2872, 0
        %v2936 = vsel %vm1294, %v2874, 0
        %v2939 = vsel %vm1294, %v2876, 0
        %v2942 = vsel %vm1294, %v2878, 0
        %v2945 = vsel %vm1294, %v2880, 0
        %v2948 = vsel %vm1294, %v2882, 0
        %v2951 = vsel %vm1294, %v2884, 0
        %v2954 = vsel %vm1294, %v2886, 0
        %v2957 = vsel %vm1294, %v2888, 0
        %v2960 = vsel %vm1294, %v2890, 0
        %v2963 = vsel %vm1294, %v2892, 0
        %2965 = vmatprep.subr.bf16.mxu0 0
        %2966 = vmatpush1.bf16.xpose.msra.mxu0 %v2918
        %2967 = vmatprep.subr.bf16.mxu0 0
        %2968 = vmatpush1.bf16.xpose.msra.mxu0 %v2921
        %2969 = vmatprep.subr.bf16.mxu0 0
        %2970 = vmatpush1.bf16.xpose.msra.mxu0 %v2924
        %2971 = vmatprep.subr.bf16.mxu0 0
        %2972 = vmatpush1.bf16.xpose.msra.mxu0 %v2927
        %2973 = vmatprep.subr.bf16.mxu0 0
        %2974 = vmatpush1.bf16.xpose.msra.mxu0 %v2930
        %2975 = vmatprep.subr.bf16.mxu0 0
        %2976 = vmatpush1.bf16.xpose.msra.mxu0 %v2933
        %2977 = vmatprep.subr.bf16.mxu0 0
        %2978 = vmatpush1.bf16.xpose.msra.mxu0 %v2936
        %2979 = vmatprep.subr.bf16.mxu0 0
        %2980 = vmatpush1.bf16.xpose.msra.mxu0 %v2939
        %2981 = vmatprep.subr.bf16.mxu0 0
        %2982 = vmatpush1.bf16.xpose.msra.mxu0 %v2942
        %2983 = vmatprep.subr.bf16.mxu0 0
        %2984 = vmatpush1.bf16.xpose.msra.mxu0 %v2945
        %2985 = vmatprep.subr.bf16.mxu0 0
        %2986 = vmatpush1.bf16.xpose.msra.mxu0 %v2948
        %2987 = vmatprep.subr.bf16.mxu0 0
        %2988 = vmatpush1.bf16.xpose.msra.mxu0 %v2951
        %2989 = vmatprep.subr.bf16.mxu0 0
        %2990 = vmatpush1.bf16.xpose.msra.mxu0 %v2954
        %2991 = vmatprep.subr.bf16.mxu0 0
        %2992 = vmatpush1.bf16.xpose.msra.mxu0 %v2957
        %2993 = vmatprep.subr.bf16.mxu0 0
        %2994 = vmatpush1.bf16.xpose.msra.mxu0 %v2960
        %2995 = vmatprep.subr.bf16.mxu0 0
        %2996 = vmatpush1.bf16.xpose.msra.mxu0 %v2963
        %2997 = vmatprep.mubr.bf16.mxu0 0
        %2998 = vmatmul.mubr.bf16.gmra.mrb[0].mxu0 %v2894
        %v2999 = vpop.f32.mrb[0].mxu0
        %v3000 = vadd.f32 0.0, %v2999
        %v3001 = vpop.f32.mrb[0].mxu0
        %v3002 = vadd.f32 0.0, %v3001
        %v3003 = vpop.f32.mrb[0].mxu0
        %v3004 = vadd.f32 0.0, %v3003
        %v3005 = vpop.f32.mrb[0].mxu0
        %v3006 = vadd.f32 0.0, %v3005
        %3007 = vmatprep.mubr.bf16.mxu0 0
        %3008 = vmatmul.mubr.bf16.gmra.mrb[0].mxu0 %v2897
        %v3009 = vpop.f32.mrb[0].mxu0
        %v3010 = vadd.f32 0.0, %v3009
        %v3011 = vpop.f32.mrb[0].mxu0
        %v3012 = vadd.f32 0.0, %v3011
        %v3013 = vpop.f32.mrb[0].mxu0
        %v3014 = vadd.f32 0.0, %v3013
        %v3015 = vpop.f32.mrb[0].mxu0
        %v3016 = vadd.f32 0.0, %v3015
        %3017 = vmatprep.mubr.bf16.mxu0 0
        %3018 = vmatmul.mubr.bf16.gmra.mrb[0].mxu0 %v2900
        %v3019 = vpop.f32.mrb[0].mxu0
        %v3020 = vadd.f32 0.0, %v3019
        %v3021 = vpop.f32.mrb[0].mxu0
        %v3022 = vadd.f32 0.0, %v3021
        %v3023 = vpop.f32.mrb[0].mxu0
        %v3024 = vadd.f32 0.0, %v3023
        %v3025 = vpop.f32.mrb[0].mxu0
        %v3026 = vadd.f32 0.0, %v3025
        %3027 = vmatprep.mubr.bf16.mxu0 0
        %3028 = vmatmul.mubr.bf16.gmra.mrb[0].mxu0 %v2903
        %v3029 = vpop.f32.mrb[0].mxu0
        %v3030 = vadd.f32 0.0, %v3029
        %v3031 = vpop.f32.mrb[0].mxu0
        %v3032 = vadd.f32 0.0, %v3031
        %v3033 = vpop.f32.mrb[0].mxu0
        %v3034 = vadd.f32 0.0, %v3033
        %v3035 = vpop.f32.mrb[0].mxu0
        %v3036 = vadd.f32 0.0, %v3035
        %3037 = vmatprep.mubr.bf16.mxu0 0
        %3038 = vmatmul.mubr.bf16.gmra.mrb[0].mxu0 %v2906
        %v3039 = vpop.f32.mrb[0].mxu0
        %v3040 = vadd.f32 0.0, %v3039
        %v3041 = vpop.f32.mrb[0].mxu0
        %v3042 = vadd.f32 0.0, %v3041
        %v3043 = vpop.f32.mrb[0].mxu0
        %v3044 = vadd.f32 0.0, %v3043
        %v3045 = vpop.f32.mrb[0].mxu0
        %v3046 = vadd.f32 0.0, %v3045
        %3047 = vmatprep.mubr.bf16.mxu0 0
        %3048 = vmatmul.mubr.bf16.gmra.mrb[0].mxu0 %v2909
        %v3049 = vpop.f32.mrb[0].mxu0
        %v3050 = vadd.f32 0.0, %v3049
        %v3051 = vpop.f32.mrb[0].mxu0
        %v3052 = vadd.f32 0.0, %v3051
        %v3053 = vpop.f32.mrb[0].mxu0
        %v3054 = vadd.f32 0.0, %v3053
        %v3055 = vpop.f32.mrb[0].mxu0
        %v3056 = vadd.f32 0.0, %v3055
        %3057 = vmatprep.mubr.bf16.mxu0 0
        %3058 = vmatmul.mubr.bf16.gmra.mrb[0].mxu0 %v2912
        %v3059 = vpop.f32.mrb[0].mxu0
        %v3060 = vadd.f32 0.0, %v3059
        %v3061 = vpop.f32.mrb[0].mxu0
        %v3062 = vadd.f32 0.0, %v3061
        %v3063 = vpop.f32.mrb[0].mxu0
        %v3064 = vadd.f32 0.0, %v3063
        %v3065 = vpop.f32.mrb[0].mxu0
        %v3066 = vadd.f32 0.0, %v3065
        %3067 = vmatprep.mubr.bf16.mxu0 0
        %3068 = vmatmul.mubr.bf16.gmra.mrb[0].mxu0 %v2915
        %v3069 = vpop.f32.mrb[0].mxu0
        %v3070 = vadd.f32 0.0, %v3069
        %v3071 = vpop.f32.mrb[0].mxu0
        %v3072 = vadd.f32 0.0, %v3071
        %v3073 = vpop.f32.mrb[0].mxu0
        %v3074 = vadd.f32 0.0, %v3073
        %v3075 = vpop.f32.mrb[0].mxu0
        %v3076 = vadd.f32 0.0, %v3075
        %3077 = vdwg.mxu0
        %v3078 = vmax.f32 %v3000, %v3002
        %3079 = vmax.xlane.f32.xlu0 %v3078
        %v3080 = vpop.xlane.xlu0 %3079
        %v3081 = vmax.f32 %v3004, %v3006
        %3082 = vmax.xlane.f32.xlu0 %v3081
        %v3083 = vpop.xlane.xlu0 %3082
        %v3084 = vmax.f32 %v3010, %v3012
        %3085 = vmax.xlane.f32.xlu0 %v3084
        %v3086 = vpop.xlane.xlu0 %3085
        %v3087 = vmax.f32 %v3014, %v3016
        %3088 = vmax.xlane.f32.xlu0 %v3087
        %v3089 = vpop.xlane.xlu0 %3088
        %v3090 = vmax.f32 %v3020, %v3022
        %3091 = vmax.xlane.f32.xlu0 %v3090
        %v3092 = vpop.xlane.xlu0 %3091
        %v3093 = vmax.f32 %v3024, %v3026
        %3094 = vmax.xlane.f32.xlu0 %v3093
        %v3095 = vpop.xlane.xlu0 %3094
        %v3096 = vmax.f32 %v3030, %v3032
        %3097 = vmax.xlane.f32.xlu0 %v3096
        %v3098 = vpop.xlane.xlu0 %3097
        %v3099 = vmax.f32 %v3034, %v3036
        %3100 = vmax.xlane.f32.xlu0 %v3099
        %v3101 = vpop.xlane.xlu0 %3100
        %v3102 = vmax.f32 %v3040, %v3042
        %3103 = vmax.xlane.f32.xlu0 %v3102
        %v3104 = vpop.xlane.xlu0 %3103
        %v3105 = vmax.f32 %v3044, %v3046
        %3106 = vmax.xlane.f32.xlu0 %v3105
        %v3107 = vpop.xlane.xlu0 %3106
        %v3108 = vmax.f32 %v3050, %v3052
        %3109 = vmax.xlane.f32.xlu0 %v3108
        %v3110 = vpop.xlane.xlu0 %3109
        %v3111 = vmax.f32 %v3054, %v3056
        %3112 = vmax.xlane.f32.xlu0 %v3111
        %v3113 = vpop.xlane.xlu0 %3112
        %v3114 = vmax.f32 %v3060, %v3062
        %3115 = vmax.xlane.f32.xlu0 %v3114
        %v3116 = vpop.xlane.xlu0 %3115
        %v3117 = vmax.f32 %v3064, %v3066
        %3118 = vmax.xlane.f32.xlu0 %v3117
        %v3119 = vpop.xlane.xlu0 %3118
        %v3120 = vmax.f32 %v3070, %v3072
        %3121 = vmax.xlane.f32.xlu0 %v3120
        %v3122 = vpop.xlane.xlu0 %3121
        %v3123 = vmax.f32 %v3074, %v3076
        %3124 = vmax.xlane.f32.xlu0 %v3123
        %v3125 = vpop.xlane.xlu0 %3124
        %v3126 = vsub.f32 %v3000, %v3080
        %v3127 = vsub.f32 %v3002, %v3080
        %v3128 = vsub.f32 %v3004, %v3083
        %v3129 = vsub.f32 %v3006, %v3083
        %v3130 = vsub.f32 %v3010, %v3086
        %v3131 = vsub.f32 %v3012, %v3086
        %v3132 = vsub.f32 %v3014, %v3089
        %v3133 = vsub.f32 %v3016, %v3089
        %v3134 = vsub.f32 %v3020, %v3092
        %v3135 = vsub.f32 %v3022, %v3092
        %v3136 = vsub.f32 %v3024, %v3095
        %v3137 = vsub.f32 %v3026, %v3095
        %v3138 = vsub.f32 %v3030, %v3098
        %v3139 = vsub.f32 %v3032, %v3098
        %v3140 = vsub.f32 %v3034, %v3101
        %v3141 = vsub.f32 %v3036, %v3101
        %v3142 = vsub.f32 %v3040, %v3104
        %v3143 = vsub.f32 %v3042, %v3104
        %v3144 = vsub.f32 %v3044, %v3107
        %v3145 = vsub.f32 %v3046, %v3107
        %v3146 = vsub.f32 %v3050, %v3110
        %v3147 = vsub.f32 %v3052, %v3110
        %v3148 = vsub.f32 %v3054, %v3113
        %v3149 = vsub.f32 %v3056, %v3113
        %v3150 = vsub.f32 %v3060, %v3116
        %v3151 = vsub.f32 %v3062, %v3116
        %v3152 = vsub.f32 %v3064, %v3119
        %v3153 = vsub.f32 %v3066, %v3119
        %v3154 = vsub.f32 %v3070, %v3122
        %v3155 = vsub.f32 %v3072, %v3122
        %v3156 = vsub.f32 %v3074, %v3125
        %v3157 = vsub.f32 %v3076, %v3125
        %v3158 = vmul.f32 %v3126, 1.442695
        %v3159 = vpow.pop %v3158
        %v3160 = vmul.f32 %v3127, 1.442695
        %v3161 = vpow.pop %v3160
        %v3162 = vmul.f32 %v3128, 1.442695
        %v3163 = vpow.pop %v3162
        %v3164 = vmul.f32 %v3129, 1.442695
        %v3165 = vpow.pop %v3164
        %v3166 = vmul.f32 %v3130, 1.442695
        %v3167 = vpow.pop %v3166
        %v3168 = vmul.f32 %v3131, 1.442695
        %v3169 = vpow.pop %v3168
        %v3170 = vmul.f32 %v3132, 1.442695
        %v3171 = vpow.pop %v3170
        %v3172 = vmul.f32 %v3133, 1.442695
        %v3173 = vpow.pop %v3172
        %v3174 = vmul.f32 %v3134, 1.442695
        %v3175 = vpow.pop %v3174
        %v3176 = vmul.f32 %v3135, 1.442695
        %v3177 = vpow.pop %v3176
        %v3178 = vmul.f32 %v3136, 1.442695
        %v3179 = vpow.pop %v3178
        %v3180 = vmul.f32 %v3137, 1.442695
        %v3181 = vpow.pop %v3180
        %v3182 = vmul.f32 %v3138, 1.442695
        %v3183 = vpow.pop %v3182
        %v3184 = vmul.f32 %v3139, 1.442695
        %v3185 = vpow.pop %v3184
        %v3186 = vmul.f32 %v3140, 1.442695
        %v3187 = vpow.pop %v3186
        %v3188 = vmul.f32 %v3141, 1.442695
        %v3189 = vpow.pop %v3188
        %v3190 = vmul.f32 %v3142, 1.442695
        %v3191 = vpow.pop %v3190
        %v3192 = vmul.f32 %v3143, 1.442695
        %v3193 = vpow.pop %v3192
        %v3194 = vmul.f32 %v3144, 1.442695
        %v3195 = vpow.pop %v3194
        %v3196 = vmul.f32 %v3145, 1.442695
        %v3197 = vpow.pop %v3196
        %v3198 = vmul.f32 %v3146, 1.442695
        %v3199 = vpow.pop %v3198
        %v3200 = vmul.f32 %v3147, 1.442695
        %v3201 = vpow.pop %v3200
        %v3202 = vmul.f32 %v3148, 1.442695
        %v3203 = vpow.pop %v3202
        %v3204 = vmul.f32 %v3149, 1.442695
        %v3205 = vpow.pop %v3204
        %v3206 = vmul.f32 %v3150, 1.442695
        %v3207 = vpow.pop %v3206
        %v3208 = vmul.f32 %v3151, 1.442695
        %v3209 = vpow.pop %v3208
        %v3210 = vmul.f32 %v3152, 1.442695
        %v3211 = vpow.pop %v3210
        %v3212 = vmul.f32 %v3153, 1.442695
        %v3213 = vpow.pop %v3212
        %v3214 = vmul.f32 %v3154, 1.442695
        %v3215 = vpow.pop %v3214
        %v3216 = vmul.f32 %v3155, 1.442695
        %v3217 = vpow.pop %v3216
        %v3218 = vmul.f32 %v3156, 1.442695
        %v3219 = vpow.pop %v3218
        %v3220 = vmul.f32 %v3157, 1.442695
        %v3221 = vpow.pop %v3220
        %v3222 = vadd.f32 %v3159, %v3161
        %3223 = vadd.xlane.f32.xlu0 %v3222
        %v3224 = vpop.xlane.xlu0 %3223
        %v3225 = vadd.f32 %v3163, %v3165
        %3226 = vadd.xlane.f32.xlu0 %v3225
        %v3227 = vpop.xlane.xlu0 %3226
        %v3228 = vadd.f32 %v3167, %v3169
        %3229 = vadd.xlane.f32.xlu0 %v3228
        %v3230 = vpop.xlane.xlu0 %3229
        %v3231 = vadd.f32 %v3171, %v3173
        %3232 = vadd.xlane.f32.xlu0 %v3231
        %v3233 = vpop.xlane.xlu0 %3232
        %v3234 = vadd.f32 %v3175, %v3177
        %3235 = vadd.xlane.f32.xlu0 %v3234
        %v3236 = vpop.xlane.xlu0 %3235
        %v3237 = vadd.f32 %v3179, %v3181
        %3238 = vadd.xlane.f32.xlu0 %v3237
        %v3239 = vpop.xlane.xlu0 %3238
        %v3240 = vadd.f32 %v3183, %v3185
        %3241 = vadd.xlane.f32.xlu0 %v3240
        %v3242 = vpop.xlane.xlu0 %3241
        %v3243 = vadd.f32 %v3187, %v3189
        %3244 = vadd.xlane.f32.xlu0 %v3243
        %v3245 = vpop.xlane.xlu0 %3244
        %v3246 = vadd.f32 %v3191, %v3193
        %3247 = vadd.xlane.f32.xlu0 %v3246
        %v3248 = vpop.xlane.xlu0 %3247
        %v3249 = vadd.f32 %v3195, %v3197
        %3250 = vadd.xlane.f32.xlu0 %v3249
        %v3251 = vpop.xlane.xlu0 %3250
        %v3252 = vadd.f32 %v3199, %v3201
        %3253 = vadd.xlane.f32.xlu0 %v3252
        %v3254 = vpop.xlane.xlu0 %3253
        %v3255 = vadd.f32 %v3203, %v3205
        %3256 = vadd.xlane.f32.xlu0 %v3255
        %v3257 = vpop.xlane.xlu0 %3256
        %v3258 = vadd.f32 %v3207, %v3209
        %3259 = vadd.xlane.f32.xlu0 %v3258
        %v3260 = vpop.xlane.xlu0 %3259
        %v3261 = vadd.f32 %v3211, %v3213
        %3262 = vadd.xlane.f32.xlu0 %v3261
        %v3263 = vpop.xlane.xlu0 %3262
        %v3264 = vadd.f32 %v3215, %v3217
        %3265 = vadd.xlane.f32.xlu0 %v3264
        %v3266 = vpop.xlane.xlu0 %3265
        %v3267 = vadd.f32 %v3219, %v3221
        %3268 = vadd.xlane.f32.xlu0 %v3267
        %v3269 = vpop.xlane.xlu0 %3268
        %v3270 = vrcp.pop %v3224
        %v3271 = vrcp.pop %v3227
        %v3272 = vrcp.pop %v3230
        %v3273 = vrcp.pop %v3233
        %v3274 = vrcp.pop %v3236
        %v3275 = vrcp.pop %v3239
        %v3276 = vrcp.pop %v3242
        %v3277 = vrcp.pop %v3245
        %v3278 = vrcp.pop %v3248
        %v3279 = vrcp.pop %v3251
        %v3280 = vrcp.pop %v3254
        %v3281 = vrcp.pop %v3257
        %v3282 = vrcp.pop %v3260
        %v3283 = vrcp.pop %v3263
        %v3284 = vrcp.pop %v3266
        %v3285 = vrcp.pop %v3269
        %v3286 = vmul.f32 %v3159, %v3270
        %v3287 = vmul.f32 %v3161, %v3270
        %v3288 = vmul.f32 %v3163, %v3271
        %v3289 = vmul.f32 %v3165, %v3271
        %v3290 = vmul.f32 %v3167, %v3272
        %v3291 = vmul.f32 %v3169, %v3272
        %v3292 = vmul.f32 %v3171, %v3273
        %v3293 = vmul.f32 %v3173, %v3273
        %v3294 = vmul.f32 %v3175, %v3274
        %v3295 = vmul.f32 %v3177, %v3274
        %v3296 = vmul.f32 %v3179, %v3275
        %v3297 = vmul.f32 %v3181, %v3275
        %v3298 = vmul.f32 %v3183, %v3276
        %v3299 = vmul.f32 %v3185, %v3276
        %v3300 = vmul.f32 %v3187, %v3277
        %v3301 = vmul.f32 %v3189, %v3277
        %v3302 = vmul.f32 %v3191, %v3278
        %v3303 = vmul.f32 %v3193, %v3278
        %v3304 = vmul.f32 %v3195, %v3279
        %v3305 = vmul.f32 %v3197, %v3279
        %v3306 = vmul.f32 %v3199, %v3280
        %v3307 = vmul.f32 %v3201, %v3280
        %v3308 = vmul.f32 %v3203, %v3281
        %v3309 = vmul.f32 %v3205, %v3281
        %v3310 = vmul.f32 %v3207, %v3282
        %v3311 = vmul.f32 %v3209, %v3282
        %v3312 = vmul.f32 %v3211, %v3283
        %v3313 = vmul.f32 %v3213, %v3283
        %v3314 = vmul.f32 %v3215, %v3284
        %v3315 = vmul.f32 %v3217, %v3284
        %v3316 = vmul.f32 %v3219, %v3285
        %v3317 = vmul.f32 %v3221, %v3285
        %v3318 = vpack.c.bf16 %v3288, %v3286
        %v3319 = vpack.c.bf16 %v3289, %v3287
        %v3320 = vpack.c.bf16 %v3292, %v3290
        %v3321 = vpack.c.bf16 %v3293, %v3291
        %v3322 = vpack.c.bf16 %v3296, %v3294
        %v3323 = vpack.c.bf16 %v3297, %v3295
        %v3324 = vpack.c.bf16 %v3300, %v3298
        %v3325 = vpack.c.bf16 %v3301, %v3299
        %v3326 = vpack.c.bf16 %v3304, %v3302
        %v3327 = vpack.c.bf16 %v3305, %v3303
        %v3328 = vpack.c.bf16 %v3308, %v3306
        %v3329 = vpack.c.bf16 %v3309, %v3307
        %v3330 = vpack.c.bf16 %v3312, %v3310
        %v3331 = vpack.c.bf16 %v3313, %v3311
        %v3332 = vpack.c.bf16 %v3316, %v3314
        %v3333 = vpack.c.bf16 %v3317, %v3315
        %v3350 = vunpack.c.l.b16 %v3318
        %v3351 = vunpack.c.l.b16 %v3319
        %v3352 = vunpack.c.h.b16 %v3318
        %v3353 = vunpack.c.h.b16 %v3319
        %v3354 = vunpack.c.l.b16 %v3320
        %v3355 = vunpack.c.l.b16 %v3321
        %v3356 = vunpack.c.h.b16 %v3320
        %v3357 = vunpack.c.h.b16 %v3321
        %v3358 = vunpack.c.l.b16 %v3322
        %v3359 = vunpack.c.l.b16 %v3323
        %v3360 = vunpack.c.h.b16 %v3322
        %v3361 = vunpack.c.h.b16 %v3323
        %v3362 = vunpack.c.l.b16 %v3324
        %v3363 = vunpack.c.l.b16 %v3325
        %v3364 = vunpack.c.h.b16 %v3324
        %v3365 = vunpack.c.h.b16 %v3325
        %v3366 = vunpack.c.l.b16 %v3326
        %v3367 = vunpack.c.l.b16 %v3327
        %v3368 = vunpack.c.h.b16 %v3326
        %v3369 = vunpack.c.h.b16 %v3327
        %v3370 = vunpack.c.l.b16 %v3328
        %v3371 = vunpack.c.l.b16 %v3329
        %v3372 = vunpack.c.h.b16 %v3328
        %v3373 = vunpack.c.h.b16 %v3329
        %v3374 = vunpack.c.l.b16 %v3330
        %v3375 = vunpack.c.l.b16 %v3331
        %v3376 = vunpack.c.h.b16 %v3330
        %v3377 = vunpack.c.h.b16 %v3331
        %v3378 = vunpack.c.l.b16 %v3332
        %v3379 = vunpack.c.l.b16 %v3333
        %v3380 = vunpack.c.h.b16 %v3332
        %v3381 = vunpack.c.h.b16 %v3333
        %v3382 = vpack.c.b16 %v3351, %v3350
        %v3383 = vpack.c.b16 %v3353, %v3352
        %v3384 = vpack.c.b16 %v3355, %v3354
        %v3385 = vpack.c.b16 %v3357, %v3356
        %v3386 = vpack.c.b16 %v3359, %v3358
        %v3387 = vpack.c.b16 %v3361, %v3360
        %v3388 = vpack.c.b16 %v3363, %v3362
        %v3389 = vpack.c.b16 %v3365, %v3364
        %v3390 = vpack.c.b16 %v3367, %v3366
        %v3391 = vpack.c.b16 %v3369, %v3368
        %v3392 = vpack.c.b16 %v3371, %v3370
        %v3393 = vpack.c.b16 %v3373, %v3372
        %v3394 = vpack.c.b16 %v3375, %v3374
        %v3395 = vpack.c.b16 %v3377, %v3376
        %v3396 = vpack.c.b16 %v3379, %v3378
        %v3397 = vpack.c.b16 %v3381, %v3380
        %s3414 = scalar_lea.vmem %s639, 256 [#allocation16]
        %3415 = vst [vmem:[%s3414] sm:$0xff] %v3382
        %3416 = vst [vmem:[%s3414 + $0x8] sm:$0xff] %v3383
        %3417 = vst [vmem:[%s3414 + $0x10] sm:$0xff] %v3384
        %3418 = vst [vmem:[%s3414 + $0x18] sm:$0xff] %v3385
        %3419 = vst [vmem:[%s3414 + $0x20] sm:$0xff] %v3386
        %3420 = vst [vmem:[%s3414 + $0x28] sm:$0xff] %v3387
        %3421 = vst [vmem:[%s3414 + $0x30] sm:$0xff] %v3388
        %3422 = vst [vmem:[%s3414 + $0x38] sm:$0xff] %v3389
        %3423 = vst [vmem:[%s3414 + $0x40] sm:$0xff] %v3390
        %3424 = vst [vmem:[%s3414 + $0x48] sm:$0xff] %v3391
        %3425 = vst [vmem:[%s3414 + $0x50] sm:$0xff] %v3392
        %3426 = vst [vmem:[%s3414 + $0x58] sm:$0xff] %v3393
        %3427 = vst [vmem:[%s3414 + $0x60] sm:$0xff] %v3394
        %3428 = vst [vmem:[%s3414 + $0x68] sm:$0xff] %v3395
        %3429 = vst [vmem:[%s3414 + $0x70] sm:$0xff] %v3396
        %3430 = vst [vmem:[%s3414 + $0x78] sm:$0xff] %v3397
        %3447 = vrot.lane.b32.xlu0 %v2813, 64
        %v3448 = vpop.permute.xlu0 %3447
        %3449 = vrot.lane.b32.xlu0 %v2814, 64
        %v3450 = vpop.permute.xlu0 %3449
        %3451 = vrot.lane.b32.xlu0 %v2815, 64
        %v3452 = vpop.permute.xlu0 %3451
        %3453 = vrot.lane.b32.xlu0 %v2816, 64
        %v3454 = vpop.permute.xlu0 %3453
        %3455 = vrot.lane.b32.xlu0 %v2817, 64
        %v3456 = vpop.permute.xlu0 %3455
        %3457 = vrot.lane.b32.xlu0 %v2818, 64
        %v3458 = vpop.permute.xlu0 %3457
        %3459 = vrot.lane.b32.xlu0 %v2819, 64
        %v3460 = vpop.permute.xlu0 %3459
        %3461 = vrot.lane.b32.xlu0 %v2820, 64
        %v3462 = vpop.permute.xlu0 %3461
        %3463 = vrot.lane.b32.xlu0 %v2821, 64
        %v3464 = vpop.permute.xlu0 %3463
        %3465 = vrot.lane.b32.xlu0 %v2822, 64
        %v3466 = vpop.permute.xlu0 %3465
        %3467 = vrot.lane.b32.xlu0 %v2823, 64
        %v3468 = vpop.permute.xlu0 %3467
        %3469 = vrot.lane.b32.xlu0 %v2824, 64
        %v3470 = vpop.permute.xlu0 %3469
        %3471 = vrot.lane.b32.xlu0 %v2825, 64
        %v3472 = vpop.permute.xlu0 %3471
        %3473 = vrot.lane.b32.xlu0 %v2826, 64
        %v3474 = vpop.permute.xlu0 %3473
        %3475 = vrot.lane.b32.xlu0 %v2827, 64
        %v3476 = vpop.permute.xlu0 %3475
        %3477 = vrot.lane.b32.xlu0 %v2828, 64
        %v3478 = vpop.permute.xlu0 %3477
        %3495 = vmatprep.subr.bf16.mxu0 0
        %3496 = vmatpush1.bf16.msra.mxu0 %v3448
        %3497 = vmatprep.subr.bf16.mxu0 0
        %3498 = vmatpush1.bf16.msra.mxu0 %v3450
        %3499 = vmatprep.subr.bf16.mxu0 0
        %3500 = vmatpush1.bf16.msra.mxu0 %v3452
        %3501 = vmatprep.subr.bf16.mxu0 0
        %3502 = vmatpush1.bf16.msra.mxu0 %v3454
        %3503 = vmatprep.subr.bf16.mxu0 0
        %3504 = vmatpush1.bf16.msra.mxu0 %v3456
        %3505 = vmatprep.subr.bf16.mxu0 0
        %3506 = vmatpush1.bf16.msra.mxu0 %v3458
        %3507 = vmatprep.subr.bf16.mxu0 0
        %3508 = vmatpush1.bf16.msra.mxu0 %v3460
        %3509 = vmatprep.subr.bf16.mxu0 0
        %3510 = vmatpush1.bf16.msra.mxu0 %v3462
        %3511 = vmatprep.subr.bf16.mxu0 0
        %3512 = vmatpush1.bf16.msra.mxu0 %v3464
        %3513 = vmatprep.subr.bf16.mxu0 0
        %3514 = vmatpush1.bf16.msra.mxu0 %v3466
        %3515 = vmatprep.subr.bf16.mxu0 0
        %3516 = vmatpush1.bf16.msra.mxu0 %v3468
        %3517 = vmatprep.subr.bf16.mxu0 0
        %3518 = vmatpush1.bf16.msra.mxu0 %v3470
        %3519 = vmatprep.subr.bf16.mxu0 0
        %3520 = vmatpush1.bf16.msra.mxu0 %v3472
        %3521 = vmatprep.subr.bf16.mxu0 0
        %3522 = vmatpush1.bf16.msra.mxu0 %v3474
        %3523 = vmatprep.subr.bf16.mxu0 0
        %3524 = vmatpush1.bf16.msra.mxu0 %v3476
        %3525 = vmatprep.subr.bf16.mxu0 0
        %3526 = vmatpush1.bf16.msra.mxu0 %v3478
        %3527 = vmatprep.mubr.bf16.mxu0 %v3319
        %3528 = vmatmul.mubr.bf16.gmra.mrb[0].mxu0 %v3318
        %v3529 = vpop.f32.mrb[0].mxu0
        %v3530 = vadd.f32 0.0, %v3529
        %v3531 = vpop.f32.mrb[0].mxu0
        %v3532 = vpop.f32.mrb[0].mxu0
        %v3533 = vadd.f32 0.0, %v3532
        %v3534 = vpop.f32.mrb[0].mxu0
        %3535 = vmatprep.mubr.bf16.mxu0 %v3321
        %3536 = vmatmul.mubr.bf16.gmra.mrb[0].mxu0 %v3320
        %v3537 = vpop.f32.mrb[0].mxu0
        %v3538 = vadd.f32 0.0, %v3537
        %v3539 = vpop.f32.mrb[0].mxu0
        %v3540 = vpop.f32.mrb[0].mxu0
        %v3541 = vadd.f32 0.0, %v3540
        %v3542 = vpop.f32.mrb[0].mxu0
        %3543 = vmatprep.mubr.bf16.mxu0 %v3323
        %3544 = vmatmul.mubr.bf16.gmra.mrb[0].mxu0 %v3322
        %v3545 = vpop.f32.mrb[0].mxu0
        %v3546 = vadd.f32 0.0, %v3545
        %v3547 = vpop.f32.mrb[0].mxu0
        %v3548 = vpop.f32.mrb[0].mxu0
        %v3549 = vadd.f32 0.0, %v3548
        %v3550 = vpop.f32.mrb[0].mxu0
        %3551 = vmatprep.mubr.bf16.mxu0 %v3325
        %3552 = vmatmul.mubr.bf16.gmra.mrb[0].mxu0 %v3324
        %v3553 = vpop.f32.mrb[0].mxu0
        %v3554 = vadd.f32 0.0, %v3553
        %v3555 = vpop.f32.mrb[0].mxu0
        %v3556 = vpop.f32.mrb[0].mxu0
        %v3557 = vadd.f32 0.0, %v3556
        %v3558 = vpop.f32.mrb[0].mxu0
        %3559 = vmatprep.mubr.bf16.mxu0 %v3327
        %3560 = vmatmul.mubr.bf16.gmra.mrb[0].mxu0 %v3326
        %v3561 = vpop.f32.mrb[0].mxu0
        %v3562 = vadd.f32 0.0, %v3561
        %v3563 = vpop.f32.mrb[0].mxu0
        %v3564 = vpop.f32.mrb[0].mxu0
        %v3565 = vadd.f32 0.0, %v3564
        %v3566 = vpop.f32.mrb[0].mxu0
        %3567 = vmatprep.mubr.bf16.mxu0 %v3329
        %3568 = vmatmul.mubr.bf16.gmra.mrb[0].mxu0 %v3328
        %v3569 = vpop.f32.mrb[0].mxu0
        %v3570 = vadd.f32 0.0, %v3569
        %v3571 = vpop.f32.mrb[0].mxu0
        %v3572 = vpop.f32.mrb[0].mxu0
        %v3573 = vadd.f32 0.0, %v3572
        %v3574 = vpop.f32.mrb[0].mxu0
        %3575 = vmatprep.mubr.bf16.mxu0 %v3331
        %3576 = vmatmul.mubr.bf16.gmra.mrb[0].mxu0 %v3330
        %v3577 = vpop.f32.mrb[0].mxu0
        %v3578 = vadd.f32 0.0, %v3577
        %v3579 = vpop.f32.mrb[0].mxu0
        %v3580 = vpop.f32.mrb[0].mxu0
        %v3581 = vadd.f32 0.0, %v3580
        %v3582 = vpop.f32.mrb[0].mxu0
        %3583 = vmatprep.mubr.bf16.mxu0 %v3333
        %3584 = vmatmul.mubr.bf16.gmra.mrb[0].mxu0 %v3332
        %v3585 = vpop.f32.mrb[0].mxu0
        %v3586 = vadd.f32 0.0, %v3585
        %v3587 = vpop.f32.mrb[0].mxu0
        %v3588 = vpop.f32.mrb[0].mxu0
        %v3589 = vadd.f32 0.0, %v3588
        %v3590 = vpop.f32.mrb[0].mxu0
        %3591 = vdwg.mxu0
        %v3592 = vpack.c.bf16 %v3533, %v3530
        %v3593 = vpack.c.bf16 %v3541, %v3538
        %v3594 = vpack.c.bf16 %v3549, %v3546
        %v3595 = vpack.c.bf16 %v3557, %v3554
        %v3596 = vpack.c.bf16 %v3565, %v3562
        %v3597 = vpack.c.bf16 %v3573, %v3570
        %v3598 = vpack.c.bf16 %v3581, %v3578
        %v3599 = vpack.c.bf16 %v3589, %v3586
        %3608 = vrot.lane.b32.xlu0 %v3592, 64
        %v3609 = vpop.permute.xlu0 %3608
        %3610 = vrot.lane.b32.xlu0 %v3593, 64
        %v3611 = vpop.permute.xlu0 %3610
        %3612 = vrot.lane.b32.xlu0 %v3594, 64
        %v3613 = vpop.permute.xlu0 %3612
        %3614 = vrot.lane.b32.xlu0 %v3595, 64
        %v3615 = vpop.permute.xlu0 %3614
        %3616 = vrot.lane.b32.xlu0 %v3596, 64
        %v3617 = vpop.permute.xlu0 %3616
        %3618 = vrot.lane.b32.xlu0 %v3597, 64
        %v3619 = vpop.permute.xlu0 %3618
        %3620 = vrot.lane.b32.xlu0 %v3598, 64
        %v3621 = vpop.permute.xlu0 %3620
        %3622 = vrot.lane.b32.xlu0 %v3599, 64
        %v3623 = vpop.permute.xlu0 %3622
        %vm3632 = vcmask 785920
        %3633 = vst.msk [vmem:[#allocation3] sm:$0xff] %vm3632, %v3609
        %3634 = vst.msk [vmem:[#allocation3 + $0x8] sm:$0xff] %vm3632, %v3611
        %3635 = vst.msk [vmem:[#allocation3 + $0x10] sm:$0xff] %vm3632, %v3613
        %3636 = vst.msk [vmem:[#allocation3 + $0x18] sm:$0xff] %vm3632, %v3615
        %3637 = vst.msk [vmem:[#allocation3 + $0x20] sm:$0xff] %vm3632, %v3617
        %3638 = vst.msk [vmem:[#allocation3 + $0x28] sm:$0xff] %vm3632, %v3619
        %3639 = vst.msk [vmem:[#allocation3 + $0x30] sm:$0xff] %vm3632, %v3621
        %3640 = vst.msk [vmem:[#allocation3 + $0x38] sm:$0xff] %vm3632, %v3623
        %v3641 = vld [vmem:[#allocation2] sm:$0xff]
        %v3642 = vld [vmem:[#allocation2 + $0x10] sm:$0xff]
        %v3643 = vld [vmem:[#allocation2 + $0x20] sm:$0xff]
        %v3644 = vld [vmem:[#allocation2 + $0x30] sm:$0xff]
        %v3645 = vld [vmem:[#allocation2 + $0x40] sm:$0xff]
        %v3646 = vld [vmem:[#allocation2 + $0x50] sm:$0xff]
        %v3647 = vld [vmem:[#allocation2 + $0x60] sm:$0xff]
        %v3648 = vld [vmem:[#allocation2 + $0x70] sm:$0xff]
        %v3649 = vld [vmem:[#allocation2 + $0x80] sm:$0xff]
        %v3650 = vld [vmem:[#allocation2 + $0x90] sm:$0xff]
        %v3651 = vld [vmem:[#allocation2 + $0xa0] sm:$0xff]
        %v3652 = vld [vmem:[#allocation2 + $0xb0] sm:$0xff]
        %v3653 = vld [vmem:[#allocation2 + $0xc0] sm:$0xff]
        %v3654 = vld [vmem:[#allocation2 + $0xd0] sm:$0xff]
        %v3655 = vld [vmem:[#allocation2 + $0xe0] sm:$0xff]
        %v3656 = vld [vmem:[#allocation2 + $0xf0] sm:$0xff]
        %v3657 = vld [vmem:[#allocation2 + $0x8] sm:$0xff]
        %v3658 = vld [vmem:[#allocation2 + $0x18] sm:$0xff]
        %v3659 = vld [vmem:[#allocation2 + $0x28] sm:$0xff]
        %v3660 = vld [vmem:[#allocation2 + $0x38] sm:$0xff]
        %v3661 = vld [vmem:[#allocation2 + $0x48] sm:$0xff]
        %v3662 = vld [vmem:[#allocation2 + $0x58] sm:$0xff]
        %v3663 = vld [vmem:[#allocation2 + $0x68] sm:$0xff]
        %v3664 = vld [vmem:[#allocation2 + $0x78] sm:$0xff]
        %v3665 = vld [vmem:[#allocation2 + $0x88] sm:$0xff]
        %v3666 = vld [vmem:[#allocation2 + $0x98] sm:$0xff]
        %v3667 = vld [vmem:[#allocation2 + $0xa8] sm:$0xff]
        %v3668 = vld [vmem:[#allocation2 + $0xb8] sm:$0xff]
        %v3669 = vld [vmem:[#allocation2 + $0xc8] sm:$0xff]
        %v3670 = vld [vmem:[#allocation2 + $0xd8] sm:$0xff]
        %v3671 = vld [vmem:[#allocation2 + $0xe8] sm:$0xff]
        %v3672 = vld [vmem:[#allocation2 + $0xf8] sm:$0xff]
        %3673 = vrot.lane.b32.xlu0 %v1254, 32
        %v3674 = vpop.permute.xlu0 %3673
        %3675 = vrot.lane.b32.xlu0 %v1255, 32
        %v3676 = vpop.permute.xlu0 %3675
        %3677 = vrot.lane.b32.xlu0 %v1256, 32
        %v3678 = vpop.permute.xlu0 %3677
        %3679 = vrot.lane.b32.xlu0 %v1257, 32
        %v3680 = vpop.permute.xlu0 %3679
        %3681 = vrot.lane.b32.xlu0 %v1258, 32
        %v3682 = vpop.permute.xlu0 %3681
        %3683 = vrot.lane.b32.xlu0 %v1259, 32
        %v3684 = vpop.permute.xlu0 %3683
        %3685 = vrot.lane.b32.xlu0 %v1260, 32
        %v3686 = vpop.permute.xlu0 %3685
        %3687 = vrot.lane.b32.xlu0 %v1261, 32
        %v3688 = vpop.permute.xlu0 %3687
        %3705 = vrot.lane.b32.xlu0 %v3641, 32
        %v3706 = vpop.permute.xlu0 %3705
        %3707 = vrot.lane.b32.xlu0 %v3642, 32
        %v3708 = vpop.permute.xlu0 %3707
        %3709 = vrot.lane.b32.xlu0 %v3643, 32
        %v3710 = vpop.permute.xlu0 %3709
        %3711 = vrot.lane.b32.xlu0 %v3644, 32
        %v3712 = vpop.permute.xlu0 %3711
        %3713 = vrot.lane.b32.xlu0 %v3645, 32
        %v3714 = vpop.permute.xlu0 %3713
        %3715 = vrot.lane.b32.xlu0 %v3646, 32
        %v3716 = vpop.permute.xlu0 %3715
        %3717 = vrot.lane.b32.xlu0 %v3647, 32
        %v3718 = vpop.permute.xlu0 %3717
        %3719 = vrot.lane.b32.xlu0 %v3648, 32
        %v3720 = vpop.permute.xlu0 %3719
        %3721 = vrot.lane.b32.xlu0 %v3649, 32
        %v3722 = vpop.permute.xlu0 %3721
        %3723 = vrot.lane.b32.xlu0 %v3650, 32
        %v3724 = vpop.permute.xlu0 %3723
        %3725 = vrot.lane.b32.xlu0 %v3651, 32
        %v3726 = vpop.permute.xlu0 %3725
        %3727 = vrot.lane.b32.xlu0 %v3652, 32
        %v3728 = vpop.permute.xlu0 %3727
        %3729 = vrot.lane.b32.xlu0 %v3653, 32
        %v3730 = vpop.permute.xlu0 %3729
        %3731 = vrot.lane.b32.xlu0 %v3654, 32
        %v3732 = vpop.permute.xlu0 %3731
        %3733 = vrot.lane.b32.xlu0 %v3655, 32
        %v3734 = vpop.permute.xlu0 %3733
        %3735 = vrot.lane.b32.xlu0 %v3656, 32
        %v3736 = vpop.permute.xlu0 %3735
        %v3738 = vsel %vm1294, %v3674, 0
        %v3741 = vsel %vm1294, %v3676, 0
        %v3744 = vsel %vm1294, %v3678, 0
        %v3747 = vsel %vm1294, %v3680, 0
        %v3750 = vsel %vm1294, %v3682, 0
        %v3753 = vsel %vm1294, %v3684, 0
        %v3756 = vsel %vm1294, %v3686, 0
        %v3759 = vsel %vm1294, %v3688, 0
        %v3762 = vsel %vm1294, %v3706, 0
        %v3765 = vsel %vm1294, %v3708, 0
        %v3768 = vsel %vm1294, %v3710, 0
        %v3771 = vsel %vm1294, %v3712, 0
        %v3774 = vsel %vm1294, %v3714, 0
        %v3777 = vsel %vm1294, %v3716, 0
        %v3780 = vsel %vm1294, %v3718, 0
        %v3783 = vsel %vm1294, %v3720, 0
        %v3786 = vsel %vm1294, %v3722, 0
        %v3789 = vsel %vm1294, %v3724, 0
        %v3792 = vsel %vm1294, %v3726, 0
        %v3795 = vsel %vm1294, %v3728, 0
        %v3798 = vsel %vm1294, %v3730, 0
        %v3801 = vsel %vm1294, %v3732, 0
        %v3804 = vsel %vm1294, %v3734, 0
        %v3807 = vsel %vm1294, %v3736, 0
        %3809 = vmatprep.subr.bf16.mxu0 0
        %3810 = vmatpush1.bf16.xpose.msra.mxu0 %v3762
        %3811 = vmatprep.subr.bf16.mxu0 0
        %3812 = vmatpush1.bf16.xpose.msra.mxu0 %v3765
        %3813 = vmatprep.subr.bf16.mxu0 0
        %3814 = vmatpush1.bf16.xpose.msra.mxu0 %v3768
        %3815 = vmatprep.subr.bf16.mxu0 0
        %3816 = vmatpush1.bf16.xpose.msra.mxu0 %v3771
        %3817 = vmatprep.subr.bf16.mxu0 0
        %3818 = vmatpush1.bf16.xpose.msra.mxu0 %v3774
        %3819 = vmatprep.subr.bf16.mxu0 0
        %3820 = vmatpush1.bf16.xpose.msra.mxu0 %v3777
        %3821 = vmatprep.subr.bf16.mxu0 0
        %3822 = vmatpush1.bf16.xpose.msra.mxu0 %v3780
        %3823 = vmatprep.subr.bf16.mxu0 0
        %3824 = vmatpush1.bf16.xpose.msra.mxu0 %v3783
        %3825 = vmatprep.subr.bf16.mxu0 0
        %3826 = vmatpush1.bf16.xpose.msra.mxu0 %v3786
        %3827 = vmatprep.subr.bf16.mxu0 0
        %3828 = vmatpush1.bf16.xpose.msra.mxu0 %v3789
        %3829 = vmatprep.subr.bf16.mxu0 0
        %3830 = vmatpush1.bf16.xpose.msra.mxu0 %v3792
        %3831 = vmatprep.subr.bf16.mxu0 0
        %3832 = vmatpush1.bf16.xpose.msra.mxu0 %v3795
        %3833 = vmatprep.subr.bf16.mxu0 0
        %3834 = vmatpush1.bf16.xpose.msra.mxu0 %v3798
        %3835 = vmatprep.subr.bf16.mxu0 0
        %3836 = vmatpush1.bf16.xpose.msra.mxu0 %v3801
        %3837 = vmatprep.subr.bf16.mxu0 0
        %3838 = vmatpush1.bf16.xpose.msra.mxu0 %v3804
        %3839 = vmatprep.subr.bf16.mxu0 0
        %3840 = vmatpush1.bf16.xpose.msra.mxu0 %v3807
        %3841 = vmatprep.mubr.bf16.mxu0 0
        %3842 = vmatmul.mubr.bf16.gmra.mrb[0].mxu0 %v3738
        %v3843 = vpop.f32.mrb[0].mxu0
        %v3844 = vadd.f32 0.0, %v3843
        %v3845 = vpop.f32.mrb[0].mxu0
        %v3846 = vadd.f32 0.0, %v3845
        %v3847 = vpop.f32.mrb[0].mxu0
        %v3848 = vadd.f32 0.0, %v3847
        %v3849 = vpop.f32.mrb[0].mxu0
        %v3850 = vadd.f32 0.0, %v3849
        %3851 = vmatprep.mubr.bf16.mxu0 0
        %3852 = vmatmul.mubr.bf16.gmra.mrb[0].mxu0 %v3741
        %v3853 = vpop.f32.mrb[0].mxu0
        %v3854 = vadd.f32 0.0, %v3853
        %v3855 = vpop.f32.mrb[0].mxu0
        %v3856 = vadd.f32 0.0, %v3855
        %v3857 = vpop.f32.mrb[0].mxu0
        %v3858 = vadd.f32 0.0, %v3857
        %v3859 = vpop.f32.mrb[0].mxu0
        %v3860 = vadd.f32 0.0, %v3859
        %3861 = vmatprep.mubr.bf16.mxu0 0
        %3862 = vmatmul.mubr.bf16.gmra.mrb[0].mxu0 %v3744
        %v3863 = vpop.f32.mrb[0].mxu0
        %v3864 = vadd.f32 0.0, %v3863
        %v3865 = vpop.f32.mrb[0].mxu0
        %v3866 = vadd.f32 0.0, %v3865
        %v3867 = vpop.f32.mrb[0].mxu0
        %v3868 = vadd.f32 0.0, %v3867
        %v3869 = vpop.f32.mrb[0].mxu0
        %v3870 = vadd.f32 0.0, %v3869
        %3871 = vmatprep.mubr.bf16.mxu0 0
        %3872 = vmatmul.mubr.bf16.gmra.mrb[0].mxu0 %v3747
        %v3873 = vpop.f32.mrb[0].mxu0
        %v3874 = vadd.f32 0.0, %v3873
        %v3875 = vpop.f32.mrb[0].mxu0
        %v3876 = vadd.f32 0.0, %v3875
        %v3877 = vpop.f32.mrb[0].mxu0
        %v3878 = vadd.f32 0.0, %v3877
        %v3879 = vpop.f32.mrb[0].mxu0
        %v3880 = vadd.f32 0.0, %v3879
        %3881 = vmatprep.mubr.bf16.mxu0 0
        %3882 = vmatmul.mubr.bf16.gmra.mrb[0].mxu0 %v3750
        %v3883 = vpop.f32.mrb[0].mxu0
        %v3884 = vadd.f32 0.0, %v3883
        %v3885 = vpop.f32.mrb[0].mxu0
        %v3886 = vadd.f32 0.0, %v3885
        %v3887 = vpop.f32.mrb[0].mxu0
        %v3888 = vadd.f32 0.0, %v3887
        %v3889 = vpop.f32.mrb[0].mxu0
        %v3890 = vadd.f32 0.0, %v3889
        %3891 = vmatprep.mubr.bf16.mxu0 0
        %3892 = vmatmul.mubr.bf16.gmra.mrb[0].mxu0 %v3753
        %v3893 = vpop.f32.mrb[0].mxu0
        %v3894 = vadd.f32 0.0, %v3893
        %v3895 = vpop.f32.mrb[0].mxu0
        %v3896 = vadd.f32 0.0, %v3895
        %v3897 = vpop.f32.mrb[0].mxu0
        %v3898 = vadd.f32 0.0, %v3897
        %v3899 = vpop.f32.mrb[0].mxu0
        %v3900 = vadd.f32 0.0, %v3899
        %3901 = vmatprep.mubr.bf16.mxu0 0
        %3902 = vmatmul.mubr.bf16.gmra.mrb[0].mxu0 %v3756
        %v3903 = vpop.f32.mrb[0].mxu0
        %v3904 = vadd.f32 0.0, %v3903
        %v3905 = vpop.f32.mrb[0].mxu0
        %v3906 = vadd.f32 0.0, %v3905
        %v3907 = vpop.f32.mrb[0].mxu0
        %v3908 = vadd.f32 0.0, %v3907
        %v3909 = vpop.f32.mrb[0].mxu0
        %v3910 = vadd.f32 0.0, %v3909
        %3911 = vmatprep.mubr.bf16.mxu0 0
        %3912 = vmatmul.mubr.bf16.gmra.mrb[0].mxu0 %v3759
        %v3913 = vpop.f32.mrb[0].mxu0
        %v3914 = vadd.f32 0.0, %v3913
        %v3915 = vpop.f32.mrb[0].mxu0
        %v3916 = vadd.f32 0.0, %v3915
        %v3917 = vpop.f32.mrb[0].mxu0
        %v3918 = vadd.f32 0.0, %v3917
        %v3919 = vpop.f32.mrb[0].mxu0
        %v3920 = vadd.f32 0.0, %v3919
        %3921 = vdwg.mxu0
        %v3922 = vmax.f32 %v3844, %v3846
        %3923 = vmax.xlane.f32.xlu0 %v3922
        %v3924 = vpop.xlane.xlu0 %3923
        %v3925 = vmax.f32 %v3848, %v3850
        %3926 = vmax.xlane.f32.xlu0 %v3925
        %v3927 = vpop.xlane.xlu0 %3926
        %v3928 = vmax.f32 %v3854, %v3856
        %3929 = vmax.xlane.f32.xlu0 %v3928
        %v3930 = vpop.xlane.xlu0 %3929
        %v3931 = vmax.f32 %v3858, %v3860
        %3932 = vmax.xlane.f32.xlu0 %v3931
        %v3933 = vpop.xlane.xlu0 %3932
        %v3934 = vmax.f32 %v3864, %v3866
        %3935 = vmax.xlane.f32.xlu0 %v3934
        %v3936 = vpop.xlane.xlu0 %3935
        %v3937 = vmax.f32 %v3868, %v3870
        %3938 = vmax.xlane.f32.xlu0 %v3937
        %v3939 = vpop.xlane.xlu0 %3938
        %v3940 = vmax.f32 %v3874, %v3876
        %3941 = vmax.xlane.f32.xlu0 %v3940
        %v3942 = vpop.xlane.xlu0 %3941
        %v3943 = vmax.f32 %v3878, %v3880
        %3944 = vmax.xlane.f32.xlu0 %v3943
        %v3945 = vpop.xlane.xlu0 %3944
        %v3946 = vmax.f32 %v3884, %v3886
        %3947 = vmax.xlane.f32.xlu0 %v3946
        %v3948 = vpop.xlane.xlu0 %3947
        %v3949 = vmax.f32 %v3888, %v3890
        %3950 = vmax.xlane.f32.xlu0 %v3949
        %v3951 = vpop.xlane.xlu0 %3950
        %v3952 = vmax.f32 %v3894, %v3896
        %3953 = vmax.xlane.f32.xlu0 %v3952
        %v3954 = vpop.xlane.xlu0 %3953
        %v3955 = vmax.f32 %v3898, %v3900
        %3956 = vmax.xlane.f32.xlu0 %v3955
        %v3957 = vpop.xlane.xlu0 %3956
        %v3958 = vmax.f32 %v3904, %v3906
        %3959 = vmax.xlane.f32.xlu0 %v3958
        %v3960 = vpop.xlane.xlu0 %3959
        %v3961 = vmax.f32 %v3908, %v3910
        %3962 = vmax.xlane.f32.xlu0 %v3961
        %v3963 = vpop.xlane.xlu0 %3962
        %v3964 = vmax.f32 %v3914, %v3916
        %3965 = vmax.xlane.f32.xlu0 %v3964
        %v3966 = vpop.xlane.xlu0 %3965
        %v3967 = vmax.f32 %v3918, %v3920
        %3968 = vmax.xlane.f32.xlu0 %v3967
        %v3969 = vpop.xlane.xlu0 %3968
        %v3970 = vsub.f32 %v3844, %v3924
        %v3971 = vsub.f32 %v3846, %v3924
        %v3972 = vsub.f32 %v3848, %v3927
        %v3973 = vsub.f32 %v3850, %v3927
        %v3974 = vsub.f32 %v3854, %v3930
        %v3975 = vsub.f32 %v3856, %v3930
        %v3976 = vsub.f32 %v3858, %v3933
        %v3977 = vsub.f32 %v3860, %v3933
        %v3978 = vsub.f32 %v3864, %v3936
        %v3979 = vsub.f32 %v3866, %v3936
        %v3980 = vsub.f32 %v3868, %v3939
        %v3981 = vsub.f32 %v3870, %v3939
        %v3982 = vsub.f32 %v3874, %v3942
        %v3983 = vsub.f32 %v3876, %v3942
        %v3984 = vsub.f32 %v3878, %v3945
        %v3985 = vsub.f32 %v3880, %v3945
        %v3986 = vsub.f32 %v3884, %v3948
        %v3987 = vsub.f32 %v3886, %v3948
        %v3988 = vsub.f32 %v3888, %v3951
        %v3989 = vsub.f32 %v3890, %v3951
        %v3990 = vsub.f32 %v3894, %v3954
        %v3991 = vsub.f32 %v3896, %v3954
        %v3992 = vsub.f32 %v3898, %v3957
        %v3993 = vsub.f32 %v3900, %v3957
        %v3994 = vsub.f32 %v3904, %v3960
        %v3995 = vsub.f32 %v3906, %v3960
        %v3996 = vsub.f32 %v3908, %v3963
        %v3997 = vsub.f32 %v3910, %v3963
        %v3998 = vsub.f32 %v3914, %v3966
        %v3999 = vsub.f32 %v3916, %v3966
        %v4000 = vsub.f32 %v3918, %v3969
        %v4001 = vsub.f32 %v3920, %v3969
        %v4002 = vmul.f32 %v3970, 1.442695
        %v4003 = vpow.pop %v4002
        %v4004 = vmul.f32 %v3971, 1.442695
        %v4005 = vpow.pop %v4004
        %v4006 = vmul.f32 %v3972, 1.442695
        %v4007 = vpow.pop %v4006
        %v4008 = vmul.f32 %v3973, 1.442695
        %v4009 = vpow.pop %v4008
        %v4010 = vmul.f32 %v3974, 1.442695
        %v4011 = vpow.pop %v4010
        %v4012 = vmul.f32 %v3975, 1.442695
        %v4013 = vpow.pop %v4012
        %v4014 = vmul.f32 %v3976, 1.442695
        %v4015 = vpow.pop %v4014
        %v4016 = vmul.f32 %v3977, 1.442695
        %v4017 = vpow.pop %v4016
        %v4018 = vmul.f32 %v3978, 1.442695
        %v4019 = vpow.pop %v4018
        %v4020 = vmul.f32 %v3979, 1.442695
        %v4021 = vpow.pop %v4020
        %v4022 = vmul.f32 %v3980, 1.442695
        %v4023 = vpow.pop %v4022
        %v4024 = vmul.f32 %v3981, 1.442695
        %v4025 = vpow.pop %v4024
        %v4026 = vmul.f32 %v3982, 1.442695
        %v4027 = vpow.pop %v4026
        %v4028 = vmul.f32 %v3983, 1.442695
        %v4029 = vpow.pop %v4028
        %v4030 = vmul.f32 %v3984, 1.442695
        %v4031 = vpow.pop %v4030
        %v4032 = vmul.f32 %v3985, 1.442695
        %v4033 = vpow.pop %v4032
        %v4034 = vmul.f32 %v3986, 1.442695
        %v4035 = vpow.pop %v4034
        %v4036 = vmul.f32 %v3987, 1.442695
        %v4037 = vpow.pop %v4036
        %v4038 = vmul.f32 %v3988, 1.442695
        %v4039 = vpow.pop %v4038
        %v4040 = vmul.f32 %v3989, 1.442695
        %v4041 = vpow.pop %v4040
        %v4042 = vmul.f32 %v3990, 1.442695
        %v4043 = vpow.pop %v4042
        %v4044 = vmul.f32 %v3991, 1.442695
        %v4045 = vpow.pop %v4044
        %v4046 = vmul.f32 %v3992, 1.442695
        %v4047 = vpow.pop %v4046
        %v4048 = vmul.f32 %v3993, 1.442695
        %v4049 = vpow.pop %v4048
        %v4050 = vmul.f32 %v3994, 1.442695
        %v4051 = vpow.pop %v4050
        %v4052 = vmul.f32 %v3995, 1.442695
        %v4053 = vpow.pop %v4052
        %v4054 = vmul.f32 %v3996, 1.442695
        %v4055 = vpow.pop %v4054
        %v4056 = vmul.f32 %v3997, 1.442695
        %v4057 = vpow.pop %v4056
        %v4058 = vmul.f32 %v3998, 1.442695
        %v4059 = vpow.pop %v4058
        %v4060 = vmul.f32 %v3999, 1.442695
        %v4061 = vpow.pop %v4060
        %v4062 = vmul.f32 %v4000, 1.442695
        %v4063 = vpow.pop %v4062
        %v4064 = vmul.f32 %v4001, 1.442695
        %v4065 = vpow.pop %v4064
        %v4066 = vadd.f32 %v4003, %v4005
        %4067 = vadd.xlane.f32.xlu0 %v4066
        %v4068 = vpop.xlane.xlu0 %4067
        %v4069 = vadd.f32 %v4007, %v4009
        %4070 = vadd.xlane.f32.xlu0 %v4069
        %v4071 = vpop.xlane.xlu0 %4070
        %v4072 = vadd.f32 %v4011, %v4013
        %4073 = vadd.xlane.f32.xlu0 %v4072
        %v4074 = vpop.xlane.xlu0 %4073
        %v4075 = vadd.f32 %v4015, %v4017
        %4076 = vadd.xlane.f32.xlu0 %v4075
        %v4077 = vpop.xlane.xlu0 %4076
        %v4078 = vadd.f32 %v4019, %v4021
        %4079 = vadd.xlane.f32.xlu0 %v4078
        %v4080 = vpop.xlane.xlu0 %4079
        %v4081 = vadd.f32 %v4023, %v4025
        %4082 = vadd.xlane.f32.xlu0 %v4081
        %v4083 = vpop.xlane.xlu0 %4082
        %v4084 = vadd.f32 %v4027, %v4029
        %4085 = vadd.xlane.f32.xlu0 %v4084
        %v4086 = vpop.xlane.xlu0 %4085
        %v4087 = vadd.f32 %v4031, %v4033
        %4088 = vadd.xlane.f32.xlu0 %v4087
        %v4089 = vpop.xlane.xlu0 %4088
        %v4090 = vadd.f32 %v4035, %v4037
        %4091 = vadd.xlane.f32.xlu0 %v4090
        %v4092 = vpop.xlane.xlu0 %4091
        %v4093 = vadd.f32 %v4039, %v4041
        %4094 = vadd.xlane.f32.xlu0 %v4093
        %v4095 = vpop.xlane.xlu0 %4094
        %v4096 = vadd.f32 %v4043, %v4045
        %4097 = vadd.xlane.f32.xlu0 %v4096
        %v4098 = vpop.xlane.xlu0 %4097
        %v4099 = vadd.f32 %v4047, %v4049
        %4100 = vadd.xlane.f32.xlu0 %v4099
        %v4101 = vpop.xlane.xlu0 %4100
        %v4102 = vadd.f32 %v4051, %v4053
        %4103 = vadd.xlane.f32.xlu0 %v4102
        %v4104 = vpop.xlane.xlu0 %4103
        %v4105 = vadd.f32 %v4055, %v4057
        %4106 = vadd.xlane.f32.xlu0 %v4105
        %v4107 = vpop.xlane.xlu0 %4106
        %v4108 = vadd.f32 %v4059, %v4061
        %4109 = vadd.xlane.f32.xlu0 %v4108
        %v4110 = vpop.xlane.xlu0 %4109
        %v4111 = vadd.f32 %v4063, %v4065
        %4112 = vadd.xlane.f32.xlu0 %v4111
        %v4113 = vpop.xlane.xlu0 %4112
        %v4114 = vrcp.pop %v4068
        %v4115 = vrcp.pop %v4071
        %v4116 = vrcp.pop %v4074
        %v4117 = vrcp.pop %v4077
        %v4118 = vrcp.pop %v4080
        %v4119 = vrcp.pop %v4083
        %v4120 = vrcp.pop %v4086
        %v4121 = vrcp.pop %v4089
        %v4122 = vrcp.pop %v4092
        %v4123 = vrcp.pop %v4095
        %v4124 = vrcp.pop %v4098
        %v4125 = vrcp.pop %v4101
        %v4126 = vrcp.pop %v4104
        %v4127 = vrcp.pop %v4107
        %v4128 = vrcp.pop %v4110
        %v4129 = vrcp.pop %v4113
        %v4130 = vmul.f32 %v4003, %v4114
        %v4131 = vmul.f32 %v4005, %v4114
        %v4132 = vmul.f32 %v4007, %v4115
        %v4133 = vmul.f32 %v4009, %v4115
        %v4134 = vmul.f32 %v4011, %v4116
        %v4135 = vmul.f32 %v4013, %v4116
        %v4136 = vmul.f32 %v4015, %v4117
        %v4137 = vmul.f32 %v4017, %v4117
        %v4138 = vmul.f32 %v4019, %v4118
        %v4139 = vmul.f32 %v4021, %v4118
        %v4140 = vmul.f32 %v4023, %v4119
        %v4141 = vmul.f32 %v4025, %v4119
        %v4142 = vmul.f32 %v4027, %v4120
        %v4143 = vmul.f32 %v4029, %v4120
        %v4144 = vmul.f32 %v4031, %v4121
        %v4145 = vmul.f32 %v4033, %v4121
        %v4146 = vmul.f32 %v4035, %v4122
        %v4147 = vmul.f32 %v4037, %v4122
        %v4148 = vmul.f32 %v4039, %v4123
        %v4149 = vmul.f32 %v4041, %v4123
        %v4150 = vmul.f32 %v4043, %v4124
        %v4151 = vmul.f32 %v4045, %v4124
        %v4152 = vmul.f32 %v4047, %v4125
        %v4153 = vmul.f32 %v4049, %v4125
        %v4154 = vmul.f32 %v4051, %v4126
        %v4155 = vmul.f32 %v4053, %v4126
        %v4156 = vmul.f32 %v4055, %v4127
        %v4157 = vmul.f32 %v4057, %v4127
        %v4158 = vmul.f32 %v4059, %v4128
        %v4159 = vmul.f32 %v4061, %v4128
        %v4160 = vmul.f32 %v4063, %v4129
        %v4161 = vmul.f32 %v4065, %v4129
        %v4162 = vpack.c.bf16 %v4132, %v4130
        %v4163 = vpack.c.bf16 %v4133, %v4131
        %v4164 = vpack.c.bf16 %v4136, %v4134
        %v4165 = vpack.c.bf16 %v4137, %v4135
        %v4166 = vpack.c.bf16 %v4140, %v4138
        %v4167 = vpack.c.bf16 %v4141, %v4139
        %v4168 = vpack.c.bf16 %v4144, %v4142
        %v4169 = vpack.c.bf16 %v4145, %v4143
        %v4170 = vpack.c.bf16 %v4148, %v4146
        %v4171 = vpack.c.bf16 %v4149, %v4147
        %v4172 = vpack.c.bf16 %v4152, %v4150
        %v4173 = vpack.c.bf16 %v4153, %v4151
        %v4174 = vpack.c.bf16 %v4156, %v4154
        %v4175 = vpack.c.bf16 %v4157, %v4155
        %v4176 = vpack.c.bf16 %v4160, %v4158
        %v4177 = vpack.c.bf16 %v4161, %v4159
        %v4194 = vunpack.c.l.b16 %v4162
        %v4195 = vunpack.c.l.b16 %v4163
        %v4196 = vunpack.c.h.b16 %v4162
        %v4197 = vunpack.c.h.b16 %v4163
        %v4198 = vunpack.c.l.b16 %v4164
        %v4199 = vunpack.c.l.b16 %v4165
        %v4200 = vunpack.c.h.b16 %v4164
        %v4201 = vunpack.c.h.b16 %v4165
        %v4202 = vunpack.c.l.b16 %v4166
        %v4203 = vunpack.c.l.b16 %v4167
        %v4204 = vunpack.c.h.b16 %v4166
        %v4205 = vunpack.c.h.b16 %v4167
        %v4206 = vunpack.c.l.b16 %v4168
        %v4207 = vunpack.c.l.b16 %v4169
        %v4208 = vunpack.c.h.b16 %v4168
        %v4209 = vunpack.c.h.b16 %v4169
        %v4210 = vunpack.c.l.b16 %v4170
        %v4211 = vunpack.c.l.b16 %v4171
        %v4212 = vunpack.c.h.b16 %v4170
        %v4213 = vunpack.c.h.b16 %v4171
        %v4214 = vunpack.c.l.b16 %v4172
        %v4215 = vunpack.c.l.b16 %v4173
        %v4216 = vunpack.c.h.b16 %v4172
        %v4217 = vunpack.c.h.b16 %v4173
        %v4218 = vunpack.c.l.b16 %v4174
        %v4219 = vunpack.c.l.b16 %v4175
        %v4220 = vunpack.c.h.b16 %v4174
        %v4221 = vunpack.c.h.b16 %v4175
        %v4222 = vunpack.c.l.b16 %v4176
        %v4223 = vunpack.c.l.b16 %v4177
        %v4224 = vunpack.c.h.b16 %v4176
        %v4225 = vunpack.c.h.b16 %v4177
        %v4226 = vpack.c.b16 %v4195, %v4194
        %v4227 = vpack.c.b16 %v4197, %v4196
        %v4228 = vpack.c.b16 %v4199, %v4198
        %v4229 = vpack.c.b16 %v4201, %v4200
        %v4230 = vpack.c.b16 %v4203, %v4202
        %v4231 = vpack.c.b16 %v4205, %v4204
        %v4232 = vpack.c.b16 %v4207, %v4206
        %v4233 = vpack.c.b16 %v4209, %v4208
        %v4234 = vpack.c.b16 %v4211, %v4210
        %v4235 = vpack.c.b16 %v4213, %v4212
        %v4236 = vpack.c.b16 %v4215, %v4214
        %v4237 = vpack.c.b16 %v4217, %v4216
        %v4238 = vpack.c.b16 %v4219, %v4218
        %v4239 = vpack.c.b16 %v4221, %v4220
        %v4240 = vpack.c.b16 %v4223, %v4222
        %v4241 = vpack.c.b16 %v4225, %v4224
        %s4258 = scalar_lea.vmem %s639, 384 [#allocation16]
        %4259 = vst [vmem:[%s4258] sm:$0xff] %v4226
        %4260 = vst [vmem:[%s4258 + $0x8] sm:$0xff] %v4227
        %4261 = vst [vmem:[%s4258 + $0x10] sm:$0xff] %v4228
        %4262 = vst [vmem:[%s4258 + $0x18] sm:$0xff] %v4229
        %4263 = vst [vmem:[%s4258 + $0x20] sm:$0xff] %v4230
        %4264 = vst [vmem:[%s4258 + $0x28] sm:$0xff] %v4231
        %4265 = vst [vmem:[%s4258 + $0x30] sm:$0xff] %v4232
        %4266 = vst [vmem:[%s4258 + $0x38] sm:$0xff] %v4233
        %4267 = vst [vmem:[%s4258 + $0x40] sm:$0xff] %v4234
        %4268 = vst [vmem:[%s4258 + $0x48] sm:$0xff] %v4235
        %4269 = vst [vmem:[%s4258 + $0x50] sm:$0xff] %v4236
        %4270 = vst [vmem:[%s4258 + $0x58] sm:$0xff] %v4237
        %4271 = vst [vmem:[%s4258 + $0x60] sm:$0xff] %v4238
        %4272 = vst [vmem:[%s4258 + $0x68] sm:$0xff] %v4239
        %4273 = vst [vmem:[%s4258 + $0x70] sm:$0xff] %v4240
        %4274 = vst [vmem:[%s4258 + $0x78] sm:$0xff] %v4241
        %4291 = vrot.lane.b32.xlu0 %v3657, 32
        %v4292 = vpop.permute.xlu0 %4291
        %4293 = vrot.lane.b32.xlu0 %v3658, 32
        %v4294 = vpop.permute.xlu0 %4293
        %4295 = vrot.lane.b32.xlu0 %v3659, 32
        %v4296 = vpop.permute.xlu0 %4295
        %4297 = vrot.lane.b32.xlu0 %v3660, 32
        %v4298 = vpop.permute.xlu0 %4297
        %4299 = vrot.lane.b32.xlu0 %v3661, 32
        %v4300 = vpop.permute.xlu0 %4299
        %4301 = vrot.lane.b32.xlu0 %v3662, 32
        %v4302 = vpop.permute.xlu0 %4301
        %4303 = vrot.lane.b32.xlu0 %v3663, 32
        %v4304 = vpop.permute.xlu0 %4303
        %4305 = vrot.lane.b32.xlu0 %v3664, 32
        %v4306 = vpop.permute.xlu0 %4305
        %4307 = vrot.lane.b32.xlu0 %v3665, 32
        %v4308 = vpop.permute.xlu0 %4307
        %4309 = vrot.lane.b32.xlu0 %v3666, 32
        %v4310 = vpop.permute.xlu0 %4309
        %4311 = vrot.lane.b32.xlu0 %v3667, 32
        %v4312 = vpop.permute.xlu0 %4311
        %4313 = vrot.lane.b32.xlu0 %v3668, 32
        %v4314 = vpop.permute.xlu0 %4313
        %4315 = vrot.lane.b32.xlu0 %v3669, 32
        %v4316 = vpop.permute.xlu0 %4315
        %4317 = vrot.lane.b32.xlu0 %v3670, 32
        %v4318 = vpop.permute.xlu0 %4317
        %4319 = vrot.lane.b32.xlu0 %v3671, 32
        %v4320 = vpop.permute.xlu0 %4319
        %4321 = vrot.lane.b32.xlu0 %v3672, 32
        %v4322 = vpop.permute.xlu0 %4321
        %4339 = vmatprep.subr.bf16.mxu0 0
        %4340 = vmatpush1.bf16.msra.mxu0 %v4292
        %4341 = vmatprep.subr.bf16.mxu0 0
        %4342 = vmatpush1.bf16.msra.mxu0 %v4294
        %4343 = vmatprep.subr.bf16.mxu0 0
        %4344 = vmatpush1.bf16.msra.mxu0 %v4296
        %4345 = vmatprep.subr.bf16.mxu0 0
        %4346 = vmatpush1.bf16.msra.mxu0 %v4298
        %4347 = vmatprep.subr.bf16.mxu0 0
        %4348 = vmatpush1.bf16.msra.mxu0 %v4300
        %4349 = vmatprep.subr.bf16.mxu0 0
        %4350 = vmatpush1.bf16.msra.mxu0 %v4302
        %4351 = vmatprep.subr.bf16.mxu0 0
        %4352 = vmatpush1.bf16.msra.mxu0 %v4304
        %4353 = vmatprep.subr.bf16.mxu0 0
        %4354 = vmatpush1.bf16.msra.mxu0 %v4306
        %4355 = vmatprep.subr.bf16.mxu0 0
        %4356 = vmatpush1.bf16.msra.mxu0 %v4308
        %4357 = vmatprep.subr.bf16.mxu0 0
        %4358 = vmatpush1.bf16.msra.mxu0 %v4310
        %4359 = vmatprep.subr.bf16.mxu0 0
        %4360 = vmatpush1.bf16.msra.mxu0 %v4312
        %4361 = vmatprep.subr.bf16.mxu0 0
        %4362 = vmatpush1.bf16.msra.mxu0 %v4314
        %4363 = vmatprep.subr.bf16.mxu0 0
        %4364 = vmatpush1.bf16.msra.mxu0 %v4316
        %4365 = vmatprep.subr.bf16.mxu0 0
        %4366 = vmatpush1.bf16.msra.mxu0 %v4318
        %4367 = vmatprep.subr.bf16.mxu0 0
        %4368 = vmatpush1.bf16.msra.mxu0 %v4320
        %4369 = vmatprep.subr.bf16.mxu0 0
        %4370 = vmatpush1.bf16.msra.mxu0 %v4322
        %4371 = vmatprep.mubr.bf16.mxu0 %v4163
        %4372 = vmatmul.mubr.bf16.gmra.mrb[0].mxu0 %v4162
        %v4373 = vpop.f32.mrb[0].mxu0
        %v4374 = vadd.f32 0.0, %v4373
        %v4375 = vpop.f32.mrb[0].mxu0
        %v4376 = vpop.f32.mrb[0].mxu0
        %v4377 = vadd.f32 0.0, %v4376
        %v4378 = vpop.f32.mrb[0].mxu0
        %4379 = vmatprep.mubr.bf16.mxu0 %v4165
        %4380 = vmatmul.mubr.bf16.gmra.mrb[0].mxu0 %v4164
        %v4381 = vpop.f32.mrb[0].mxu0
        %v4382 = vadd.f32 0.0, %v4381
        %v4383 = vpop.f32.mrb[0].mxu0
        %v4384 = vpop.f32.mrb[0].mxu0
        %v4385 = vadd.f32 0.0, %v4384
        %v4386 = vpop.f32.mrb[0].mxu0
        %4387 = vmatprep.mubr.bf16.mxu0 %v4167
        %4388 = vmatmul.mubr.bf16.gmra.mrb[0].mxu0 %v4166
        %v4389 = vpop.f32.mrb[0].mxu0
        %v4390 = vadd.f32 0.0, %v4389
        %v4391 = vpop.f32.mrb[0].mxu0
        %v4392 = vpop.f32.mrb[0].mxu0
        %v4393 = vadd.f32 0.0, %v4392
        %v4394 = vpop.f32.mrb[0].mxu0
        %4395 = vmatprep.mubr.bf16.mxu0 %v4169
        %4396 = vmatmul.mubr.bf16.gmra.mrb[0].mxu0 %v4168
        %v4397 = vpop.f32.mrb[0].mxu0
        %v4398 = vadd.f32 0.0, %v4397
        %v4399 = vpop.f32.mrb[0].mxu0
        %v4400 = vpop.f32.mrb[0].mxu0
        %v4401 = vadd.f32 0.0, %v4400
        %v4402 = vpop.f32.mrb[0].mxu0
        %4403 = vmatprep.mubr.bf16.mxu0 %v4171
        %4404 = vmatmul.mubr.bf16.gmra.mrb[0].mxu0 %v4170
        %v4405 = vpop.f32.mrb[0].mxu0
        %v4406 = vadd.f32 0.0, %v4405
        %v4407 = vpop.f32.mrb[0].mxu0
        %v4408 = vpop.f32.mrb[0].mxu0
        %v4409 = vadd.f32 0.0, %v4408
        %v4410 = vpop.f32.mrb[0].mxu0
        %4411 = vmatprep.mubr.bf16.mxu0 %v4173
        %4412 = vmatmul.mubr.bf16.gmra.mrb[0].mxu0 %v4172
        %v4413 = vpop.f32.mrb[0].mxu0
        %v4414 = vadd.f32 0.0, %v4413
        %v4415 = vpop.f32.mrb[0].mxu0
        %v4416 = vpop.f32.mrb[0].mxu0
        %v4417 = vadd.f32 0.0, %v4416
        %v4418 = vpop.f32.mrb[0].mxu0
        %4419 = vmatprep.mubr.bf16.mxu0 %v4175
        %4420 = vmatmul.mubr.bf16.gmra.mrb[0].mxu0 %v4174
        %v4421 = vpop.f32.mrb[0].mxu0
        %v4422 = vadd.f32 0.0, %v4421
        %v4423 = vpop.f32.mrb[0].mxu0
        %v4424 = vpop.f32.mrb[0].mxu0
        %v4425 = vadd.f32 0.0, %v4424
        %v4426 = vpop.f32.mrb[0].mxu0
        %4427 = vmatprep.mubr.bf16.mxu0 %v4177
        %4428 = vmatmul.mubr.bf16.gmra.mrb[0].mxu0 %v4176
        %v4429 = vpop.f32.mrb[0].mxu0
        %v4430 = vadd.f32 0.0, %v4429
        %v4431 = vpop.f32.mrb[0].mxu0
        %v4432 = vpop.f32.mrb[0].mxu0
        %v4433 = vadd.f32 0.0, %v4432
        %v4434 = vpop.f32.mrb[0].mxu0
        %4435 = vdwg.mxu0
        %v4436 = vpack.c.bf16 %v4377, %v4374
        %v4437 = vpack.c.bf16 %v4385, %v4382
        %v4438 = vpack.c.bf16 %v4393, %v4390
        %v4439 = vpack.c.bf16 %v4401, %v4398
        %v4440 = vpack.c.bf16 %v4409, %v4406
        %v4441 = vpack.c.bf16 %v4417, %v4414
        %v4442 = vpack.c.bf16 %v4425, %v4422
        %v4443 = vpack.c.bf16 %v4433, %v4430
        %4452 = vrot.lane.b32.xlu0 %v4436, 96
        %v4453 = vpop.permute.xlu0 %4452
        %4454 = vrot.lane.b32.xlu0 %v4437, 96
        %v4455 = vpop.permute.xlu0 %4454
        %4456 = vrot.lane.b32.xlu0 %v4438, 96
        %v4457 = vpop.permute.xlu0 %4456
        %4458 = vrot.lane.b32.xlu0 %v4439, 96
        %v4459 = vpop.permute.xlu0 %4458
        %4460 = vrot.lane.b32.xlu0 %v4440, 96
        %v4461 = vpop.permute.xlu0 %4460
        %4462 = vrot.lane.b32.xlu0 %v4441, 96
        %v4463 = vpop.permute.xlu0 %4462
        %4464 = vrot.lane.b32.xlu0 %v4442, 96
        %v4465 = vpop.permute.xlu0 %4464
        %4466 = vrot.lane.b32.xlu0 %v4443, 96
        %v4467 = vpop.permute.xlu0 %4466
        %vm4476 = vcmask 1048320
        %4477 = vst.msk [vmem:[#allocation3] sm:$0xff] %vm4476, %v4453
        %4478 = vst.msk [vmem:[#allocation3 + $0x8] sm:$0xff] %vm4476, %v4455
        %4479 = vst.msk [vmem:[#allocation3 + $0x10] sm:$0xff] %vm4476, %v4457
        %4480 = vst.msk [vmem:[#allocation3 + $0x18] sm:$0xff] %vm4476, %v4459
        %4481 = vst.msk [vmem:[#allocation3 + $0x20] sm:$0xff] %vm4476, %v4461
        %4482 = vst.msk [vmem:[#allocation3 + $0x28] sm:$0xff] %vm4476, %v4463
        %4483 = vst.msk [vmem:[#allocation3 + $0x30] sm:$0xff] %vm4476, %v4465
        %4484 = vst.msk [vmem:[#allocation3 + $0x38] sm:$0xff] %vm4476, %v4467
        %v4485 = vld [vmem:[#allocation3] sm:$0xff]
        %v4486 = vld [vmem:[#allocation3 + $0x8] sm:$0xff]
        %v4487 = vld [vmem:[#allocation3 + $0x10] sm:$0xff]
        %v4488 = vld [vmem:[#allocation3 + $0x18] sm:$0xff]
        %v4489 = vld [vmem:[#allocation3 + $0x20] sm:$0xff]
        %v4490 = vld [vmem:[#allocation3 + $0x28] sm:$0xff]
        %v4491 = vld [vmem:[#allocation3 + $0x30] sm:$0xff]
        %v4492 = vld [vmem:[#allocation3 + $0x38] sm:$0xff]
        %v4493 = vld [vmem:[#allocation10] sm:$0xf]
        %v4494 = vld [vmem:[#allocation10 + $0x4] sm:$0xf]
        %v4495 = vld [vmem:[#allocation10 + $0x8] sm:$0xf]
        %v4496 = vld [vmem:[#allocation10 + $0xc] sm:$0xf]
        %v4497 = vld [vmem:[#allocation10 + $0x10] sm:$0xf]
        %v4498 = vld [vmem:[#allocation10 + $0x14] sm:$0xf]
        %v4499 = vld [vmem:[#allocation10 + $0x18] sm:$0xf]
        %v4500 = vld [vmem:[#allocation10 + $0x1c] sm:$0xf]
        %v4501 = vld [vmem:[#allocation10 + $0x20] sm:$0xf]
        %v4502 = vld [vmem:[#allocation10 + $0x24] sm:$0xf]
        %v4503 = vld [vmem:[#allocation10 + $0x28] sm:$0xf]
        %v4504 = vld [vmem:[#allocation10 + $0x2c] sm:$0xf]
        %v4505 = vld [vmem:[#allocation10 + $0x30] sm:$0xf]
        %v4506 = vld [vmem:[#allocation10 + $0x34] sm:$0xf]
        %v4507 = vld [vmem:[#allocation10 + $0x38] sm:$0xf]
        %v4508 = vld [vmem:[#allocation10 + $0x3c] sm:$0xf]
        %v4509 = vld [vmem:[%s6] sm:$0x1]
        %v4511 = vlaneseq
        %v4512 = vshrl.u32 %v4511, 7
        %v4513 = vsub.s32 0, %v4512
        %v4514 = vrot.slane %v4509, %v4513
        %v4532 = vunpack.c.l.b16 %v4493
        %v4533 = vunpack.c.l.b16 %v4494
        %v4534 = vunpack.c.l.b16 %v4495
        %v4535 = vunpack.c.l.b16 %v4496
        %v4536 = vunpack.c.l.b16 %v4497
        %v4537 = vunpack.c.l.b16 %v4498
        %v4538 = vunpack.c.l.b16 %v4499
        %v4539 = vunpack.c.l.b16 %v4500
        %v4540 = vunpack.c.l.b16 %v4501
        %v4541 = vunpack.c.l.b16 %v4502
        %v4542 = vunpack.c.l.b16 %v4503
        %v4543 = vunpack.c.l.b16 %v4504
        %v4544 = vunpack.c.l.b16 %v4505
        %v4545 = vunpack.c.l.b16 %v4506
        %v4546 = vunpack.c.l.b16 %v4507
        %v4547 = vunpack.c.l.b16 %v4508
        %v4548 = vpack.c.b16 %v4533, %v4532
        %v4549 = vpack.c.b16 %v4535, %v4534
        %v4550 = vpack.c.b16 %v4537, %v4536
        %v4551 = vpack.c.b16 %v4539, %v4538
        %v4552 = vpack.c.b16 %v4541, %v4540
        %v4553 = vpack.c.b16 %v4543, %v4542
        %v4554 = vpack.c.b16 %v4545, %v4544
        %v4555 = vpack.c.b16 %v4547, %v4546
        %4564 = vmatprep.subr.bf16.mxu0 0
        %4565 = vmatpush1.bf16.msra.mxu0 %v4548
        %4566 = vmatprep.subr.bf16.mxu0 0
        %4567 = vmatpush1.bf16.msra.mxu0 %v4549
        %4568 = vmatprep.subr.bf16.mxu0 0
        %4569 = vmatpush1.bf16.msra.mxu0 %v4550
        %4570 = vmatprep.subr.bf16.mxu0 0
        %4571 = vmatpush1.bf16.msra.mxu0 %v4551
        %4572 = vmatprep.subr.bf16.mxu0 0
        %4573 = vmatpush1.bf16.msra.mxu0 %v4552
        %4574 = vmatprep.subr.bf16.mxu0 0
        %4575 = vmatpush1.bf16.msra.mxu0 %v4553
        %4576 = vmatprep.subr.bf16.mxu0 0
        %4577 = vmatpush1.bf16.msra.mxu0 %v4554
        %4578 = vmatprep.subr.bf16.mxu0 0
        %4579 = vmatpush1.bf16.msra.mxu0 %v4555
        %4580 = vmatprep.subr.bf16.mxu0 0
        %4581 = vmatpush1.bf16.msra.mxu0 0
        %4582 = vmatprep.subr.bf16.mxu0 0
        %4583 = vmatpush1.bf16.msra.mxu0 0
        %4584 = vmatprep.subr.bf16.mxu0 0
        %4585 = vmatpush1.bf16.msra.mxu0 0
        %4586 = vmatprep.subr.bf16.mxu0 0
        %4587 = vmatpush1.bf16.msra.mxu0 0
        %4588 = vmatprep.subr.bf16.mxu0 0
        %4589 = vmatpush1.bf16.msra.mxu0 0
        %4590 = vmatprep.subr.bf16.mxu0 0
        %4591 = vmatpush1.bf16.msra.mxu0 0
        %4592 = vmatprep.subr.bf16.mxu0 0
        %4593 = vmatpush1.bf16.msra.mxu0 0
        %4594 = vmatprep.subr.bf16.mxu0 0
        %4595 = vmatpush1.bf16.msra.mxu0 0
        %4596 = vmatprep.mubr.bf16.mxu0 0
        %4597 = vmatmul.mubr.bf16.gmra.mrb[0].mxu0 %v4485
        %v4598 = vpop.f32.mrb[0].mxu0
        %v4599 = vadd.f32 %v4514, %v4598
        %v4600 = vpop.f32.mrb[0].mxu0
        %v4601 = vpop.f32.mrb[0].mxu0
        %v4602 = vadd.f32 %v4514, %v4601
        %v4603 = vpop.f32.mrb[0].mxu0
        %4604 = vmatprep.mubr.bf16.mxu0 0
        %4605 = vmatmul.mubr.bf16.gmra.mrb[0].mxu0 %v4486
        %v4606 = vpop.f32.mrb[0].mxu0
        %v4607 = vadd.f32 %v4514, %v4606
        %v4608 = vpop.f32.mrb[0].mxu0
        %v4609 = vpop.f32.mrb[0].mxu0
        %v4610 = vadd.f32 %v4514, %v4609
        %v4611 = vpop.f32.mrb[0].mxu0
        %4612 = vmatprep.mubr.bf16.mxu0 0
        %4613 = vmatmul.mubr.bf16.gmra.mrb[0].mxu0 %v4487
        %v4614 = vpop.f32.mrb[0].mxu0
        %v4615 = vadd.f32 %v4514, %v4614
        %v4616 = vpop.f32.mrb[0].mxu0
        %v4617 = vpop.f32.mrb[0].mxu0
        %v4618 = vadd.f32 %v4514, %v4617
        %v4619 = vpop.f32.mrb[0].mxu0
        %4620 = vmatprep.mubr.bf16.mxu0 0
        %4621 = vmatmul.mubr.bf16.gmra.mrb[0].mxu0 %v4488
        %v4622 = vpop.f32.mrb[0].mxu0
        %v4623 = vadd.f32 %v4514, %v4622
        %v4624 = vpop.f32.mrb[0].mxu0
        %v4625 = vpop.f32.mrb[0].mxu0
        %v4626 = vadd.f32 %v4514, %v4625
        %v4627 = vpop.f32.mrb[0].mxu0
        %4628 = vmatprep.mubr.bf16.mxu0 0
        %4629 = vmatmul.mubr.bf16.gmra.mrb[0].mxu0 %v4489
        %v4630 = vpop.f32.mrb[0].mxu0
        %v4631 = vadd.f32 %v4514, %v4630
        %v4632 = vpop.f32.mrb[0].mxu0
        %v4633 = vpop.f32.mrb[0].mxu0
        %v4634 = vadd.f32 %v4514, %v4633
        %v4635 = vpop.f32.mrb[0].mxu0
        %4636 = vmatprep.mubr.bf16.mxu0 0
        %4637 = vmatmul.mubr.bf16.gmra.mrb[0].mxu0 %v4490
        %v4638 = vpop.f32.mrb[0].mxu0
        %v4639 = vadd.f32 %v4514, %v4638
        %v4640 = vpop.f32.mrb[0].mxu0
        %v4641 = vpop.f32.mrb[0].mxu0
        %v4642 = vadd.f32 %v4514, %v4641
        %v4643 = vpop.f32.mrb[0].mxu0
        %4644 = vmatprep.mubr.bf16.mxu0 0
        %4645 = vmatmul.mubr.bf16.gmra.mrb[0].mxu0 %v4491
        %v4646 = vpop.f32.mrb[0].mxu0
        %v4647 = vadd.f32 %v4514, %v4646
        %v4648 = vpop.f32.mrb[0].mxu0
        %v4649 = vpop.f32.mrb[0].mxu0
        %v4650 = vadd.f32 %v4514, %v4649
        %v4651 = vpop.f32.mrb[0].mxu0
        %4652 = vmatprep.mubr.bf16.mxu0 0
        %4653 = vmatmul.mubr.bf16.gmra.mrb[0].mxu0 %v4492
        %v4654 = vpop.f32.mrb[0].mxu0
        %v4655 = vadd.f32 %v4514, %v4654
        %v4656 = vpop.f32.mrb[0].mxu0
        %v4657 = vpop.f32.mrb[0].mxu0
        %v4658 = vadd.f32 %v4514, %v4657
        %v4659 = vpop.f32.mrb[0].mxu0
        %4660 = vdwg.mxu0
        %v4661 = vadd.f32 %v1062, %v4599
        %v4662 = vadd.f32 %v1063, %v4602
        %v4663 = vadd.f32 %v1064, %v4607
        %v4664 = vadd.f32 %v1065, %v4610
        %v4665 = vadd.f32 %v1066, %v4615
        %v4666 = vadd.f32 %v1067, %v4618
        %v4667 = vadd.f32 %v1068, %v4623
        %v4668 = vadd.f32 %v1069, %v4626
        %v4669 = vadd.f32 %v1070, %v4631
        %v4670 = vadd.f32 %v1071, %v4634
        %v4671 = vadd.f32 %v1072, %v4639
        %v4672 = vadd.f32 %v1073, %v4642
        %v4673 = vadd.f32 %v1074, %v4647
        %v4674 = vadd.f32 %v1075, %v4650
        %v4675 = vadd.f32 %v1076, %v4655
        %v4676 = vadd.f32 %v1077, %v4658
        %v4677 = vld [vmem:[%s11] sm:$0x1]
        %v4678 = vld [vmem:[%s12] sm:$0x1]
        %4679 = vadd.xlane.f32.xlu0 %v4661
        %v4680 = vpop.xlane.xlu0 %4679
        %4681 = vadd.xlane.f32.xlu0 %v4662
        %v4682 = vpop.xlane.xlu0 %4681
        %4683 = vadd.xlane.f32.xlu0 %v4663
        %v4684 = vpop.xlane.xlu0 %4683
        %4685 = vadd.xlane.f32.xlu0 %v4664
        %v4686 = vpop.xlane.xlu0 %4685
        %4687 = vadd.xlane.f32.xlu0 %v4665
        %v4688 = vpop.xlane.xlu0 %4687
        %4689 = vadd.xlane.f32.xlu0 %v4666
        %v4690 = vpop.xlane.xlu0 %4689
        %4691 = vadd.xlane.f32.xlu0 %v4667
        %v4692 = vpop.xlane.xlu0 %4691
        %4693 = vadd.xlane.f32.xlu0 %v4668
        %v4694 = vpop.xlane.xlu0 %4693
        %4695 = vadd.xlane.f32.xlu0 %v4669
        %v4696 = vpop.xlane.xlu0 %4695
        %4697 = vadd.xlane.f32.xlu0 %v4670
        %v4698 = vpop.xlane.xlu0 %4697
        %4699 = vadd.xlane.f32.xlu0 %v4671
        %v4700 = vpop.xlane.xlu0 %4699
        %4701 = vadd.xlane.f32.xlu0 %v4672
        %v4702 = vpop.xlane.xlu0 %4701
        %4703 = vadd.xlane.f32.xlu0 %v4673
        %v4704 = vpop.xlane.xlu0 %4703
        %4705 = vadd.xlane.f32.xlu0 %v4674
        %v4706 = vpop.xlane.xlu0 %4705
        %4707 = vadd.xlane.f32.xlu0 %v4675
        %v4708 = vpop.xlane.xlu0 %4707
        %4709 = vadd.xlane.f32.xlu0 %v4676
        %v4710 = vpop.xlane.xlu0 %4709
        %v4711 = vrcp.pop 128.0
        %v4712 = vmul.f32 %v4680, %v4711
        %v4713 = vmul.f32 %v4682, %v4711
        %v4714 = vmul.f32 %v4684, %v4711
        %v4715 = vmul.f32 %v4686, %v4711
        %v4716 = vmul.f32 %v4688, %v4711
        %v4717 = vmul.f32 %v4690, %v4711
        %v4718 = vmul.f32 %v4692, %v4711
        %v4719 = vmul.f32 %v4694, %v4711
        %v4720 = vmul.f32 %v4696, %v4711
        %v4721 = vmul.f32 %v4698, %v4711
        %v4722 = vmul.f32 %v4700, %v4711
        %v4723 = vmul.f32 %v4702, %v4711
        %v4724 = vmul.f32 %v4704, %v4711
        %v4725 = vmul.f32 %v4706, %v4711
        %v4726 = vmul.f32 %v4708, %v4711
        %v4727 = vmul.f32 %v4710, %v4711
        %v4728 = vsub.f32 %v4661, %v4712
        %v4729 = vsub.f32 %v4662, %v4713
        %v4730 = vsub.f32 %v4663, %v4714
        %v4731 = vsub.f32 %v4664, %v4715
        %v4732 = vsub.f32 %v4665, %v4716
        %v4733 = vsub.f32 %v4666, %v4717
        %v4734 = vsub.f32 %v4667, %v4718
        %v4735 = vsub.f32 %v4668, %v4719
        %v4736 = vsub.f32 %v4669, %v4720
        %v4737 = vsub.f32 %v4670, %v4721
        %v4738 = vsub.f32 %v4671, %v4722
        %v4739 = vsub.f32 %v4672, %v4723
        %v4740 = vsub.f32 %v4673, %v4724
        %v4741 = vsub.f32 %v4674, %v4725
        %v4742 = vsub.f32 %v4675, %v4726
        %v4743 = vsub.f32 %v4676, %v4727
        %v4744 = vmul.f32 %v4728, %v4728
        %v4745 = vmul.f32 %v4729, %v4729
        %v4746 = vmul.f32 %v4730, %v4730
        %v4747 = vmul.f32 %v4731, %v4731
        %v4748 = vmul.f32 %v4732, %v4732
        %v4749 = vmul.f32 %v4733, %v4733
        %v4750 = vmul.f32 %v4734, %v4734
        %v4751 = vmul.f32 %v4735, %v4735
        %v4752 = vmul.f32 %v4736, %v4736
        %v4753 = vmul.f32 %v4737, %v4737
        %v4754 = vmul.f32 %v4738, %v4738
        %v4755 = vmul.f32 %v4739, %v4739
        %v4756 = vmul.f32 %v4740, %v4740
        %v4757 = vmul.f32 %v4741, %v4741
        %v4758 = vmul.f32 %v4742, %v4742
        %v4759 = vmul.f32 %v4743, %v4743
        %4760 = vadd.xlane.f32.xlu0 %v4744
        %v4761 = vpop.xlane.xlu0 %4760
        %4762 = vadd.xlane.f32.xlu0 %v4745
        %v4763 = vpop.xlane.xlu0 %4762
        %4764 = vadd.xlane.f32.xlu0 %v4746
        %v4765 = vpop.xlane.xlu0 %4764
        %4766 = vadd.xlane.f32.xlu0 %v4747
        %v4767 = vpop.xlane.xlu0 %4766
        %4768 = vadd.xlane.f32.xlu0 %v4748
        %v4769 = vpop.xlane.xlu0 %4768
        %4770 = vadd.xlane.f32.xlu0 %v4749
        %v4771 = vpop.xlane.xlu0 %4770
        %4772 = vadd.xlane.f32.xlu0 %v4750
        %v4773 = vpop.xlane.xlu0 %4772
        %4774 = vadd.xlane.f32.xlu0 %v4751
        %v4775 = vpop.xlane.xlu0 %4774
        %4776 = vadd.xlane.f32.xlu0 %v4752
        %v4777 = vpop.xlane.xlu0 %4776
        %4778 = vadd.xlane.f32.xlu0 %v4753
        %v4779 = vpop.xlane.xlu0 %4778
        %4780 = vadd.xlane.f32.xlu0 %v4754
        %v4781 = vpop.xlane.xlu0 %4780
        %4782 = vadd.xlane.f32.xlu0 %v4755
        %v4783 = vpop.xlane.xlu0 %4782
        %4784 = vadd.xlane.f32.xlu0 %v4756
        %v4785 = vpop.xlane.xlu0 %4784
        %4786 = vadd.xlane.f32.xlu0 %v4757
        %v4787 = vpop.xlane.xlu0 %4786
        %4788 = vadd.xlane.f32.xlu0 %v4758
        %v4789 = vpop.xlane.xlu0 %4788
        %4790 = vadd.xlane.f32.xlu0 %v4759
        %v4791 = vpop.xlane.xlu0 %4790
        %v4792 = vmul.f32 %v4761, %v4711
        %v4793 = vmul.f32 %v4763, %v4711
        %v4794 = vmul.f32 %v4765, %v4711
        %v4795 = vmul.f32 %v4767, %v4711
        %v4796 = vmul.f32 %v4769, %v4711
        %v4797 = vmul.f32 %v4771, %v4711
        %v4798 = vmul.f32 %v4773, %v4711
        %v4799 = vmul.f32 %v4775, %v4711
        %v4800 = vmul.f32 %v4777, %v4711
        %v4801 = vmul.f32 %v4779, %v4711
        %v4802 = vmul.f32 %v4781, %v4711
        %v4803 = vmul.f32 %v4783, %v4711
        %v4804 = vmul.f32 %v4785, %v4711
        %v4805 = vmul.f32 %v4787, %v4711
        %v4806 = vmul.f32 %v4789, %v4711
        %v4807 = vmul.f32 %v4791, %v4711
        %v4808 = vadd.f32 %v4792, 1e-05
        %v4809 = vadd.f32 %v4793, 1e-05
        %v4810 = vadd.f32 %v4794, 1e-05
        %v4811 = vadd.f32 %v4795, 1e-05
        %v4812 = vadd.f32 %v4796, 1e-05
        %v4813 = vadd.f32 %v4797, 1e-05
        %v4814 = vadd.f32 %v4798, 1e-05
        %v4815 = vadd.f32 %v4799, 1e-05
        %v4816 = vadd.f32 %v4800, 1e-05
        %v4817 = vadd.f32 %v4801, 1e-05
        %v4818 = vadd.f32 %v4802, 1e-05
        %v4819 = vadd.f32 %v4803, 1e-05
        %v4820 = vadd.f32 %v4804, 1e-05
        %v4821 = vadd.f32 %v4805, 1e-05
        %v4822 = vadd.f32 %v4806, 1e-05
        %v4823 = vadd.f32 %v4807, 1e-05
        %v4824 = vrsqrt.pop %v4808
        %v4825 = vrsqrt.pop %v4809
        %v4826 = vrsqrt.pop %v4810
        %v4827 = vrsqrt.pop %v4811
        %v4828 = vrsqrt.pop %v4812
        %v4829 = vrsqrt.pop %v4813
        %v4830 = vrsqrt.pop %v4814
        %v4831 = vrsqrt.pop %v4815
        %v4832 = vrsqrt.pop %v4816
        %v4833 = vrsqrt.pop %v4817
        %v4834 = vrsqrt.pop %v4818
        %v4835 = vrsqrt.pop %v4819
        %v4836 = vrsqrt.pop %v4820
        %v4837 = vrsqrt.pop %v4821
        %v4838 = vrsqrt.pop %v4822
        %v4839 = vrsqrt.pop %v4823
        %v4840 = vmul.f32 %v4728, %v4824
        %v4841 = vmul.f32 %v4729, %v4825
        %v4842 = vmul.f32 %v4730, %v4826
        %v4843 = vmul.f32 %v4731, %v4827
        %v4844 = vmul.f32 %v4732, %v4828
        %v4845 = vmul.f32 %v4733, %v4829
        %v4846 = vmul.f32 %v4734, %v4830
        %v4847 = vmul.f32 %v4735, %v4831
        %v4848 = vmul.f32 %v4736, %v4832
        %v4849 = vmul.f32 %v4737, %v4833
        %v4850 = vmul.f32 %v4738, %v4834
        %v4851 = vmul.f32 %v4739, %v4835
        %v4852 = vmul.f32 %v4740, %v4836
        %v4853 = vmul.f32 %v4741, %v4837
        %v4854 = vmul.f32 %v4742, %v4838
        %v4855 = vmul.f32 %v4743, %v4839
        %v4857 = vlaneseq
        %v4858 = vshrl.u32 %v4857, 7
        %v4859 = vsub.s32 0, %v4858
        %v4860 = vrot.slane %v4677, %v4859
        %v4862 = vmul.f32 %v4840, %v4860
        %v4863 = vmul.f32 %v4841, %v4860
        %v4864 = vmul.f32 %v4842, %v4860
        %v4865 = vmul.f32 %v4843, %v4860
        %v4866 = vmul.f32 %v4844, %v4860
        %v4867 = vmul.f32 %v4845, %v4860
        %v4868 = vmul.f32 %v4846, %v4860
        %v4869 = vmul.f32 %v4847, %v4860
        %v4870 = vmul.f32 %v4848, %v4860
        %v4871 = vmul.f32 %v4849, %v4860
        %v4872 = vmul.f32 %v4850, %v4860
        %v4873 = vmul.f32 %v4851, %v4860
        %v4874 = vmul.f32 %v4852, %v4860
        %v4875 = vmul.f32 %v4853, %v4860
        %v4876 = vmul.f32 %v4854, %v4860
        %v4877 = vmul.f32 %v4855, %v4860
        %v4879 = vlaneseq
        %v4880 = vshrl.u32 %v4879, 7
        %v4881 = vsub.s32 0, %v4880
        %v4882 = vrot.slane %v4678, %v4881
        %v4884 = vadd.f32 %v4862, %v4882
        %v4885 = vadd.f32 %v4863, %v4882
        %v4886 = vadd.f32 %v4864, %v4882
        %v4887 = vadd.f32 %v4865, %v4882
        %v4888 = vadd.f32 %v4866, %v4882
        %v4889 = vadd.f32 %v4867, %v4882
        %v4890 = vadd.f32 %v4868, %v4882
        %v4891 = vadd.f32 %v4869, %v4882
        %v4892 = vadd.f32 %v4870, %v4882
        %v4893 = vadd.f32 %v4871, %v4882
        %v4894 = vadd.f32 %v4872, %v4882
        %v4895 = vadd.f32 %v4873, %v4882
        %v4896 = vadd.f32 %v4874, %v4882
        %v4897 = vadd.f32 %v4875, %v4882
        %v4898 = vadd.f32 %v4876, %v4882
        %v4899 = vadd.f32 %v4877, %v4882
        %v4900 = vpack.c.bf16 %v4885, %v4884
        %v4901 = vpack.c.bf16 %v4887, %v4886
        %v4902 = vpack.c.bf16 %v4889, %v4888
        %v4903 = vpack.c.bf16 %v4891, %v4890
        %v4904 = vpack.c.bf16 %v4893, %v4892
        %v4905 = vpack.c.bf16 %v4895, %v4894
        %v4906 = vpack.c.bf16 %v4897, %v4896
        %v4907 = vpack.c.bf16 %v4899, %v4898
        %v4908 = vld [vmem:[#allocation12] sm:$0xff]
        %v4909 = vld [vmem:[#allocation12 + $0x8] sm:$0xff]
        %v4910 = vld [vmem:[#allocation12 + $0x10] sm:$0xff]
        %v4911 = vld [vmem:[#allocation12 + $0x18] sm:$0xff]
        %v4912 = vld [vmem:[#allocation12 + $0x20] sm:$0xff]
        %v4913 = vld [vmem:[#allocation12 + $0x28] sm:$0xff]
        %v4914 = vld [vmem:[#allocation12 + $0x30] sm:$0xff]
        %v4915 = vld [vmem:[#allocation12 + $0x38] sm:$0xff]
        %v4916 = vld [vmem:[#allocation12 + $0x40] sm:$0xff]
        %v4917 = vld [vmem:[#allocation12 + $0x48] sm:$0xff]
        %v4918 = vld [vmem:[#allocation12 + $0x50] sm:$0xff]
        %v4919 = vld [vmem:[#allocation12 + $0x58] sm:$0xff]
        %v4920 = vld [vmem:[#allocation12 + $0x60] sm:$0xff]
        %v4921 = vld [vmem:[#allocation12 + $0x68] sm:$0xff]
        %v4922 = vld [vmem:[#allocation12 + $0x70] sm:$0xff]
        %v4923 = vld [vmem:[#allocation12 + $0x78] sm:$0xff]
        %v4924 = vld [vmem:[#allocation12 + $0x80] sm:$0xff]
        %v4925 = vld [vmem:[#allocation12 + $0x88] sm:$0xff]
        %v4926 = vld [vmem:[#allocation12 + $0x90] sm:$0xff]
        %v4927 = vld [vmem:[#allocation12 + $0x98] sm:$0xff]
        %v4928 = vld [vmem:[#allocation12 + $0xa0] sm:$0xff]
        %v4929 = vld [vmem:[#allocation12 + $0xa8] sm:$0xff]
        %v4930 = vld [vmem:[#allocation12 + $0xb0] sm:$0xff]
        %v4931 = vld [vmem:[#allocation12 + $0xb8] sm:$0xff]
        %v4932 = vld [vmem:[#allocation12 + $0xc0] sm:$0xff]
        %v4933 = vld [vmem:[#allocation12 + $0xc8] sm:$0xff]
        %v4934 = vld [vmem:[#allocation12 + $0xd0] sm:$0xff]
        %v4935 = vld [vmem:[#allocation12 + $0xd8] sm:$0xff]
        %v4936 = vld [vmem:[#allocation12 + $0xe0] sm:$0xff]
        %v4937 = vld [vmem:[#allocation12 + $0xe8] sm:$0xff]
        %v4938 = vld [vmem:[#allocation12 + $0xf0] sm:$0xff]
        %v4939 = vld [vmem:[#allocation12 + $0xf8] sm:$0xff]
        %v4940 = vld [vmem:[%s8] sm:$0xf]
        %v4942 = vlaneseq
        %v4943 = vshrl.u32 %v4942, 7
        %v4944 = vsub.s32 0, %v4943
        %v4945 = vrot.slane %v4940, %v4944
        %v4946 = vlaneseq
        %v4947 = vshrl.u32 %v4946, 7
        %v4948 = vsub.s32 1, %v4947
        %v4949 = vrot.slane %v4940, %v4948
        %v4950 = vlaneseq
        %v4951 = vshrl.u32 %v4950, 7
        %v4952 = vsub.s32 2, %v4951
        %v4953 = vrot.slane %v4940, %v4952
        %v4954 = vlaneseq
        %v4955 = vshrl.u32 %v4954, 7
        %v4956 = vsub.s32 3, %v4955
        %v4957 = vrot.slane %v4940, %v4956
        %v4994 = vunpack.c.l.b16 %v4908
        %v4995 = vunpack.c.h.b16 %v4908
        %v4996 = vunpack.c.l.b16 %v4909
        %v4997 = vunpack.c.h.b16 %v4909
        %v4998 = vunpack.c.l.b16 %v4910
        %v4999 = vunpack.c.h.b16 %v4910
        %v5000 = vunpack.c.l.b16 %v4911
        %v5001 = vunpack.c.h.b16 %v4911
        %v5002 = vunpack.c.l.b16 %v4912
        %v5003 = vunpack.c.h.b16 %v4912
        %v5004 = vunpack.c.l.b16 %v4913
        %v5005 = vunpack.c.h.b16 %v4913
        %v5006 = vunpack.c.l.b16 %v4914
        %v5007 = vunpack.c.h.b16 %v4914
        %v5008 = vunpack.c.l.b16 %v4915
        %v5009 = vunpack.c.h.b16 %v4915
        %v5010 = vunpack.c.l.b16 %v4916
        %v5011 = vunpack.c.h.b16 %v4916
        %v5012 = vunpack.c.l.b16 %v4917
        %v5013 = vunpack.c.h.b16 %v4917
        %v5014 = vunpack.c.l.b16 %v4918
        %v5015 = vunpack.c.h.b16 %v4918
        %v5016 = vunpack.c.l.b16 %v4919
        %v5017 = vunpack.c.h.b16 %v4919
        %v5018 = vunpack.c.l.b16 %v4920
        %v5019 = vunpack.c.h.b16 %v4920
        %v5020 = vunpack.c.l.b16 %v4921
        %v5021 = vunpack.c.h.b16 %v4921
        %v5022 = vunpack.c.l.b16 %v4922
        %v5023 = vunpack.c.h.b16 %v4922
        %v5024 = vunpack.c.l.b16 %v4923
        %v5025 = vunpack.c.h.b16 %v4923
        %v5026 = vunpack.c.l.b16 %v4924
        %v5027 = vunpack.c.h.b16 %v4924
        %v5028 = vunpack.c.l.b16 %v4925
        %v5029 = vunpack.c.h.b16 %v4925
        %v5030 = vunpack.c.l.b16 %v4926
        %v5031 = vunpack.c.h.b16 %v4926
        %v5032 = vunpack.c.l.b16 %v4927
        %v5033 = vunpack.c.h.b16 %v4927
        %v5034 = vunpack.c.l.b16 %v4928
        %v5035 = vunpack.c.h.b16 %v4928
        %v5036 = vunpack.c.l.b16 %v4929
        %v5037 = vunpack.c.h.b16 %v4929
        %v5038 = vunpack.c.l.b16 %v4930
        %v5039 = vunpack.c.h.b16 %v4930
        %v5040 = vunpack.c.l.b16 %v4931
        %v5041 = vunpack.c.h.b16 %v4931
        %v5042 = vunpack.c.l.b16 %v4932
        %v5043 = vunpack.c.h.b16 %v4932
        %v5044 = vunpack.c.l.b16 %v4933
        %v5045 = vunpack.c.h.b16 %v4933
        %v5046 = vunpack.c.l.b16 %v4934
        %v5047 = vunpack.c.h.b16 %v4934
        %v5048 = vunpack.c.l.b16 %v4935
        %v5049 = vunpack.c.h.b16 %v4935
        %v5050 = vunpack.c.l.b16 %v4936
        %v5051 = vunpack.c.h.b16 %v4936
        %v5052 = vunpack.c.l.b16 %v4937
        %v5053 = vunpack.c.h.b16 %v4937
        %v5054 = vunpack.c.l.b16 %v4938
        %v5055 = vunpack.c.h.b16 %v4938
        %v5056 = vunpack.c.l.b16 %v4939
        %v5057 = vunpack.c.h.b16 %v4939
        %v5058 = vpack.c.b16 %v4998, %v4994
        %v5059 = vpack.c.b16 %v4999, %v4995
        %v5060 = vpack.c.b16 %v5000, %v4996
        %v5061 = vpack.c.b16 %v5001, %v4997
        %v5062 = vpack.c.b16 %v5006, %v5002
        %v5063 = vpack.c.b16 %v5007, %v5003
        %v5064 = vpack.c.b16 %v5008, %v5004
        %v5065 = vpack.c.b16 %v5009, %v5005
        %v5066 = vpack.c.b16 %v5014, %v5010
        %v5067 = vpack.c.b16 %v5015, %v5011
        %v5068 = vpack.c.b16 %v5016, %v5012
        %v5069 = vpack.c.b16 %v5017, %v5013
        %v5070 = vpack.c.b16 %v5022, %v5018
        %v5071 = vpack.c.b16 %v5023, %v5019
        %v5072 = vpack.c.b16 %v5024, %v5020
        %v5073 = vpack.c.b16 %v5025, %v5021
        %v5074 = vpack.c.b16 %v5030, %v5026
        %v5075 = vpack.c.b16 %v5031, %v5027
        %v5076 = vpack.c.b16 %v5032, %v5028
        %v5077 = vpack.c.b16 %v5033, %v5029
        %v5078 = vpack.c.b16 %v5038, %v5034
        %v5079 = vpack.c.b16 %v5039, %v5035
        %v5080 = vpack.c.b16 %v5040, %v5036
        %v5081 = vpack.c.b16 %v5041, %v5037
        %v5082 = vpack.c.b16 %v5046, %v5042
        %v5083 = vpack.c.b16 %v5047, %v5043
        %v5084 = vpack.c.b16 %v5048, %v5044
        %v5085 = vpack.c.b16 %v5049, %v5045
        %v5086 = vpack.c.b16 %v5054, %v5050
        %v5087 = vpack.c.b16 %v5055, %v5051
        %v5088 = vpack.c.b16 %v5056, %v5052
        %v5089 = vpack.c.b16 %v5057, %v5053
        %5122 = vmatprep.subr.bf16.mxu0 %v5059
        %5123 = vmatpush1.bf16.msra.mxu0 %v5058
        %5124 = vmatprep.subr.bf16.mxu0 %v5063
        %5125 = vmatpush1.bf16.msra.mxu0 %v5062
        %5126 = vmatprep.subr.bf16.mxu0 %v5067
        %5127 = vmatpush1.bf16.msra.mxu0 %v5066
        %5128 = vmatprep.subr.bf16.mxu0 %v5071
        %5129 = vmatpush1.bf16.msra.mxu0 %v5070
        %5130 = vmatprep.subr.bf16.mxu0 %v5075
        %5131 = vmatpush1.bf16.msra.mxu0 %v5074
        %5132 = vmatprep.subr.bf16.mxu0 %v5079
        %5133 = vmatpush1.bf16.msra.mxu0 %v5078
        %5134 = vmatprep.subr.bf16.mxu0 %v5083
        %5135 = vmatpush1.bf16.msra.mxu0 %v5082
        %5136 = vmatprep.subr.bf16.mxu0 %v5087
        %5137 = vmatpush1.bf16.msra.mxu0 %v5086
        %5138 = vmatprep.subr.bf16.mxu0 0
        %5139 = vmatpush1.bf16.msra.mxu0 0
        %5140 = vmatprep.subr.bf16.mxu0 0
        %5141 = vmatpush1.bf16.msra.mxu0 0
        %5142 = vmatprep.subr.bf16.mxu0 0
        %5143 = vmatpush1.bf16.msra.mxu0 0
        %5144 = vmatprep.subr.bf16.mxu0 0
        %5145 = vmatpush1.bf16.msra.mxu0 0
        %5146 = vmatprep.subr.bf16.mxu0 0
        %5147 = vmatpush1.bf16.msra.mxu0 0
        %5148 = vmatprep.subr.bf16.mxu0 0
        %5149 = vmatpush1.bf16.msra.mxu0 0
        %5150 = vmatprep.subr.bf16.mxu0 0
        %5151 = vmatpush1.bf16.msra.mxu0 0
        %5152 = vmatprep.subr.bf16.mxu0 0
        %5153 = vmatpush1.bf16.msra.mxu0 0
        %5154 = vmatprep.mubr.bf16.mxu0 0
        %5155 = vmatmul.mubr.bf16.gmra.mrb[0].mxu0 %v4900
        %v5156 = vpop.f32.mrb[0].mxu0
        %v5157 = vadd.f32 %v4945, %v5156
        %v5158 = vpop.f32.mrb[0].mxu0
        %v5159 = vadd.f32 %v4949, %v5158
        %v5160 = vpop.f32.mrb[0].mxu0
        %v5161 = vadd.f32 %v4945, %v5160
        %v5162 = vpop.f32.mrb[0].mxu0
        %v5163 = vadd.f32 %v4949, %v5162
        %5164 = vmatprep.mubr.bf16.mxu0 0
        %5165 = vmatmul.mubr.bf16.gmra.mrb[0].mxu0 %v4901
        %v5166 = vpop.f32.mrb[0].mxu0
        %v5167 = vadd.f32 %v4945, %v5166
        %v5168 = vpop.f32.mrb[0].mxu0
        %v5169 = vadd.f32 %v4949, %v5168
        %v5170 = vpop.f32.mrb[0].mxu0
        %v5171 = vadd.f32 %v4945, %v5170
        %v5172 = vpop.f32.mrb[0].mxu0
        %v5173 = vadd.f32 %v4949, %v5172
        %5174 = vmatprep.mubr.bf16.mxu0 0
        %5175 = vmatmul.mubr.bf16.gmra.mrb[0].mxu0 %v4902
        %v5176 = vpop.f32.mrb[0].mxu0
        %v5177 = vadd.f32 %v4945, %v5176
        %v5178 = vpop.f32.mrb[0].mxu0
        %v5179 = vadd.f32 %v4949, %v5178
        %v5180 = vpop.f32.mrb[0].mxu0
        %v5181 = vadd.f32 %v4945, %v5180
        %v5182 = vpop.f32.mrb[0].mxu0
        %v5183 = vadd.f32 %v4949, %v5182
        %5184 = vmatprep.mubr.bf16.mxu0 0
        %5185 = vmatmul.mubr.bf16.gmra.mrb[0].mxu0 %v4903
        %v5186 = vpop.f32.mrb[0].mxu0
        %v5187 = vadd.f32 %v4945, %v5186
        %v5188 = vpop.f32.mrb[0].mxu0
        %v5189 = vadd.f32 %v4949, %v5188
        %v5190 = vpop.f32.mrb[0].mxu0
        %v5191 = vadd.f32 %v4945, %v5190
        %v5192 = vpop.f32.mrb[0].mxu0
        %v5193 = vadd.f32 %v4949, %v5192
        %5194 = vmatprep.mubr.bf16.mxu0 0
        %5195 = vmatmul.mubr.bf16.gmra.mrb[0].mxu0 %v4904
        %v5196 = vpop.f32.mrb[0].mxu0
        %v5197 = vadd.f32 %v4945, %v5196
        %v5198 = vpop.f32.mrb[0].mxu0
        %v5199 = vadd.f32 %v4949, %v5198
        %v5200 = vpop.f32.mrb[0].mxu0
        %v5201 = vadd.f32 %v4945, %v5200
        %v5202 = vpop.f32.mrb[0].mxu0
        %v5203 = vadd.f32 %v4949, %v5202
        %5204 = vmatprep.mubr.bf16.mxu0 0
        %5205 = vmatmul.mubr.bf16.gmra.mrb[0].mxu0 %v4905
        %v5206 = vpop.f32.mrb[0].mxu0
        %v5207 = vadd.f32 %v4945, %v5206
        %v5208 = vpop.f32.mrb[0].mxu0
        %v5209 = vadd.f32 %v4949, %v5208
        %v5210 = vpop.f32.mrb[0].mxu0
        %v5211 = vadd.f32 %v4945, %v5210
        %v5212 = vpop.f32.mrb[0].mxu0
        %v5213 = vadd.f32 %v4949, %v5212
        %5214 = vmatprep.mubr.bf16.mxu0 0
        %5215 = vmatmul.mubr.bf16.gmra.mrb[0].mxu0 %v4906
        %v5216 = vpop.f32.mrb[0].mxu0
        %v5217 = vadd.f32 %v4945, %v5216
        %v5218 = vpop.f32.mrb[0].mxu0
        %v5219 = vadd.f32 %v4949, %v5218
        %v5220 = vpop.f32.mrb[0].mxu0
        %v5221 = vadd.f32 %v4945, %v5220
        %v5222 = vpop.f32.mrb[0].mxu0
        %v5223 = vadd.f32 %v4949, %v5222
        %5224 = vmatprep.mubr.bf16.mxu0 0
        %5225 = vmatmul.mubr.bf16.gmra.mrb[0].mxu0 %v4907
        %v5226 = vpop.f32.mrb[0].mxu0
        %v5227 = vadd.f32 %v4945, %v5226
        %v5228 = vpop.f32.mrb[0].mxu0
        %v5229 = vadd.f32 %v4949, %v5228
        %v5230 = vpop.f32.mrb[0].mxu0
        %v5231 = vadd.f32 %v4945, %v5230
        %v5232 = vpop.f32.mrb[0].mxu0
        %v5233 = vadd.f32 %v4949, %v5232
        %5234 = vdwg.mxu0
        %5235 = vmatprep.subr.bf16.mxu0 %v5061
        %5236 = vmatpush1.bf16.msra.mxu0 %v5060
        %5237 = vmatprep.subr.bf16.mxu0 %v5065
        %5238 = vmatpush1.bf16.msra.mxu0 %v5064
        %5239 = vmatprep.subr.bf16.mxu0 %v5069
        %5240 = vmatpush1.bf16.msra.mxu0 %v5068
        %5241 = vmatprep.subr.bf16.mxu0 %v5073
        %5242 = vmatpush1.bf16.msra.mxu0 %v5072
        %5243 = vmatprep.subr.bf16.mxu0 %v5077
        %5244 = vmatpush1.bf16.msra.mxu0 %v5076
        %5245 = vmatprep.subr.bf16.mxu0 %v5081
        %5246 = vmatpush1.bf16.msra.mxu0 %v5080
        %5247 = vmatprep.subr.bf16.mxu0 %v5085
        %5248 = vmatpush1.bf16.msra.mxu0 %v5084
        %5249 = vmatprep.subr.bf16.mxu0 %v5089
        %5250 = vmatpush1.bf16.msra.mxu0 %v5088
        %5251 = vmatprep.subr.bf16.mxu0 0
        %5252 = vmatpush1.bf16.msra.mxu0 0
        %5253 = vmatprep.subr.bf16.mxu0 0
        %5254 = vmatpush1.bf16.msra.mxu0 0
        %5255 = vmatprep.subr.bf16.mxu0 0
        %5256 = vmatpush1.bf16.msra.mxu0 0
        %5257 = vmatprep.subr.bf16.mxu0 0
        %5258 = vmatpush1.bf16.msra.mxu0 0
        %5259 = vmatprep.subr.bf16.mxu0 0
        %5260 = vmatpush1.bf16.msra.mxu0 0
        %5261 = vmatprep.subr.bf16.mxu0 0
        %5262 = vmatpush1.bf16.msra.mxu0 0
        %5263 = vmatprep.subr.bf16.mxu0 0
        %5264 = vmatpush1.bf16.msra.mxu0 0
        %5265 = vmatprep.subr.bf16.mxu0 0
        %5266 = vmatpush1.bf16.msra.mxu0 0
        %5267 = vmatprep.mubr.bf16.mxu0 0
        %5268 = vmatmul.mubr.bf16.gmra.mrb[0].mxu0 %v4900
        %v5269 = vpop.f32.mrb[0].mxu0
        %v5270 = vadd.f32 %v4953, %v5269
        %v5271 = vpop.f32.mrb[0].mxu0
        %v5272 = vadd.f32 %v4957, %v5271
        %v5273 = vpop.f32.mrb[0].mxu0
        %v5274 = vadd.f32 %v4953, %v5273
        %v5275 = vpop.f32.mrb[0].mxu0
        %v5276 = vadd.f32 %v4957, %v5275
        %5277 = vmatprep.mubr.bf16.mxu0 0
        %5278 = vmatmul.mubr.bf16.gmra.mrb[0].mxu0 %v4901
        %v5279 = vpop.f32.mrb[0].mxu0
        %v5280 = vadd.f32 %v4953, %v5279
        %v5281 = vpop.f32.mrb[0].mxu0
        %v5282 = vadd.f32 %v4957, %v5281
        %v5283 = vpop.f32.mrb[0].mxu0
        %v5284 = vadd.f32 %v4953, %v5283
        %v5285 = vpop.f32.mrb[0].mxu0
        %v5286 = vadd.f32 %v4957, %v5285
        %5287 = vmatprep.mubr.bf16.mxu0 0
        %5288 = vmatmul.mubr.bf16.gmra.mrb[0].mxu0 %v4902
        %v5289 = vpop.f32.mrb[0].mxu0
        %v5290 = vadd.f32 %v4953, %v5289
        %v5291 = vpop.f32.mrb[0].mxu0
        %v5292 = vadd.f32 %v4957, %v5291
        %v5293 = vpop.f32.mrb[0].mxu0
        %v5294 = vadd.f32 %v4953, %v5293
        %v5295 = vpop.f32.mrb[0].mxu0
        %v5296 = vadd.f32 %v4957, %v5295
        %5297 = vmatprep.mubr.bf16.mxu0 0
        %5298 = vmatmul.mubr.bf16.gmra.mrb[0].mxu0 %v4903
        %v5299 = vpop.f32.mrb[0].mxu0
        %v5300 = vadd.f32 %v4953, %v5299
        %v5301 = vpop.f32.mrb[0].mxu0
        %v5302 = vadd.f32 %v4957, %v5301
        %v5303 = vpop.f32.mrb[0].mxu0
        %v5304 = vadd.f32 %v4953, %v5303
        %v5305 = vpop.f32.mrb[0].mxu0
        %v5306 = vadd.f32 %v4957, %v5305
        %5307 = vmatprep.mubr.bf16.mxu0 0
        %5308 = vmatmul.mubr.bf16.gmra.mrb[0].mxu0 %v4904
        %v5309 = vpop.f32.mrb[0].mxu0
        %v5310 = vadd.f32 %v4953, %v5309
        %v5311 = vpop.f32.mrb[0].mxu0
        %v5312 = vadd.f32 %v4957, %v5311
        %v5313 = vpop.f32.mrb[0].mxu0
        %v5314 = vadd.f32 %v4953, %v5313
        %v5315 = vpop.f32.mrb[0].mxu0
        %v5316 = vadd.f32 %v4957, %v5315
        %5317 = vmatprep.mubr.bf16.mxu0 0
        %5318 = vmatmul.mubr.bf16.gmra.mrb[0].mxu0 %v4905
        %v5319 = vpop.f32.mrb[0].mxu0
        %v5320 = vadd.f32 %v4953, %v5319
        %v5321 = vpop.f32.mrb[0].mxu0
        %v5322 = vadd.f32 %v4957, %v5321
        %v5323 = vpop.f32.mrb[0].mxu0
        %v5324 = vadd.f32 %v4953, %v5323
        %v5325 = vpop.f32.mrb[0].mxu0
        %v5326 = vadd.f32 %v4957, %v5325
        %5327 = vmatprep.mubr.bf16.mxu0 0
        %5328 = vmatmul.mubr.bf16.gmra.mrb[0].mxu0 %v4906
        %v5329 = vpop.f32.mrb[0].mxu0
        %v5330 = vadd.f32 %v4953, %v5329
        %v5331 = vpop.f32.mrb[0].mxu0
        %v5332 = vadd.f32 %v4957, %v5331
        %v5333 = vpop.f32.mrb[0].mxu0
        %v5334 = vadd.f32 %v4953, %v5333
        %v5335 = vpop.f32.mrb[0].mxu0
        %v5336 = vadd.f32 %v4957, %v5335
        %5337 = vmatprep.mubr.bf16.mxu0 0
        %5338 = vmatmul.mubr.bf16.gmra.mrb[0].mxu0 %v4907
        %v5339 = vpop.f32.mrb[0].mxu0
        %v5340 = vadd.f32 %v4953, %v5339
        %v5341 = vpop.f32.mrb[0].mxu0
        %v5342 = vadd.f32 %v4957, %v5341
        %v5343 = vpop.f32.mrb[0].mxu0
        %v5344 = vadd.f32 %v4953, %v5343
        %v5345 = vpop.f32.mrb[0].mxu0
        %v5346 = vadd.f32 %v4957, %v5345
        %5347 = vdwg.mxu0
        %v5348 = vmax.f32 %v5157, 0.0
        %v5349 = vmax.f32 %v5159, 0.0
        %v5350 = vmax.f32 %v5270, 0.0
        %v5351 = vmax.f32 %v5272, 0.0
        %v5352 = vmax.f32 %v5161, 0.0
        %v5353 = vmax.f32 %v5163, 0.0
        %v5354 = vmax.f32 %v5274, 0.0
        %v5355 = vmax.f32 %v5276, 0.0
        %v5356 = vmax.f32 %v5167, 0.0
        %v5357 = vmax.f32 %v5169, 0.0
        %v5358 = vmax.f32 %v5280, 0.0
        %v5359 = vmax.f32 %v5282, 0.0
        %v5360 = vmax.f32 %v5171, 0.0
        %v5361 = vmax.f32 %v5173, 0.0
        %v5362 = vmax.f32 %v5284, 0.0
        %v5363 = vmax.f32 %v5286, 0.0
        %v5364 = vmax.f32 %v5177, 0.0
        %v5365 = vmax.f32 %v5179, 0.0
        %v5366 = vmax.f32 %v5290, 0.0
        %v5367 = vmax.f32 %v5292, 0.0
        %v5368 = vmax.f32 %v5181, 0.0
        %v5369 = vmax.f32 %v5183, 0.0
        %v5370 = vmax.f32 %v5294, 0.0
        %v5371 = vmax.f32 %v5296, 0.0
        %v5372 = vmax.f32 %v5187, 0.0
        %v5373 = vmax.f32 %v5189, 0.0
        %v5374 = vmax.f32 %v5300, 0.0
        %v5375 = vmax.f32 %v5302, 0.0
        %v5376 = vmax.f32 %v5191, 0.0
        %v5377 = vmax.f32 %v5193, 0.0
        %v5378 = vmax.f32 %v5304, 0.0
        %v5379 = vmax.f32 %v5306, 0.0
        %v5380 = vmax.f32 %v5197, 0.0
        %v5381 = vmax.f32 %v5199, 0.0
        %v5382 = vmax.f32 %v5310, 0.0
        %v5383 = vmax.f32 %v5312, 0.0
        %v5384 = vmax.f32 %v5201, 0.0
        %v5385 = vmax.f32 %v5203, 0.0
        %v5386 = vmax.f32 %v5314, 0.0
        %v5387 = vmax.f32 %v5316, 0.0
        %v5388 = vmax.f32 %v5207, 0.0
        %v5389 = vmax.f32 %v5209, 0.0
        %v5390 = vmax.f32 %v5320, 0.0
        %v5391 = vmax.f32 %v5322, 0.0
        %v5392 = vmax.f32 %v5211, 0.0
        %v5393 = vmax.f32 %v5213, 0.0
        %v5394 = vmax.f32 %v5324, 0.0
        %v5395 = vmax.f32 %v5326, 0.0
        %v5396 = vmax.f32 %v5217, 0.0
        %v5397 = vmax.f32 %v5219, 0.0
        %v5398 = vmax.f32 %v5330, 0.0
        %v5399 = vmax.f32 %v5332, 0.0
        %v5400 = vmax.f32 %v5221, 0.0
        %v5401 = vmax.f32 %v5223, 0.0
        %v5402 = vmax.f32 %v5334, 0.0
        %v5403 = vmax.f32 %v5336, 0.0
        %v5404 = vmax.f32 %v5227, 0.0
        %v5405 = vmax.f32 %v5229, 0.0
        %v5406 = vmax.f32 %v5340, 0.0
        %v5407 = vmax.f32 %v5342, 0.0
        %v5408 = vmax.f32 %v5231, 0.0
        %v5409 = vmax.f32 %v5233, 0.0
        %v5410 = vmax.f32 %v5344, 0.0
        %v5411 = vmax.f32 %v5346, 0.0
        %v5412 = vpack.c.bf16 %v5352, %v5348
        %v5413 = vpack.c.bf16 %v5353, %v5349
        %v5414 = vpack.c.bf16 %v5354, %v5350
        %v5415 = vpack.c.bf16 %v5355, %v5351
        %v5416 = vpack.c.bf16 %v5360, %v5356
        %v5417 = vpack.c.bf16 %v5361, %v5357
        %v5418 = vpack.c.bf16 %v5362, %v5358
        %v5419 = vpack.c.bf16 %v5363, %v5359
        %v5420 = vpack.c.bf16 %v5368, %v5364
        %v5421 = vpack.c.bf16 %v5369, %v5365
        %v5422 = vpack.c.bf16 %v5370, %v5366
        %v5423 = vpack.c.bf16 %v5371, %v5367
        %v5424 = vpack.c.bf16 %v5376, %v5372
        %v5425 = vpack.c.bf16 %v5377, %v5373
        %v5426 = vpack.c.bf16 %v5378, %v5374
        %v5427 = vpack.c.bf16 %v5379, %v5375
        %v5428 = vpack.c.bf16 %v5384, %v5380
        %v5429 = vpack.c.bf16 %v5385, %v5381
        %v5430 = vpack.c.bf16 %v5386, %v5382
        %v5431 = vpack.c.bf16 %v5387, %v5383
        %v5432 = vpack.c.bf16 %v5392, %v5388
        %v5433 = vpack.c.bf16 %v5393, %v5389
        %v5434 = vpack.c.bf16 %v5394, %v5390
        %v5435 = vpack.c.bf16 %v5395, %v5391
        %v5436 = vpack.c.bf16 %v5400, %v5396
        %v5437 = vpack.c.bf16 %v5401, %v5397
        %v5438 = vpack.c.bf16 %v5402, %v5398
        %v5439 = vpack.c.bf16 %v5403, %v5399
        %v5440 = vpack.c.bf16 %v5408, %v5404
        %v5441 = vpack.c.bf16 %v5409, %v5405
        %v5442 = vpack.c.bf16 %v5410, %v5406
        %v5443 = vpack.c.bf16 %v5411, %v5407
        %v5444 = vld [vmem:[#allocation13] sm:$0xf]
        %v5445 = vld [vmem:[#allocation13 + $0x4] sm:$0xf]
        %v5446 = vld [vmem:[#allocation13 + $0x8] sm:$0xf]
        %v5447 = vld [vmem:[#allocation13 + $0xc] sm:$0xf]
        %v5448 = vld [vmem:[#allocation13 + $0x10] sm:$0xf]
        %v5449 = vld [vmem:[#allocation13 + $0x14] sm:$0xf]
        %v5450 = vld [vmem:[#allocation13 + $0x18] sm:$0xf]
        %v5451 = vld [vmem:[#allocation13 + $0x1c] sm:$0xf]
        %v5452 = vld [vmem:[#allocation13 + $0x20] sm:$0xf]
        %v5453 = vld [vmem:[#allocation13 + $0x24] sm:$0xf]
        %v5454 = vld [vmem:[#allocation13 + $0x28] sm:$0xf]
        %v5455 = vld [vmem:[#allocation13 + $0x2c] sm:$0xf]
        %v5456 = vld [vmem:[#allocation13 + $0x30] sm:$0xf]
        %v5457 = vld [vmem:[#allocation13 + $0x34] sm:$0xf]
        %v5458 = vld [vmem:[#allocation13 + $0x38] sm:$0xf]
        %v5459 = vld [vmem:[#allocation13 + $0x3c] sm:$0xf]
        %v5460 = vld [vmem:[#allocation13 + $0x40] sm:$0xf]
        %v5461 = vld [vmem:[#allocation13 + $0x44] sm:$0xf]
        %v5462 = vld [vmem:[#allocation13 + $0x48] sm:$0xf]
        %v5463 = vld [vmem:[#allocation13 + $0x4c] sm:$0xf]
        %v5464 = vld [vmem:[#allocation13 + $0x50] sm:$0xf]
        %v5465 = vld [vmem:[#allocation13 + $0x54] sm:$0xf]
        %v5466 = vld [vmem:[#allocation13 + $0x58] sm:$0xf]
        %v5467 = vld [vmem:[#allocation13 + $0x5c] sm:$0xf]
        %v5468 = vld [vmem:[#allocation13 + $0x60] sm:$0xf]
        %v5469 = vld [vmem:[#allocation13 + $0x64] sm:$0xf]
        %v5470 = vld [vmem:[#allocation13 + $0x68] sm:$0xf]
        %v5471 = vld [vmem:[#allocation13 + $0x6c] sm:$0xf]
        %v5472 = vld [vmem:[#allocation13 + $0x70] sm:$0xf]
        %v5473 = vld [vmem:[#allocation13 + $0x74] sm:$0xf]
        %v5474 = vld [vmem:[#allocation13 + $0x78] sm:$0xf]
        %v5475 = vld [vmem:[#allocation13 + $0x7c] sm:$0xf]
        %v5476 = vld [vmem:[#allocation13 + $0x80] sm:$0xf]
        %v5477 = vld [vmem:[#allocation13 + $0x84] sm:$0xf]
        %v5478 = vld [vmem:[#allocation13 + $0x88] sm:$0xf]
        %v5479 = vld [vmem:[#allocation13 + $0x8c] sm:$0xf]
        %v5480 = vld [vmem:[#allocation13 + $0x90] sm:$0xf]
        %v5481 = vld [vmem:[#allocation13 + $0x94] sm:$0xf]
        %v5482 = vld [vmem:[#allocation13 + $0x98] sm:$0xf]
        %v5483 = vld [vmem:[#allocation13 + $0x9c] sm:$0xf]
        %v5484 = vld [vmem:[#allocation13 + $0xa0] sm:$0xf]
        %v5485 = vld [vmem:[#allocation13 + $0xa4] sm:$0xf]
        %v5486 = vld [vmem:[#allocation13 + $0xa8] sm:$0xf]
        %v5487 = vld [vmem:[#allocation13 + $0xac] sm:$0xf]
        %v5488 = vld [vmem:[#allocation13 + $0xb0] sm:$0xf]
        %v5489 = vld [vmem:[#allocation13 + $0xb4] sm:$0xf]
        %v5490 = vld [vmem:[#allocation13 + $0xb8] sm:$0xf]
        %v5491 = vld [vmem:[#allocation13 + $0xbc] sm:$0xf]
        %v5492 = vld [vmem:[#allocation13 + $0xc0] sm:$0xf]
        %v5493 = vld [vmem:[#allocation13 + $0xc4] sm:$0xf]
        %v5494 = vld [vmem:[#allocation13 + $0xc8] sm:$0xf]
        %v5495 = vld [vmem:[#allocation13 + $0xcc] sm:$0xf]
        %v5496 = vld [vmem:[#allocation13 + $0xd0] sm:$0xf]
        %v5497 = vld [vmem:[#allocation13 + $0xd4] sm:$0xf]
        %v5498 = vld [vmem:[#allocation13 + $0xd8] sm:$0xf]
        %v5499 = vld [vmem:[#allocation13 + $0xdc] sm:$0xf]
        %v5500 = vld [vmem:[#allocation13 + $0xe0] sm:$0xf]
        %v5501 = vld [vmem:[#allocation13 + $0xe4] sm:$0xf]
        %v5502 = vld [vmem:[#allocation13 + $0xe8] sm:$0xf]
        %v5503 = vld [vmem:[#allocation13 + $0xec] sm:$0xf]
        %v5504 = vld [vmem:[#allocation13 + $0xf0] sm:$0xf]
        %v5505 = vld [vmem:[#allocation13 + $0xf4] sm:$0xf]
        %v5506 = vld [vmem:[#allocation13 + $0xf8] sm:$0xf]
        %v5507 = vld [vmem:[#allocation13 + $0xfc] sm:$0xf]
        %v5508 = vld [vmem:[%s10] sm:$0x1]
        %v5510 = vlaneseq
        %v5511 = vshrl.u32 %v5510, 7
        %v5512 = vsub.s32 0, %v5511
        %v5513 = vrot.slane %v5508, %v5512
        %v5579 = vunpack.c.l.b16 %v5444
        %v5580 = vunpack.c.l.b16 %v5445
        %v5581 = vunpack.c.l.b16 %v5446
        %v5582 = vunpack.c.l.b16 %v5447
        %v5583 = vunpack.c.l.b16 %v5448
        %v5584 = vunpack.c.l.b16 %v5449
        %v5585 = vunpack.c.l.b16 %v5450
        %v5586 = vunpack.c.l.b16 %v5451
        %v5587 = vunpack.c.l.b16 %v5452
        %v5588 = vunpack.c.l.b16 %v5453
        %v5589 = vunpack.c.l.b16 %v5454
        %v5590 = vunpack.c.l.b16 %v5455
        %v5591 = vunpack.c.l.b16 %v5456
        %v5592 = vunpack.c.l.b16 %v5457
        %v5593 = vunpack.c.l.b16 %v5458
        %v5594 = vunpack.c.l.b16 %v5459
        %v5595 = vunpack.c.l.b16 %v5460
        %v5596 = vunpack.c.l.b16 %v5461
        %v5597 = vunpack.c.l.b16 %v5462
        %v5598 = vunpack.c.l.b16 %v5463
        %v5599 = vunpack.c.l.b16 %v5464
        %v5600 = vunpack.c.l.b16 %v5465
        %v5601 = vunpack.c.l.b16 %v5466
        %v5602 = vunpack.c.l.b16 %v5467
        %v5603 = vunpack.c.l.b16 %v5468
        %v5604 = vunpack.c.l.b16 %v5469
        %v5605 = vunpack.c.l.b16 %v5470
        %v5606 = vunpack.c.l.b16 %v5471
        %v5607 = vunpack.c.l.b16 %v5472
        %v5608 = vunpack.c.l.b16 %v5473
        %v5609 = vunpack.c.l.b16 %v5474
        %v5610 = vunpack.c.l.b16 %v5475
        %v5611 = vunpack.c.l.b16 %v5476
        %v5612 = vunpack.c.l.b16 %v5477
        %v5613 = vunpack.c.l.b16 %v5478
        %v5614 = vunpack.c.l.b16 %v5479
        %v5615 = vunpack.c.l.b16 %v5480
        %v5616 = vunpack.c.l.b16 %v5481
        %v5617 = vunpack.c.l.b16 %v5482
        %v5618 = vunpack.c.l.b16 %v5483
        %v5619 = vunpack.c.l.b16 %v5484
        %v5620 = vunpack.c.l.b16 %v5485
        %v5621 = vunpack.c.l.b16 %v5486
        %v5622 = vunpack.c.l.b16 %v5487
        %v5623 = vunpack.c.l.b16 %v5488
        %v5624 = vunpack.c.l.b16 %v5489
        %v5625 = vunpack.c.l.b16 %v5490
        %v5626 = vunpack.c.l.b16 %v5491
        %v5627 = vunpack.c.l.b16 %v5492
        %v5628 = vunpack.c.l.b16 %v5493
        %v5629 = vunpack.c.l.b16 %v5494
        %v5630 = vunpack.c.l.b16 %v5495
        %v5631 = vunpack.c.l.b16 %v5496
        %v5632 = vunpack.c.l.b16 %v5497
        %v5633 = vunpack.c.l.b16 %v5498
        %v5634 = vunpack.c.l.b16 %v5499
        %v5635 = vunpack.c.l.b16 %v5500
        %v5636 = vunpack.c.l.b16 %v5501
        %v5637 = vunpack.c.l.b16 %v5502
        %v5638 = vunpack.c.l.b16 %v5503
        %v5639 = vunpack.c.l.b16 %v5504
        %v5640 = vunpack.c.l.b16 %v5505
        %v5641 = vunpack.c.l.b16 %v5506
        %v5642 = vunpack.c.l.b16 %v5507
        %v5643 = vpack.c.b16 %v5580, %v5579
        %v5644 = vpack.c.b16 %v5582, %v5581
        %v5645 = vpack.c.b16 %v5584, %v5583
        %v5646 = vpack.c.b16 %v5586, %v5585
        %v5647 = vpack.c.b16 %v5588, %v5587
        %v5648 = vpack.c.b16 %v5590, %v5589
        %v5649 = vpack.c.b16 %v5592, %v5591
        %v5650 = vpack.c.b16 %v5594, %v5593
        %v5651 = vpack.c.b16 %v5596, %v5595
        %v5652 = vpack.c.b16 %v5598, %v5597
        %v5653 = vpack.c.b16 %v5600, %v5599
        %v5654 = vpack.c.b16 %v5602, %v5601
        %v5655 = vpack.c.b16 %v5604, %v5603
        %v5656 = vpack.c.b16 %v5606, %v5605
        %v5657 = vpack.c.b16 %v5608, %v5607
        %v5658 = vpack.c.b16 %v5610, %v5609
        %v5659 = vpack.c.b16 %v5612, %v5611
        %v5660 = vpack.c.b16 %v5614, %v5613
        %v5661 = vpack.c.b16 %v5616, %v5615
        %v5662 = vpack.c.b16 %v5618, %v5617
        %v5663 = vpack.c.b16 %v5620, %v5619
        %v5664 = vpack.c.b16 %v5622, %v5621
        %v5665 = vpack.c.b16 %v5624, %v5623
        %v5666 = vpack.c.b16 %v5626, %v5625
        %v5667 = vpack.c.b16 %v5628, %v5627
        %v5668 = vpack.c.b16 %v5630, %v5629
        %v5669 = vpack.c.b16 %v5632, %v5631
        %v5670 = vpack.c.b16 %v5634, %v5633
        %v5671 = vpack.c.b16 %v5636, %v5635
        %v5672 = vpack.c.b16 %v5638, %v5637
        %v5673 = vpack.c.b16 %v5640, %v5639
        %v5674 = vpack.c.b16 %v5642, %v5641
        %5707 = vmatprep.subr.bf16.mxu0 0
        %5708 = vmatpush1.bf16.msra.mxu0 %v5643
        %5709 = vmatprep.subr.bf16.mxu0 0
        %5710 = vmatpush1.bf16.msra.mxu0 %v5644
        %5711 = vmatprep.subr.bf16.mxu0 0
        %5712 = vmatpush1.bf16.msra.mxu0 %v5645
        %5713 = vmatprep.subr.bf16.mxu0 0
        %5714 = vmatpush1.bf16.msra.mxu0 %v5646
        %5715 = vmatprep.subr.bf16.mxu0 0
        %5716 = vmatpush1.bf16.msra.mxu0 %v5647
        %5717 = vmatprep.subr.bf16.mxu0 0
        %5718 = vmatpush1.bf16.msra.mxu0 %v5648
        %5719 = vmatprep.subr.bf16.mxu0 0
        %5720 = vmatpush1.bf16.msra.mxu0 %v5649
        %5721 = vmatprep.subr.bf16.mxu0 0
        %5722 = vmatpush1.bf16.msra.mxu0 %v5650
        %5723 = vmatprep.subr.bf16.mxu0 0
        %5724 = vmatpush1.bf16.msra.mxu0 %v5651
        %5725 = vmatprep.subr.bf16.mxu0 0
        %5726 = vmatpush1.bf16.msra.mxu0 %v5652
        %5727 = vmatprep.subr.bf16.mxu0 0
        %5728 = vmatpush1.bf16.msra.mxu0 %v5653
        %5729 = vmatprep.subr.bf16.mxu0 0
        %5730 = vmatpush1.bf16.msra.mxu0 %v5654
        %5731 = vmatprep.subr.bf16.mxu0 0
        %5732 = vmatpush1.bf16.msra.mxu0 %v5655
        %5733 = vmatprep.subr.bf16.mxu0 0
        %5734 = vmatpush1.bf16.msra.mxu0 %v5656
        %5735 = vmatprep.subr.bf16.mxu0 0
        %5736 = vmatpush1.bf16.msra.mxu0 %v5657
        %5737 = vmatprep.subr.bf16.mxu0 0
        %5738 = vmatpush1.bf16.msra.mxu0 %v5658
        %5739 = vmatprep.mubr.bf16.mxu0 %v5413
        %5740 = vmatmul.mubr.bf16.gmra.mrb[0].mxu0 %v5412
        %v5741 = vpop.f32.mrb[0].mxu0
        %v5742 = vadd.f32 %v5513, %v5741
        %v5743 = vpop.f32.mrb[0].mxu0
        %v5744 = vpop.f32.mrb[0].mxu0
        %v5745 = vadd.f32 %v5513, %v5744
        %v5746 = vpop.f32.mrb[0].mxu0
        %5747 = vmatprep.mubr.bf16.mxu0 %v5417
        %5748 = vmatmul.mubr.bf16.gmra.mrb[0].mxu0 %v5416
        %v5749 = vpop.f32.mrb[0].mxu0
        %v5750 = vadd.f32 %v5513, %v5749
        %v5751 = vpop.f32.mrb[0].mxu0
        %v5752 = vpop.f32.mrb[0].mxu0
        %v5753 = vadd.f32 %v5513, %v5752
        %v5754 = vpop.f32.mrb[0].mxu0
        %5755 = vmatprep.mubr.bf16.mxu0 %v5421
        %5756 = vmatmul.mubr.bf16.gmra.mrb[0].mxu0 %v5420
        %v5757 = vpop.f32.mrb[0].mxu0
        %v5758 = vadd.f32 %v5513, %v5757
        %v5759 = vpop.f32.mrb[0].mxu0
        %v5760 = vpop.f32.mrb[0].mxu0
        %v5761 = vadd.f32 %v5513, %v5760
        %v5762 = vpop.f32.mrb[0].mxu0
        %5763 = vmatprep.mubr.bf16.mxu0 %v5425
        %5764 = vmatmul.mubr.bf16.gmra.mrb[0].mxu0 %v5424
        %v5765 = vpop.f32.mrb[0].mxu0
        %v5766 = vadd.f32 %v5513, %v5765
        %v5767 = vpop.f32.mrb[0].mxu0
        %v5768 = vpop.f32.mrb[0].mxu0
        %v5769 = vadd.f32 %v5513, %v5768
        %v5770 = vpop.f32.mrb[0].mxu0
        %5771 = vmatprep.mubr.bf16.mxu0 %v5429
        %5772 = vmatmul.mubr.bf16.gmra.mrb[0].mxu0 %v5428
        %v5773 = vpop.f32.mrb[0].mxu0
        %v5774 = vadd.f32 %v5513, %v5773
        %v5775 = vpop.f32.mrb[0].mxu0
        %v5776 = vpop.f32.mrb[0].mxu0
        %v5777 = vadd.f32 %v5513, %v5776
        %v5778 = vpop.f32.mrb[0].mxu0
        %5779 = vmatprep.mubr.bf16.mxu0 %v5433
        %5780 = vmatmul.mubr.bf16.gmra.mrb[0].mxu0 %v5432
        %v5781 = vpop.f32.mrb[0].mxu0
        %v5782 = vadd.f32 %v5513, %v5781
        %v5783 = vpop.f32.mrb[0].mxu0
        %v5784 = vpop.f32.mrb[0].mxu0
        %v5785 = vadd.f32 %v5513, %v5784
        %v5786 = vpop.f32.mrb[0].mxu0
        %5787 = vmatprep.mubr.bf16.mxu0 %v5437
        %5788 = vmatmul.mubr.bf16.gmra.mrb[0].mxu0 %v5436
        %v5789 = vpop.f32.mrb[0].mxu0
        %v5790 = vadd.f32 %v5513, %v5789
        %v5791 = vpop.f32.mrb[0].mxu0
        %v5792 = vpop.f32.mrb[0].mxu0
        %v5793 = vadd.f32 %v5513, %v5792
        %v5794 = vpop.f32.mrb[0].mxu0
        %5795 = vmatprep.mubr.bf16.mxu0 %v5441
        %5796 = vmatmul.mubr.bf16.gmra.mrb[0].mxu0 %v5440
        %v5797 = vpop.f32.mrb[0].mxu0
        %v5798 = vadd.f32 %v5513, %v5797
        %v5799 = vpop.f32.mrb[0].mxu0
        %v5800 = vpop.f32.mrb[0].mxu0
        %v5801 = vadd.f32 %v5513, %v5800
        %v5802 = vpop.f32.mrb[0].mxu0
        %5803 = vdwg.mxu0
        %5804 = vmatprep.subr.bf16.mxu0 0
        %5805 = vmatpush1.bf16.msra.mxu0 %v5659
        %5806 = vmatprep.subr.bf16.mxu0 0
        %5807 = vmatpush1.bf16.msra.mxu0 %v5660
        %5808 = vmatprep.subr.bf16.mxu0 0
        %5809 = vmatpush1.bf16.msra.mxu0 %v5661
        %5810 = vmatprep.subr.bf16.mxu0 0
        %5811 = vmatpush1.bf16.msra.mxu0 %v5662
        %5812 = vmatprep.subr.bf16.mxu0 0
        %5813 = vmatpush1.bf16.msra.mxu0 %v5663
        %5814 = vmatprep.subr.bf16.mxu0 0
        %5815 = vmatpush1.bf16.msra.mxu0 %v5664
        %5816 = vmatprep.subr.bf16.mxu0 0
        %5817 = vmatpush1.bf16.msra.mxu0 %v5665
        %5818 = vmatprep.subr.bf16.mxu0 0
        %5819 = vmatpush1.bf16.msra.mxu0 %v5666
        %5820 = vmatprep.subr.bf16.mxu0 0
        %5821 = vmatpush1.bf16.msra.mxu0 %v5667
        %5822 = vmatprep.subr.bf16.mxu0 0
        %5823 = vmatpush1.bf16.msra.mxu0 %v5668
        %5824 = vmatprep.subr.bf16.mxu0 0
        %5825 = vmatpush1.bf16.msra.mxu0 %v5669
        %5826 = vmatprep.subr.bf16.mxu0 0
        %5827 = vmatpush1.bf16.msra.mxu0 %v5670
        %5828 = vmatprep.subr.bf16.mxu0 0
        %5829 = vmatpush1.bf16.msra.mxu0 %v5671
        %5830 = vmatprep.subr.bf16.mxu0 0
        %5831 = vmatpush1.bf16.msra.mxu0 %v5672
        %5832 = vmatprep.subr.bf16.mxu0 0
        %5833 = vmatpush1.bf16.msra.mxu0 %v5673
        %5834 = vmatprep.subr.bf16.mxu0 0
        %5835 = vmatpush1.bf16.msra.mxu0 %v5674
        %5836 = vmatprep.mubr.bf16.mxu0 %v5415
        %5837 = vmatmul.mubr.bf16.gmra.mrb[0].mxu0 %v5414
        %v5838 = vpop.f32.mrb[0].mxu0
        %v5839 = vadd.f32 %v5742, %v5838
        %v5840 = vpop.f32.mrb[0].mxu0
        %v5841 = vpop.f32.mrb[0].mxu0
        %v5842 = vadd.f32 %v5745, %v5841
        %v5843 = vpop.f32.mrb[0].mxu0
        %5844 = vmatprep.mubr.bf16.mxu0 %v5419
        %5845 = vmatmul.mubr.bf16.gmra.mrb[0].mxu0 %v5418
        %v5846 = vpop.f32.mrb[0].mxu0
        %v5847 = vadd.f32 %v5750, %v5846
        %v5848 = vpop.f32.mrb[0].mxu0
        %v5849 = vpop.f32.mrb[0].mxu0
        %v5850 = vadd.f32 %v5753, %v5849
        %v5851 = vpop.f32.mrb[0].mxu0
        %5852 = vmatprep.mubr.bf16.mxu0 %v5423
        %5853 = vmatmul.mubr.bf16.gmra.mrb[0].mxu0 %v5422
        %v5854 = vpop.f32.mrb[0].mxu0
        %v5855 = vadd.f32 %v5758, %v5854
        %v5856 = vpop.f32.mrb[0].mxu0
        %v5857 = vpop.f32.mrb[0].mxu0
        %v5858 = vadd.f32 %v5761, %v5857
        %v5859 = vpop.f32.mrb[0].mxu0
        %5860 = vmatprep.mubr.bf16.mxu0 %v5427
        %5861 = vmatmul.mubr.bf16.gmra.mrb[0].mxu0 %v5426
        %v5862 = vpop.f32.mrb[0].mxu0
        %v5863 = vadd.f32 %v5766, %v5862
        %v5864 = vpop.f32.mrb[0].mxu0
        %v5865 = vpop.f32.mrb[0].mxu0
        %v5866 = vadd.f32 %v5769, %v5865
        %v5867 = vpop.f32.mrb[0].mxu0
        %5868 = vmatprep.mubr.bf16.mxu0 %v5431
        %5869 = vmatmul.mubr.bf16.gmra.mrb[0].mxu0 %v5430
        %v5870 = vpop.f32.mrb[0].mxu0
        %v5871 = vadd.f32 %v5774, %v5870
        %v5872 = vpop.f32.mrb[0].mxu0
        %v5873 = vpop.f32.mrb[0].mxu0
        %v5874 = vadd.f32 %v5777, %v5873
        %v5875 = vpop.f32.mrb[0].mxu0
        %5876 = vmatprep.mubr.bf16.mxu0 %v5435
        %5877 = vmatmul.mubr.bf16.gmra.mrb[0].mxu0 %v5434
        %v5878 = vpop.f32.mrb[0].mxu0
        %v5879 = vadd.f32 %v5782, %v5878
        %v5880 = vpop.f32.mrb[0].mxu0
        %v5881 = vpop.f32.mrb[0].mxu0
        %v5882 = vadd.f32 %v5785, %v5881
        %v5883 = vpop.f32.mrb[0].mxu0
        %5884 = vmatprep.mubr.bf16.mxu0 %v5439
        %5885 = vmatmul.mubr.bf16.gmra.mrb[0].mxu0 %v5438
        %v5886 = vpop.f32.mrb[0].mxu0
        %v5887 = vadd.f32 %v5790, %v5886
        %v5888 = vpop.f32.mrb[0].mxu0
        %v5889 = vpop.f32.mrb[0].mxu0
        %v5890 = vadd.f32 %v5793, %v5889
        %v5891 = vpop.f32.mrb[0].mxu0
        %5892 = vmatprep.mubr.bf16.mxu0 %v5443
        %5893 = vmatmul.mubr.bf16.gmra.mrb[0].mxu0 %v5442
        %v5894 = vpop.f32.mrb[0].mxu0
        %v5895 = vadd.f32 %v5798, %v5894
        %v5896 = vpop.f32.mrb[0].mxu0
        %v5897 = vpop.f32.mrb[0].mxu0
        %v5898 = vadd.f32 %v5801, %v5897
        %v5899 = vpop.f32.mrb[0].mxu0
        %5900 = vdwg.mxu0
        %v5901 = vadd.f32 %v4884, %v5839
        %v5902 = vadd.f32 %v4885, %v5842
        %v5903 = vadd.f32 %v4886, %v5847
        %v5904 = vadd.f32 %v4887, %v5850
        %v5905 = vadd.f32 %v4888, %v5855
        %v5906 = vadd.f32 %v4889, %v5858
        %v5907 = vadd.f32 %v4890, %v5863
        %v5908 = vadd.f32 %v4891, %v5866
        %v5909 = vadd.f32 %v4892, %v5871
        %v5910 = vadd.f32 %v4893, %v5874
        %v5911 = vadd.f32 %v4894, %v5879
        %v5912 = vadd.f32 %v4895, %v5882
        %v5913 = vadd.f32 %v4896, %v5887
        %v5914 = vadd.f32 %v4897, %v5890
        %v5915 = vadd.f32 %v4898, %v5895
        %v5916 = vadd.f32 %v4899, %v5898
        %v5917 = vld [vmem:[%s13] sm:$0x1]
        %v5918 = vld [vmem:[%s14] sm:$0x1]
        %5919 = vadd.xlane.f32.xlu0 %v5901
        %v5920 = vpop.xlane.xlu0 %5919
        %5921 = vadd.xlane.f32.xlu0 %v5902
        %v5922 = vpop.xlane.xlu0 %5921
        %5923 = vadd.xlane.f32.xlu0 %v5903
        %v5924 = vpop.xlane.xlu0 %5923
        %5925 = vadd.xlane.f32.xlu0 %v5904
        %v5926 = vpop.xlane.xlu0 %5925
        %5927 = vadd.xlane.f32.xlu0 %v5905
        %v5928 = vpop.xlane.xlu0 %5927
        %5929 = vadd.xlane.f32.xlu0 %v5906
        %v5930 = vpop.xlane.xlu0 %5929
        %5931 = vadd.xlane.f32.xlu0 %v5907
        %v5932 = vpop.xlane.xlu0 %5931
        %5933 = vadd.xlane.f32.xlu0 %v5908
        %v5934 = vpop.xlane.xlu0 %5933
        %5935 = vadd.xlane.f32.xlu0 %v5909
        %v5936 = vpop.xlane.xlu0 %5935
        %5937 = vadd.xlane.f32.xlu0 %v5910
        %v5938 = vpop.xlane.xlu0 %5937
        %5939 = vadd.xlane.f32.xlu0 %v5911
        %v5940 = vpop.xlane.xlu0 %5939
        %5941 = vadd.xlane.f32.xlu0 %v5912
        %v5942 = vpop.xlane.xlu0 %5941
        %5943 = vadd.xlane.f32.xlu0 %v5913
        %v5944 = vpop.xlane.xlu0 %5943
        %5945 = vadd.xlane.f32.xlu0 %v5914
        %v5946 = vpop.xlane.xlu0 %5945
        %5947 = vadd.xlane.f32.xlu0 %v5915
        %v5948 = vpop.xlane.xlu0 %5947
        %5949 = vadd.xlane.f32.xlu0 %v5916
        %v5950 = vpop.xlane.xlu0 %5949
        %v5951 = vmul.f32 %v5920, %v4711
        %v5952 = vmul.f32 %v5922, %v4711
        %v5953 = vmul.f32 %v5924, %v4711
        %v5954 = vmul.f32 %v5926, %v4711
        %v5955 = vmul.f32 %v5928, %v4711
        %v5956 = vmul.f32 %v5930, %v4711
        %v5957 = vmul.f32 %v5932, %v4711
        %v5958 = vmul.f32 %v5934, %v4711
        %v5959 = vmul.f32 %v5936, %v4711
        %v5960 = vmul.f32 %v5938, %v4711
        %v5961 = vmul.f32 %v5940, %v4711
        %v5962 = vmul.f32 %v5942, %v4711
        %v5963 = vmul.f32 %v5944, %v4711
        %v5964 = vmul.f32 %v5946, %v4711
        %v5965 = vmul.f32 %v5948, %v4711
        %v5966 = vmul.f32 %v5950, %v4711
        %v5967 = vsub.f32 %v5901, %v5951
        %v5968 = vsub.f32 %v5902, %v5952
        %v5969 = vsub.f32 %v5903, %v5953
        %v5970 = vsub.f32 %v5904, %v5954
        %v5971 = vsub.f32 %v5905, %v5955
        %v5972 = vsub.f32 %v5906, %v5956
        %v5973 = vsub.f32 %v5907, %v5957
        %v5974 = vsub.f32 %v5908, %v5958
        %v5975 = vsub.f32 %v5909, %v5959
        %v5976 = vsub.f32 %v5910, %v5960
        %v5977 = vsub.f32 %v5911, %v5961
        %v5978 = vsub.f32 %v5912, %v5962
        %v5979 = vsub.f32 %v5913, %v5963
        %v5980 = vsub.f32 %v5914, %v5964
        %v5981 = vsub.f32 %v5915, %v5965
        %v5982 = vsub.f32 %v5916, %v5966
        %v5983 = vmul.f32 %v5967, %v5967
        %v5984 = vmul.f32 %v5968, %v5968
        %v5985 = vmul.f32 %v5969, %v5969
        %v5986 = vmul.f32 %v5970, %v5970
        %v5987 = vmul.f32 %v5971, %v5971
        %v5988 = vmul.f32 %v5972, %v5972
        %v5989 = vmul.f32 %v5973, %v5973
        %v5990 = vmul.f32 %v5974, %v5974
        %v5991 = vmul.f32 %v5975, %v5975
        %v5992 = vmul.f32 %v5976, %v5976
        %v5993 = vmul.f32 %v5977, %v5977
        %v5994 = vmul.f32 %v5978, %v5978
        %v5995 = vmul.f32 %v5979, %v5979
        %v5996 = vmul.f32 %v5980, %v5980
        %v5997 = vmul.f32 %v5981, %v5981
        %v5998 = vmul.f32 %v5982, %v5982
        %5999 = vadd.xlane.f32.xlu0 %v5983
        %v6000 = vpop.xlane.xlu0 %5999
        %6001 = vadd.xlane.f32.xlu0 %v5984
        %v6002 = vpop.xlane.xlu0 %6001
        %6003 = vadd.xlane.f32.xlu0 %v5985
        %v6004 = vpop.xlane.xlu0 %6003
        %6005 = vadd.xlane.f32.xlu0 %v5986
        %v6006 = vpop.xlane.xlu0 %6005
        %6007 = vadd.xlane.f32.xlu0 %v5987
        %v6008 = vpop.xlane.xlu0 %6007
        %6009 = vadd.xlane.f32.xlu0 %v5988
        %v6010 = vpop.xlane.xlu0 %6009
        %6011 = vadd.xlane.f32.xlu0 %v5989
        %v6012 = vpop.xlane.xlu0 %6011
        %6013 = vadd.xlane.f32.xlu0 %v5990
        %v6014 = vpop.xlane.xlu0 %6013
        %6015 = vadd.xlane.f32.xlu0 %v5991
        %v6016 = vpop.xlane.xlu0 %6015
        %6017 = vadd.xlane.f32.xlu0 %v5992
        %v6018 = vpop.xlane.xlu0 %6017
        %6019 = vadd.xlane.f32.xlu0 %v5993
        %v6020 = vpop.xlane.xlu0 %6019
        %6021 = vadd.xlane.f32.xlu0 %v5994
        %v6022 = vpop.xlane.xlu0 %6021
        %6023 = vadd.xlane.f32.xlu0 %v5995
        %v6024 = vpop.xlane.xlu0 %6023
        %6025 = vadd.xlane.f32.xlu0 %v5996
        %v6026 = vpop.xlane.xlu0 %6025
        %6027 = vadd.xlane.f32.xlu0 %v5997
        %v6028 = vpop.xlane.xlu0 %6027
        %6029 = vadd.xlane.f32.xlu0 %v5998
        %v6030 = vpop.xlane.xlu0 %6029
        %v6031 = vmul.f32 %v6000, %v4711
        %v6032 = vmul.f32 %v6002, %v4711
        %v6033 = vmul.f32 %v6004, %v4711
        %v6034 = vmul.f32 %v6006, %v4711
        %v6035 = vmul.f32 %v6008, %v4711
        %v6036 = vmul.f32 %v6010, %v4711
        %v6037 = vmul.f32 %v6012, %v4711
        %v6038 = vmul.f32 %v6014, %v4711
        %v6039 = vmul.f32 %v6016, %v4711
        %v6040 = vmul.f32 %v6018, %v4711
        %v6041 = vmul.f32 %v6020, %v4711
        %v6042 = vmul.f32 %v6022, %v4711
        %v6043 = vmul.f32 %v6024, %v4711
        %v6044 = vmul.f32 %v6026, %v4711
        %v6045 = vmul.f32 %v6028, %v4711
        %v6046 = vmul.f32 %v6030, %v4711
        %v6047 = vadd.f32 %v6031, 1e-05
        %v6048 = vadd.f32 %v6032, 1e-05
        %v6049 = vadd.f32 %v6033, 1e-05
        %v6050 = vadd.f32 %v6034, 1e-05
        %v6051 = vadd.f32 %v6035, 1e-05
        %v6052 = vadd.f32 %v6036, 1e-05
        %v6053 = vadd.f32 %v6037, 1e-05
        %v6054 = vadd.f32 %v6038, 1e-05
        %v6055 = vadd.f32 %v6039, 1e-05
        %v6056 = vadd.f32 %v6040, 1e-05
        %v6057 = vadd.f32 %v6041, 1e-05
        %v6058 = vadd.f32 %v6042, 1e-05
        %v6059 = vadd.f32 %v6043, 1e-05
        %v6060 = vadd.f32 %v6044, 1e-05
        %v6061 = vadd.f32 %v6045, 1e-05
        %v6062 = vadd.f32 %v6046, 1e-05
        %v6063 = vrsqrt.pop %v6047
        %v6064 = vrsqrt.pop %v6048
        %v6065 = vrsqrt.pop %v6049
        %v6066 = vrsqrt.pop %v6050
        %v6067 = vrsqrt.pop %v6051
        %v6068 = vrsqrt.pop %v6052
        %v6069 = vrsqrt.pop %v6053
        %v6070 = vrsqrt.pop %v6054
        %v6071 = vrsqrt.pop %v6055
        %v6072 = vrsqrt.pop %v6056
        %v6073 = vrsqrt.pop %v6057
        %v6074 = vrsqrt.pop %v6058
        %v6075 = vrsqrt.pop %v6059
        %v6076 = vrsqrt.pop %v6060
        %v6077 = vrsqrt.pop %v6061
        %v6078 = vrsqrt.pop %v6062
        %v6079 = vmul.f32 %v5967, %v6063
        %v6080 = vmul.f32 %v5968, %v6064
        %v6081 = vmul.f32 %v5969, %v6065
        %v6082 = vmul.f32 %v5970, %v6066
        %v6083 = vmul.f32 %v5971, %v6067
        %v6084 = vmul.f32 %v5972, %v6068
        %v6085 = vmul.f32 %v5973, %v6069
        %v6086 = vmul.f32 %v5974, %v6070
        %v6087 = vmul.f32 %v5975, %v6071
        %v6088 = vmul.f32 %v5976, %v6072
        %v6089 = vmul.f32 %v5977, %v6073
        %v6090 = vmul.f32 %v5978, %v6074
        %v6091 = vmul.f32 %v5979, %v6075
        %v6092 = vmul.f32 %v5980, %v6076
        %v6093 = vmul.f32 %v5981, %v6077
        %v6094 = vmul.f32 %v5982, %v6078
        %v6096 = vlaneseq
        %v6097 = vshrl.u32 %v6096, 7
        %v6098 = vsub.s32 0, %v6097
        %v6099 = vrot.slane %v5917, %v6098
        %v6101 = vmul.f32 %v6079, %v6099
        %v6102 = vmul.f32 %v6080, %v6099
        %v6103 = vmul.f32 %v6081, %v6099
        %v6104 = vmul.f32 %v6082, %v6099
        %v6105 = vmul.f32 %v6083, %v6099
        %v6106 = vmul.f32 %v6084, %v6099
        %v6107 = vmul.f32 %v6085, %v6099
        %v6108 = vmul.f32 %v6086, %v6099
        %v6109 = vmul.f32 %v6087, %v6099
        %v6110 = vmul.f32 %v6088, %v6099
        %v6111 = vmul.f32 %v6089, %v6099
        %v6112 = vmul.f32 %v6090, %v6099
        %v6113 = vmul.f32 %v6091, %v6099
        %v6114 = vmul.f32 %v6092, %v6099
        %v6115 = vmul.f32 %v6093, %v6099
        %v6116 = vmul.f32 %v6094, %v6099
        %v6118 = vlaneseq
        %v6119 = vshrl.u32 %v6118, 7
        %v6120 = vsub.s32 0, %v6119
        %v6121 = vrot.slane %v5918, %v6120
        %v6123 = vadd.f32 %v6101, %v6121
        %v6124 = vadd.f32 %v6102, %v6121
        %v6125 = vadd.f32 %v6103, %v6121
        %v6126 = vadd.f32 %v6104, %v6121
        %v6127 = vadd.f32 %v6105, %v6121
        %v6128 = vadd.f32 %v6106, %v6121
        %v6129 = vadd.f32 %v6107, %v6121
        %v6130 = vadd.f32 %v6108, %v6121
        %v6131 = vadd.f32 %v6109, %v6121
        %v6132 = vadd.f32 %v6110, %v6121
        %v6133 = vadd.f32 %v6111, %v6121
        %v6134 = vadd.f32 %v6112, %v6121
        %v6135 = vadd.f32 %v6113, %v6121
        %v6136 = vadd.f32 %v6114, %v6121
        %v6137 = vadd.f32 %v6115, %v6121
        %v6138 = vadd.f32 %v6116, %v6121
        %6139 = vst [vmem:[%s632] sm:$0xff] %v6123
        %6140 = vst [vmem:[%s632 + $0x8] sm:$0xff] %v6124
        %6141 = vst [vmem:[%s632 + $0x10] sm:$0xff] %v6125
        %6142 = vst [vmem:[%s632 + $0x18] sm:$0xff] %v6126
        %6143 = vst [vmem:[%s632 + $0x20] sm:$0xff] %v6127
        %6144 = vst [vmem:[%s632 + $0x28] sm:$0xff] %v6128
        %6145 = vst [vmem:[%s632 + $0x30] sm:$0xff] %v6129
        %6146 = vst [vmem:[%s632 + $0x38] sm:$0xff] %v6130
        %6147 = vst [vmem:[%s632 + $0x40] sm:$0xff] %v6131
        %6148 = vst [vmem:[%s632 + $0x48] sm:$0xff] %v6132
        %6149 = vst [vmem:[%s632 + $0x50] sm:$0xff] %v6133
        %6150 = vst [vmem:[%s632 + $0x58] sm:$0xff] %v6134
        %6151 = vst [vmem:[%s632 + $0x60] sm:$0xff] %v6135
        %6152 = vst [vmem:[%s632 + $0x68] sm:$0xff] %v6136
        %6153 = vst [vmem:[%s632 + $0x70] sm:$0xff] %v6137
        %6154 = vst [vmem:[%s632 + $0x78] sm:$0xff] %v6138
        %s6155 = sand.u32 %s382, 1
        %s6156 = scalar_lea.sflag [#allocation6], %s6155
        %s6157 = sand.u32 %s382, 1
        %s6158 = smul.addr %s6157, 128
        %s6159 = scalar_lea.vmem [#allocation15], %s6158
        %s6160 = sand.u32 %s410, 1
        %s6161 = scalar_lea.sflag [#allocation17], %s6160
        %s6162 = sand.u32 %s410, 1
        %s6163 = smul.addr %s6162, 512
        %s6164 = scalar_lea.vmem [#allocation16], %s6163
        // Predicated region
        $region109: #{tpu_custom_call.1} parent=79 // pred_check
          %p6165 = pneg %p392
        $region110: #{tpu_custom_call.1} parent=79 // pred_check_branch
          %6167 = sbr.rel (%p6165) target = $region112
        $region111: #{tpu_custom_call.1} parent=79 // pred_region
          %s6168 = smul.u32 16, %s45
          %s6170 = ssub.s32 2048, 2048
          %6171 = vsyncadd %s6156, %s6170
          %s6172 = smul.addr %s44, 32
          %s6173 = sadd.s32 %s6168, %s6172
          %s6174 = smul.addr %s6173, 128
          %s6175 = scalar_lea.hbm %s15, %s6174
          %s6176 = sshll.u32 %s6159, 4
          %s6177 = int_to_ptr.vmem [resolvable:$true] %s6176
          %6182 = dma.vmem_to_hbm [thread:$0]  %s6177, 2048, %s6175, %s6156, 128, 128, 8
        $region112: #{tpu_custom_call.1} parent=79 // pred_fallthru
          _
        // Predicated region
        $region113: #{tpu_custom_call.1} parent=79 // pred_check
          %p6183 = pneg %p420
        $region114: #{tpu_custom_call.1} parent=79 // pred_check_branch
          %6185 = sbr.rel (%p6183) target = $region116
        $region115: #{tpu_custom_call.1} parent=79 // pred_region
          #allocation19 [shape = 'u32[6]{0}', space=smem, size = 0x18, scoped, tag = 'DMA stride descriptor']
          %s6186 = smul.u32 16, %s45
          %s6188 = ssub.s32 8192, 8192
          %6189 = vsyncadd %s6161, %s6188
          %s6190 = smul.addr %s6186, 2
          %s6191 = smul.addr %s44, 256
          %s6192 = sadd.s32 %s6190, %s6191
          %s6193 = smul.addr %s6192, 64
          %s6194 = scalar_lea.hbm %s16, %s6193
          %s6196 = sshll.u32 1, 14
          %s6197 = sxor.u32 4294967295, %s6196
          %s6200 = sshll.u32 7, 18
          %s6201 = sxor.u32 4294967295, %s6200
          %s6202 = sand.u32 0, %s6201
          %s6204 = sor.u32 %s6202, 0
          %s6206 = sshll.u32 3, 24
          %s6207 = sxor.u32 4294967295, %s6206
          %s6208 = sand.u32 %s6204, %s6207
          %s6210 = sor.u32 %s6208, 0
          %s6211 = sshll.u32 %s6164, 4
          %s6212 = int_to_ptr.vmem [resolvable:$true] %s6211
          %6218 = sst [smem:[#allocation19]] 2048
          %s6219 = scalar_lea.smem [#allocation19], 1
          %6220 = sst [smem:[%s6219]] 4096
          %s6221 = scalar_lea.smem [#allocation19], 2
          %6222 = sst [smem:[%s6221]] 16
          %s6223 = scalar_lea.smem [#allocation19], 3
          %6224 = sst [smem:[%s6223]] 128
          %s6225 = scalar_lea.smem [#allocation19], 4
          %6226 = sst [smem:[%s6225]] 128
          %s6227 = scalar_lea.smem [#allocation19], 5
          %6228 = sst [smem:[%s6227]] 8
          %6230 = dma.general %s6212, 8192, %s6194, %s6161, [#allocation18], [#allocation19], %s6210, 0
        $region116: #{tpu_custom_call.1} parent=79 // pred_fallthru
          _
      $region80: #{tpu_custom_call.1} parent=5 // pred_fallthru
        _
      %p6231 = scmp.le.s32.totalorder 2, %s35
      // Predicated region
      $region117: #{tpu_custom_call.1} parent=5 // pred_check
        %p6232 = pneg %p6231
      $region118: #{tpu_custom_call.1} parent=5 // pred_check_branch
        %6234 = sbr.rel (%p6232) target = $region120
      $region119: #{tpu_custom_call.1} parent=5 // pred_region
        %s6235 = ssub.s32 %s35, 2
        // Predicated region
        $region121: #{tpu_custom_call.1} parent=119 // pred_check
          %p6236 = pneg %p398
        $region122: #{tpu_custom_call.1} parent=119 // pred_check_branch
          %6238 = sbr.rel (%p6236) target = $region124
        $region123: #{tpu_custom_call.1} parent=119 // pred_region
          %s6239 = sand.u32 %s383, 1
          %s6240 = scalar_lea.sflag [#allocation6], %s6239
          %s6241 = sand.u32 %s383, 1
          %s6242 = smul.addr %s6241, 128
          %s6243 = scalar_lea.vmem [#allocation15], %s6242
          %6244 = dma.done %s6240, 2048
        $region124: #{tpu_custom_call.1} parent=119 // pred_fallthru
          _
        // Predicated region
        $region125: #{tpu_custom_call.1} parent=119 // pred_check
          %p6245 = pneg %p426
        $region126: #{tpu_custom_call.1} parent=119 // pred_check_branch
          %6247 = sbr.rel (%p6245) target = $region128
        $region127: #{tpu_custom_call.1} parent=119 // pred_region
          %s6248 = sand.u32 %s411, 1
          %s6249 = scalar_lea.sflag [#allocation17], %s6248
          %s6250 = sand.u32 %s411, 1
          %s6251 = smul.addr %s6250, 512
          %s6252 = scalar_lea.vmem [#allocation16], %s6251
          %6253 = dma.done %s6249, 8192
        $region128: #{tpu_custom_call.1} parent=119 // pred_fallthru
          _
      $region120: #{tpu_custom_call.1} parent=5 // pred_fallthru
        _
    $region6: #{tpu_custom_call.1} parent=1 // loop_footer
      %s39 = sadd.s32 1, %s35
    $region7: #{tpu_custom_call.1} parent=1 // loop_footer_branch
      %34 = sbr.rel target = $region3
    $region8: #{tpu_custom_call.1} parent=1 // loop_exit
      _
    %6254 = vsyncpa [#allocation5], 1
    %s6255 = scalar_lea.sflag [#allocation5], 1
    %6256 = vsyncpa %s6255, 1
    %6257 = vsyncpa [#allocation8], 1
    %6258 = vsyncpa [#allocation11], 1
    %6259 = vsyncpa [#allocation14], 1
    %6260 = vsyncpa [#allocation6], 1
    %s6261 = scalar_lea.sflag [#allocation6], 1
    %6262 = vsyncpa %s6261, 1
    %6263 = vsyncpa [#allocation17], 1
    %s6264 = scalar_lea.sflag [#allocation17], 1
    %6265 = vsyncpa %s6264, 1

</llo_original>
